<compile_context>
chip_gen: v6e
topology: v6e:2x2x1
jax: 0.10.0
libtpu: 0.0.40
codegen_flags: <defaults>
</compile_context>

<pallas_src>
import jax
import jax.numpy as jnp
from jax import lax
from jax.experimental import pallas as pl
from jax.experimental.pallas import tpu as pltpu


# ----------------------------------------------------------------------------
# Fused decoder kernel (one grid step == one batch element)
# ----------------------------------------------------------------------------
def _jam_fused_kernel(x_ref,
                      w0_ref, b0_ref, a0_ref,
                      w1_ref, b1_ref, a1_ref,
                      w2_ref, b2_ref,
                      wh_ref, bh_ref,
                      hidd_ref, head_ref,
                      xbuf, tbuf):
    hp, wc = xbuf.shape
    h = hp - 2

    # 1-row zero halo (top/bottom).  Width padding is folded into the banded
    # weights, so there is no lane halo.  Re-established every step (~free).
    zrow = jnp.zeros((1, wc), jnp.float32)
    xbuf[0:1, :] = zrow
    xbuf[hp - 1:hp, :] = zrow
    tbuf[0:1, :] = zrow
    tbuf[hp - 1:hp, :] = zrow

    # Pre-concatenated lane-dense input slab -> interior rows (full-lane stores).
    xbuf[1:h + 1, :] = x_ref[0]

    def conv3x3(buf, band0, band1, band2, bias, alpha):
        """3x3 'same' conv as 3 banded MXU matmuls on lane-dense slabs.

        buf   : (H+2, W*Cin) f32 ref, rows 0 / H+1 are the zero halo
        bandK : (W*Cin, W*Cout) bf16 block-banded weights for kernel row K
        bias  : (1, W*Cout) f32 (per-channel bias tiled across W)
        alpha : (1, W*Cout) f32 PReLU slope, or None for a plain conv (static skip)
        returns (H, W*Cout) f32
        """
        r0 = buf[0:h, :].astype(jnp.bfloat16)
        r1 = buf[1:h + 1, :].astype(jnp.bfloat16)
        r2 = buf[2:h + 2, :].astype(jnp.bfloat16)
        acc = jnp.dot(r0, band0, preferred_element_type=jnp.float32)
        acc = acc + jnp.dot(r1, band1, preferred_element_type=jnp.float32)
        acc = acc + jnp.dot(r2, band2, preferred_element_type=jnp.float32)
        acc = acc + bias
        if alpha is not None:
            acc = jnp.where(acc >= 0.0, acc, alpha * acc)
        return acc

    # convrelu: x = PReLU(conv3x3(cat(c_0, c_1)))
    y = conv3x3(xbuf, w0_ref[0], w0_ref[1], w0_ref[2], b0_ref[...], a0_ref[...])
    xbuf[1:h + 1, :] = y

    # 3 residual blocks: x = x + conv(PReLU(conv(x)))
    for i in range(3):
        t = conv3x3(xbuf, w1_ref[3 * i], w1_ref[3 * i + 1], w1_ref[3 * i + 2],
                    b1_ref[i:i + 1], a1_ref[i:i + 1])
        tbuf[1:h + 1, :] = t
        t2 = conv3x3(tbuf, w2_ref[3 * i], w2_ref[3 * i + 1], w2_ref[3 * i + 2],
                     b2_ref[i:i + 1], None)
        xbuf[1:h + 1, :] = xbuf[1:h + 1, :] + t2

    # x_hidd: the interior slab IS the lane-dense output layout (no reshape).
    hidd_ref[0] = xbuf[1:h + 1, :]

    # Merged flow(4)+img(3)+pad(1) head -> lane-dense (H, W*8) slab.
    head_ref[0] = conv3x3(xbuf, wh_ref[0], wh_ref[1], wh_ref[2],
                          bh_ref[...], None)


# ----------------------------------------------------------------------------
# Wrapper helpers: banded weights + lane-tiled per-channel vectors
# ----------------------------------------------------------------------------
def _bands_from_hwio(w_hwio, width):
    """(3,3,Cin,Cout) HWIO -> (3, width*Cin, width*Cout) block-banded f32.

    band[dy][wi*Cin + c, wo*Cout + o] = w[dy, wi-wo+1, c, o] for |wi-wo| <= 1,
    so  slab_rows(H, W*Cin) @ band[dy]  performs the dx sweep and the width
    zero-padding of a 'same' conv in one MXU matmul per kernel row.
    """
    kh, kw, ci, co = w_hwio.shape
    bands = []
    for dy in range(kh):
        m = jnp.zeros((width * ci, width * co), jnp.float32)
        for dx in range(kw):
            sel = jnp.eye(width, width, k=1 - dx, dtype=jnp.float32)
            m = m + jnp.kron(sel, w_hwio[dy, dx])
        bands.append(m)
    return jnp.stack(bands)


def _tile_chan(v, width):
    """(Cout,) per-channel vector -> (1, width*Cout) lane-dense row."""
    return jnp.tile(v, width).reshape(1, -1)


# ----------------------------------------------------------------------------
# Wrapper: packs params, calls the fused kernel, unpacks outputs
# ----------------------------------------------------------------------------
def jam_decoder_top_level(c_0, c_1, params):
    bsz, h, w, in_chs = c_0.shape
    c = 2 * in_chs
    wc = w * c                       # 128 lanes at the test shapes
    co_head = 8                      # flow(4) + img(3) + zero pad(1)
    wch = w * co_head

    # Lane-dense input slab: channel concat + (W, C) -> W*C flatten in the wrapper.
    x_in = jnp.concatenate([c_0, c_1], axis=-1).reshape(bsz, h, wc)

    # Banded weights, bf16 at the MXU boundary.
    w0 = _bands_from_hwio(params["conv0_w"], w).astype(jnp.bfloat16)
    w1 = jnp.concatenate(
        [_bands_from_hwio(params[f"rb{i}_w1"], w) for i in range(3)],
        axis=0).astype(jnp.bfloat16)                                   # (9, wc, wc)
    w2 = jnp.concatenate(
        [_bands_from_hwio(params[f"rb{i}_w2"], w) for i in range(3)],
        axis=0).astype(jnp.bfloat16)                                   # (9, wc, wc)
    wh_hwio = jnp.concatenate(
        [params["flow_w"], params["img_w"],
         jnp.zeros((3, 3, c, 1), jnp.float32)], axis=-1)               # (3,3,c,8)
    wh = _bands_from_hwio(wh_hwio, w).astype(jnp.bfloat16)             # (3, wc, w*8)

    # Per-channel bias / PReLU slope tiled into lane-dense rows (f32).
    b0 = _tile_chan(params["conv0_b"], w)
    a0 = _tile_chan(params["conv0_a"], w)
    b1 = jnp.concatenate([_tile_chan(params[f"rb{i}_b1"], w) for i in range(3)], 0)
    a1 = jnp.concatenate([_tile_chan(params[f"rb{i}_a1"], w) for i in range(3)], 0)
    b2 = jnp.concatenate([_tile_chan(params[f"rb{i}_b2"], w) for i in range(3)], 0)
    bh = _tile_chan(jnp.concatenate(
        [params["flow_b"], params["img_b"], jnp.zeros((1,), jnp.float32)]), w)

    hidd_slab, head_slab = pl.pallas_call(
        _jam_fused_kernel,
        out_shape=(
            jax.ShapeDtypeStruct((bsz, h, wc), jnp.float32),
            jax.ShapeDtypeStruct((bsz, h, wch), jnp.float32),
        ),
        grid=(bsz,),
        in_specs=[
            pl.BlockSpec((1, h, wc), lambda i: (i, 0, 0)),         # x_in slab
            pl.BlockSpec((3, wc, wc), lambda i: (0, 0, 0)),        # conv0 bands
            pl.BlockSpec((1, wc), lambda i: (0, 0)),               # b0
            pl.BlockSpec((1, wc), lambda i: (0, 0)),               # a0
            pl.BlockSpec((9, wc, wc), lambda i: (0, 0, 0)),        # rb conv1 bands
            pl.BlockSpec((3, wc), lambda i: (0, 0)),               # b1
            pl.BlockSpec((3, wc), lambda i: (0, 0)),               # a1
            pl.BlockSpec((9, wc, wc), lambda i: (0, 0, 0)),        # rb conv2 bands
            pl.BlockSpec((3, wc), lambda i: (0, 0)),               # b2
            pl.BlockSpec((3, wc, wch), lambda i: (0, 0, 0)),       # head bands
            pl.BlockSpec((1, wch), lambda i: (0, 0)),              # bh
        ],
        out_specs=(
            pl.BlockSpec((1, h, wc), lambda i: (i, 0, 0)),
            pl.BlockSpec((1, h, wch), lambda i: (i, 0, 0)),
        ),
        scratch_shapes=[
            pltpu.VMEM((h + 2, wc), jnp.float32),   # x slab (+1-row zero halo)
            pltpu.VMEM((h + 2, wc), jnp.float32),   # resblock mid slab
        ],
        compiler_params=pltpu.CompilerParams(
            dimension_semantics=("parallel",),          # 2 TCs on v7x
            vmem_limit_bytes=32 * 1024 * 1024),         # lift v5e's 16 MiB default
    )(x_in, w0, b0, a0, w1, b1, a1, w2, b2, wh, bh)

    x_hidd = hidd_slab.reshape(bsz, h, w, c)
    head = head_slab.reshape(bsz, h, w, co_head)
    flow_0, flow_1 = head[..., 0:2], head[..., 2:4]
    img_pred = head[..., 4:7]
    return img_pred, x_hidd, flow_0, flow_1


# ----------------------------------------------------------------------------
# Pure-JAX reference (correctness check only)
# ----------------------------------------------------------------------------
def _round_bf16(a):
    return a.astype(jnp.bfloat16).astype(jnp.float32)


def _conv_ref(x, wt, b, mxu_bf16):
    if mxu_bf16:                       # same quantization points as the kernel's MXU path
        x, wt = _round_bf16(x), _round_bf16(wt)
    y = lax.conv_general_dilated(
        x, wt, window_strides=(1, 1), padding=((1, 1), (1, 1)),
        dimension_numbers=("NHWC", "HWIO", "NHWC"),
        precision=lax.Precision.HIGHEST)
    return y + b.reshape(1, 1, 1, -1)


def _prelu_ref(x, a):
    return jnp.where(x >= 0, x, a.reshape(1, 1, 1, -1) * x)


def jam_decoder_ref(c_0, c_1, params, mxu_bf16=False):
    x = jnp.concatenate([c_0, c_1], axis=-1)
    x = _prelu_ref(_conv_ref(x, params["conv0_w"], params["conv0_b"], mxu_bf16),
                   params["conv0_a"])
    for i in range(3):
        t = _prelu_ref(
            _conv_ref(x, params[f"rb{i}_w1"], params[f"rb{i}_b1"], mxu_bf16),
            params[f"rb{i}_a1"])
        t = _conv_ref(t, params[f"rb{i}_w2"], params[f"rb{i}_b2"], mxu_bf16)
        x = x + t
    x_hidd = x
    flow = _conv_ref(x_hidd, params["flow_w"], params["flow_b"], mxu_bf16)
    img = _conv_ref(x_hidd, params["img_w"], params["img_b"], mxu_bf16)
    return img, x_hidd, flow[..., :2], flow[..., 2:]


# ----------------------------------------------------------------------------
# Parameter construction (deterministic, PyTorch-like shapes)
# ----------------------------------------------------------------------------
def init_params(key, in_chs):
    c = 2 * in_chs
    params = {}

    def conv_w(k, cin, cout):
        return 0.1 * jax.random.normal(k, (3, 3, cin, cout), jnp.float32)

    keys = jax.random.split(key, 24)
    ki = iter(keys)

    params["conv0_w"] = conv_w(next(ki), c, c)
    params["conv0_b"] = 0.01 * jax.random.normal(next(ki), (c,), jnp.float32)
    params["conv0_a"] = jnp.full((c,), 0.25, jnp.float32)

    for i in range(3):
        params[f"rb{i}_w1"] = conv_w(next(ki), c, c)
        params[f"rb{i}_b1"] = 0.01 * jax.random.normal(next(ki), (c,), jnp.float32)
        params[f"rb{i}_a1"] = jnp.full((c,), 0.25, jnp.float32)
        params[f"rb{i}_w2"] = conv_w(next(ki), c, c)
        params[f"rb{i}_b2"] = 0.01 * jax.random.normal(next(ki), (c,), jnp.float32)

    params["flow_w"] = conv_w(next(ki), c, 4)
    params["flow_b"] = 0.01 * jax.random.normal(next(ki), (4,), jnp.float32)
    params["img_w"] = conv_w(next(ki), c, 3)
    params["img_b"] = 0.01 * jax.random.normal(next(ki), (3,), jnp.float32)
    return params


if __name__ == "__main__":
    key = jax.random.PRNGKey(0)
    k0, k1, kp = jax.random.split(key, 3)

    B, H, W = 2, 16, 16
    in_chs = 4                               # channels per input -> concat C = 8; W*C = 128 lanes

    c_0 = jax.random.normal(k0, (B, H, W, in_chs), jnp.float32)
    c_1 = jax.random.normal(k1, (B, H, W, in_chs), jnp.float32)
    params = init_params(kp, in_chs)

    fwd = jax.jit(jam_decoder_top_level)
    outs = fwd(c_0, c_1, params)
    jax.block_until_ready(outs)
    img_pred, x_hidd, flow_0, flow_1 = outs

    # Numerics-matched reference (inputs rounded to bf16, f32 accumulation):
    # isolates kernel bugs from the intended bf16-MXU quantization.
    ref_bf16 = jam_decoder_ref(c_0, c_1, params, mxu_bf16=True)
    # Full-f32 reference: the original module's semantics (loose tolerance
    # because the kernel feeds the MXU bf16 inputs with f32 accumulation).
    ref_f32 = jam_decoder_ref(c_0, c_1, params, mxu_bf16=False)

    for got, want in zip(outs, ref_bf16):
        assert got.shape == want.shape, (got.shape, want.shape)
        assert jnp.max(jnp.abs(got - want)) < 5e-3, "mismatch vs bf16-matched reference"
    for got, want in zip(outs, ref_f32):
        assert jnp.max(jnp.abs(got - want)) < 1.5e-1, "mismatch vs f32 reference"

    assert img_pred.shape == (B, H, W, 3)
    assert x_hidd.shape == (B, H, W, 2 * in_chs)
    assert flow_0.shape == (B, H, W, 2) and flow_1.shape == (B, H, W, 2)

    print("KERNEL_OK")
</pallas_src>

<mosaic_0001>
module attributes {stable_mosaic.version = 11 : i64} {
  func.func @_jam_fused_kernel(%arg0: i32, %arg1: memref<1x16x128xf32, #tpu.memory_space<vmem>>, %arg2: memref<3x128x128xbf16, #tpu.memory_space<vmem>>, %arg3: memref<1x128xf32, #tpu.memory_space<vmem>>, %arg4: memref<1x128xf32, #tpu.memory_space<vmem>>, %arg5: memref<9x128x128xbf16, #tpu.memory_space<vmem>>, %arg6: memref<3x128xf32, #tpu.memory_space<vmem>>, %arg7: memref<3x128xf32, #tpu.memory_space<vmem>>, %arg8: memref<9x128x128xbf16, #tpu.memory_space<vmem>>, %arg9: memref<3x128xf32, #tpu.memory_space<vmem>>, %arg10: memref<3x128x128xbf16, #tpu.memory_space<vmem>>, %arg11: memref<1x128xf32, #tpu.memory_space<vmem>>, %arg12: memref<1x16x128xf32, #tpu.memory_space<vmem>>, %arg13: memref<1x16x128xf32, #tpu.memory_space<vmem>>, %arg14: memref<18x128xf32, #tpu.memory_space<vmem>>, %arg15: memref<18x128xf32, #tpu.memory_space<vmem>>) attributes {dimension_semantics = [#tpu.dimension_semantics<parallel>], iteration_bounds = array<i64: 2>, scalar_prefetch = 0 : i64, scratch_operands = 2 : i64, tpu.core_type = #tpu.core_type<tc>, window_params = [{transform_indices = @transform_0, window_bounds = array<i64: 1, 16, 128>}, {pipeline_mode = #tpu.pipeline_mode<synchronous>, transform_indices = @transform_1, window_bounds = array<i64: 3, 128, 128>}, {pipeline_mode = #tpu.pipeline_mode<synchronous>, transform_indices = @transform_2, window_bounds = array<i64: 1, 128>}, {pipeline_mode = #tpu.pipeline_mode<synchronous>, transform_indices = @transform_3, window_bounds = array<i64: 1, 128>}, {pipeline_mode = #tpu.pipeline_mode<synchronous>, transform_indices = @transform_4, window_bounds = array<i64: 9, 128, 128>}, {pipeline_mode = #tpu.pipeline_mode<synchronous>, transform_indices = @transform_5, window_bounds = array<i64: 3, 128>}, {pipeline_mode = #tpu.pipeline_mode<synchronous>, transform_indices = @transform_6, window_bounds = array<i64: 3, 128>}, {pipeline_mode = #tpu.pipeline_mode<synchronous>, transform_indices = @transform_7, window_bounds = array<i64: 9, 128, 128>}, {pipeline_mode = #tpu.pipeline_mode<synchronous>, transform_indices = @transform_8, window_bounds = array<i64: 3, 128>}, {pipeline_mode = #tpu.pipeline_mode<synchronous>, transform_indices = @transform_9, window_bounds = array<i64: 3, 128, 128>}, {pipeline_mode = #tpu.pipeline_mode<synchronous>, transform_indices = @transform_10, window_bounds = array<i64: 1, 128>}, {transform_indices = @transform_11, window_bounds = array<i64: 1, 16, 128>}, {transform_indices = @transform_12, window_bounds = array<i64: 1, 16, 128>}]} {
    %cst = arith.constant 0.000000e+00 : f32
    %0 = vector.broadcast %cst : f32 to vector<1x128xf32>
    %c0 = arith.constant 0 : index
    %c0_0 = arith.constant 0 : index
    %1 = vector.load %arg14[%c0, %c0_0] : memref<18x128xf32, #tpu.memory_space<vmem>>, vector<1x128xf32>
    tpu.vector_store %arg14[%c0, %c0_0], %0 {strides = array<i32>} : memref<18x128xf32, #tpu.memory_space<vmem>>, vector<1x128xf32>,
    %c17 = arith.constant 17 : index
    %c0_1 = arith.constant 0 : index
    %2 = vector.load %arg14[%c17, %c0_1] : memref<18x128xf32, #tpu.memory_space<vmem>>, vector<1x128xf32>
    tpu.vector_store %arg14[%c17, %c0_1], %0 {strides = array<i32>} : memref<18x128xf32, #tpu.memory_space<vmem>>, vector<1x128xf32>,
    %c0_2 = arith.constant 0 : index
    %c0_3 = arith.constant 0 : index
    %3 = vector.load %arg15[%c0_2, %c0_3] : memref<18x128xf32, #tpu.memory_space<vmem>>, vector<1x128xf32>
    tpu.vector_store %arg15[%c0_2, %c0_3], %0 {strides = array<i32>} : memref<18x128xf32, #tpu.memory_space<vmem>>, vector<1x128xf32>,
    %c17_4 = arith.constant 17 : index
    %c0_5 = arith.constant 0 : index
    %4 = vector.load %arg15[%c17_4, %c0_5] : memref<18x128xf32, #tpu.memory_space<vmem>>, vector<1x128xf32>
    tpu.vector_store %arg15[%c17_4, %c0_5], %0 {strides = array<i32>} : memref<18x128xf32, #tpu.memory_space<vmem>>, vector<1x128xf32>,
    %c0_6 = arith.constant 0 : index
    %c0_7 = arith.constant 0 : index
    %c0_8 = arith.constant 0 : index
    %5 = vector.load %arg1[%c0_6, %c0_7, %c0_8] : memref<1x16x128xf32, #tpu.memory_space<vmem>>, vector<1x16x128xf32>
    %6 = vector.shape_cast %5 : vector<1x16x128xf32> to vector<16x128xf32>
    %c1 = arith.constant 1 : index
    %c0_9 = arith.constant 0 : index
    %7 = vector.load %arg14[%c1, %c0_9] : memref<18x128xf32, #tpu.memory_space<vmem>>, vector<16x128xf32>
    tpu.vector_store %arg14[%c1, %c0_9], %6 {strides = array<i32>} : memref<18x128xf32, #tpu.memory_space<vmem>>, vector<16x128xf32>,
    %c0_10 = arith.constant 0 : index
    %c0_11 = arith.constant 0 : index
    %c0_12 = arith.constant 0 : index
    %8 = vector.load %arg2[%c0_10, %c0_11, %c0_12] : memref<3x128x128xbf16, #tpu.memory_space<vmem>>, vector<1x128x128xbf16>
    %9 = vector.shape_cast %8 : vector<1x128x128xbf16> to vector<128x128xbf16>
    %c1_13 = arith.constant 1 : index
    %c0_14 = arith.constant 0 : index
    %c0_15 = arith.constant 0 : index
    %10 = vector.load %arg2[%c1_13, %c0_14, %c0_15] : memref<3x128x128xbf16, #tpu.memory_space<vmem>>, vector<1x128x128xbf16>
    %11 = vector.shape_cast %10 : vector<1x128x128xbf16> to vector<128x128xbf16>
    %c2 = arith.constant 2 : index
    %c0_16 = arith.constant 0 : index
    %c0_17 = arith.constant 0 : index
    %12 = vector.load %arg2[%c2, %c0_16, %c0_17] : memref<3x128x128xbf16, #tpu.memory_space<vmem>>, vector<1x128x128xbf16>
    %13 = vector.shape_cast %12 : vector<1x128x128xbf16> to vector<128x128xbf16>
    %c0_18 = arith.constant 0 : index
    %c0_19 = arith.constant 0 : index
    %14 = vector.load %arg3[%c0_18, %c0_19] : memref<1x128xf32, #tpu.memory_space<vmem>>, vector<1x128xf32>
    %c0_20 = arith.constant 0 : index
    %c0_21 = arith.constant 0 : index
    %15 = vector.load %arg4[%c0_20, %c0_21] : memref<1x128xf32, #tpu.memory_space<vmem>>, vector<1x128xf32>
    %c0_22 = arith.constant 0 : index
    %c0_23 = arith.constant 0 : index
    %16 = vector.load %arg14[%c0_22, %c0_23] : memref<18x128xf32, #tpu.memory_space<vmem>>, vector<16x128xf32>
    %17 = arith.truncf %16 : vector<16x128xf32> to vector<16x128xbf16>
    %c1_24 = arith.constant 1 : index
    %c0_25 = arith.constant 0 : index
    %18 = vector.load %arg14[%c1_24, %c0_25] : memref<18x128xf32, #tpu.memory_space<vmem>>, vector<16x128xf32>
    %19 = arith.truncf %18 : vector<16x128xf32> to vector<16x128xbf16>
    %c2_26 = arith.constant 2 : index
    %c0_27 = arith.constant 0 : index
    %20 = vector.load %arg14[%c2_26, %c0_27] : memref<18x128xf32, #tpu.memory_space<vmem>>, vector<16x128xf32>
    %21 = arith.truncf %20 : vector<16x128xf32> to vector<16x128xbf16>
    %cst_28 = arith.constant dense<0.000000e+00> : vector<16x128xf32>
    %22 = tpu.matmul %17, %9, %cst_28 {dimension_numbers = #tpu.dot_dimension_numbers<[1], [0], [0], [1], [0, 0, 1, 1], [], []>} : vector<16x128xbf16>, vector<128x128xbf16>, vector<16x128xf32> -> vector<16x128xf32>
    %cst_29 = arith.constant dense<0.000000e+00> : vector<16x128xf32>
    %23 = tpu.matmul %19, %11, %cst_29 {dimension_numbers = #tpu.dot_dimension_numbers<[1], [0], [0], [1], [0, 0, 1, 1], [], []>} : vector<16x128xbf16>, vector<128x128xbf16>, vector<16x128xf32> -> vector<16x128xf32>
    %24 = arith.addf %22, %23 : vector<16x128xf32>
    %cst_30 = arith.constant dense<0.000000e+00> : vector<16x128xf32>
    %25 = tpu.matmul %21, %13, %cst_30 {dimension_numbers = #tpu.dot_dimension_numbers<[1], [0], [0], [1], [0, 0, 1, 1], [], []>} : vector<16x128xbf16>, vector<128x128xbf16>, vector<16x128xf32> -> vector<16x128xf32>
    %26 = arith.addf %24, %25 : vector<16x128xf32>
    %27 = vector.broadcast %14 : vector<1x128xf32> to vector<16x128xf32>
    %28 = arith.addf %26, %27 : vector<16x128xf32>
    %cst_31 = arith.constant 0.000000e+00 : f32
    %29 = vector.broadcast %cst_31 : f32 to vector<16x128xf32>
    %30 = arith.cmpf oge, %28, %29 : vector<16x128xf32>
    %31 = vector.broadcast %15 : vector<1x128xf32> to vector<16x128xf32>
    %32 = arith.mulf %31, %28 : vector<16x128xf32>
    %33 = arith.select %30, %28, %32 : vector<16x128xi1>, vector<16x128xf32>
    %c1_32 = arith.constant 1 : index
    %c0_33 = arith.constant 0 : index
    %34 = vector.load %arg14[%c1_32, %c0_33] : memref<18x128xf32, #tpu.memory_space<vmem>>, vector<16x128xf32>
    tpu.vector_store %arg14[%c1_32, %c0_33], %33 {strides = array<i32>} : memref<18x128xf32, #tpu.memory_space<vmem>>, vector<16x128xf32>,
    %c0_34 = arith.constant 0 : index
    %c0_35 = arith.constant 0 : index
    %c0_36 = arith.constant 0 : index
    %35 = vector.load %arg5[%c0_34, %c0_35, %c0_36] : memref<9x128x128xbf16, #tpu.memory_space<vmem>>, vector<1x128x128xbf16>
    %36 = vector.shape_cast %35 : vector<1x128x128xbf16> to vector<128x128xbf16>
    %c1_37 = arith.constant 1 : index
    %c0_38 = arith.constant 0 : index
    %c0_39 = arith.constant 0 : index
    %37 = vector.load %arg5[%c1_37, %c0_38, %c0_39] : memref<9x128x128xbf16, #tpu.memory_space<vmem>>, vector<1x128x128xbf16>
    %38 = vector.shape_cast %37 : vector<1x128x128xbf16> to vector<128x128xbf16>
    %c2_40 = arith.constant 2 : index
    %c0_41 = arith.constant 0 : index
    %c0_42 = arith.constant 0 : index
    %39 = vector.load %arg5[%c2_40, %c0_41, %c0_42] : memref<9x128x128xbf16, #tpu.memory_space<vmem>>, vector<1x128x128xbf16>
    %40 = vector.shape_cast %39 : vector<1x128x128xbf16> to vector<128x128xbf16>
    %c0_43 = arith.constant 0 : index
    %c0_44 = arith.constant 0 : index
    %41 = vector.load %arg6[%c0_43, %c0_44] : memref<3x128xf32, #tpu.memory_space<vmem>>, vector<1x128xf32>
    %c0_45 = arith.constant 0 : index
    %c0_46 = arith.constant 0 : index
    %42 = vector.load %arg7[%c0_45, %c0_46] : memref<3x128xf32, #tpu.memory_space<vmem>>, vector<1x128xf32>
    %c0_47 = arith.constant 0 : index
    %c0_48 = arith.constant 0 : index
    %43 = vector.load %arg14[%c0_47, %c0_48] : memref<18x128xf32, #tpu.memory_space<vmem>>, vector<16x128xf32>
    %44 = arith.truncf %43 : vector<16x128xf32> to vector<16x128xbf16>
    %c1_49 = arith.constant 1 : index
    %c0_50 = arith.constant 0 : index
    %45 = vector.load %arg14[%c1_49, %c0_50] : memref<18x128xf32, #tpu.memory_space<vmem>>, vector<16x128xf32>
    %46 = arith.truncf %45 : vector<16x128xf32> to vector<16x128xbf16>
    %c2_51 = arith.constant 2 : index
    %c0_52 = arith.constant 0 : index
    %47 = vector.load %arg14[%c2_51, %c0_52] : memref<18x128xf32, #tpu.memory_space<vmem>>, vector<16x128xf32>
    %48 = arith.truncf %47 : vector<16x128xf32> to vector<16x128xbf16>
    %cst_53 = arith.constant dense<0.000000e+00> : vector<16x128xf32>
    %49 = tpu.matmul %44, %36, %cst_53 {dimension_numbers = #tpu.dot_dimension_numbers<[1], [0], [0], [1], [0, 0, 1, 1], [], []>} : vector<16x128xbf16>, vector<128x128xbf16>, vector<16x128xf32> -> vector<16x128xf32>
    %cst_54 = arith.constant dense<0.000000e+00> : vector<16x128xf32>
    %50 = tpu.matmul %46, %38, %cst_54 {dimension_numbers = #tpu.dot_dimension_numbers<[1], [0], [0], [1], [0, 0, 1, 1], [], []>} : vector<16x128xbf16>, vector<128x128xbf16>, vector<16x128xf32> -> vector<16x128xf32>
    %51 = arith.addf %49, %50 : vector<16x128xf32>
    %cst_55 = arith.constant dense<0.000000e+00> : vector<16x128xf32>
    %52 = tpu.matmul %48, %40, %cst_55 {dimension_numbers = #tpu.dot_dimension_numbers<[1], [0], [0], [1], [0, 0, 1, 1], [], []>} : vector<16x128xbf16>, vector<128x128xbf16>, vector<16x128xf32> -> vector<16x128xf32>
    %53 = arith.addf %51, %52 : vector<16x128xf32>
    %54 = vector.broadcast %41 : vector<1x128xf32> to vector<16x128xf32>
    %55 = arith.addf %53, %54 : vector<16x128xf32>
    %cst_56 = arith.constant 0.000000e+00 : f32
    %56 = vector.broadcast %cst_56 : f32 to vector<16x128xf32>
    %57 = arith.cmpf oge, %55, %56 : vector<16x128xf32>
    %58 = vector.broadcast %42 : vector<1x128xf32> to vector<16x128xf32>
    %59 = arith.mulf %58, %55 : vector<16x128xf32>
    %60 = arith.select %57, %55, %59 : vector<16x128xi1>, vector<16x128xf32>
    %c1_57 = arith.constant 1 : index
    %c0_58 = arith.constant 0 : index
    %61 = vector.load %arg15[%c1_57, %c0_58] : memref<18x128xf32, #tpu.memory_space<vmem>>, vector<16x128xf32>
    tpu.vector_store %arg15[%c1_57, %c0_58], %60 {strides = array<i32>} : memref<18x128xf32, #tpu.memory_space<vmem>>, vector<16x128xf32>,
    %c0_59 = arith.constant 0 : index
    %c0_60 = arith.constant 0 : index
    %c0_61 = arith.constant 0 : index
    %62 = vector.load %arg8[%c0_59, %c0_60, %c0_61] : memref<9x128x128xbf16, #tpu.memory_space<vmem>>, vector<1x128x128xbf16>
    %63 = vector.shape_cast %62 : vector<1x128x128xbf16> to vector<128x128xbf16>
    %c1_62 = arith.constant 1 : index
    %c0_63 = arith.constant 0 : index
    %c0_64 = arith.constant 0 : index
    %64 = vector.load %arg8[%c1_62, %c0_63, %c0_64] : memref<9x128x128xbf16, #tpu.memory_space<vmem>>, vector<1x128x128xbf16>
    %65 = vector.shape_cast %64 : vector<1x128x128xbf16> to vector<128x128xbf16>
    %c2_65 = arith.constant 2 : index
    %c0_66 = arith.constant 0 : index
    %c0_67 = arith.constant 0 : index
    %66 = vector.load %arg8[%c2_65, %c0_66, %c0_67] : memref<9x128x128xbf16, #tpu.memory_space<vmem>>, vector<1x128x128xbf16>
    %67 = vector.shape_cast %66 : vector<1x128x128xbf16> to vector<128x128xbf16>
    %c0_68 = arith.constant 0 : index
    %c0_69 = arith.constant 0 : index
    %68 = vector.load %arg9[%c0_68, %c0_69] : memref<3x128xf32, #tpu.memory_space<vmem>>, vector<1x128xf32>
    %c0_70 = arith.constant 0 : index
    %c0_71 = arith.constant 0 : index
    %69 = vector.load %arg15[%c0_70, %c0_71] : memref<18x128xf32, #tpu.memory_space<vmem>>, vector<16x128xf32>
    %70 = arith.truncf %69 : vector<16x128xf32> to vector<16x128xbf16>
    %c1_72 = arith.constant 1 : index
    %c0_73 = arith.constant 0 : index
    %71 = vector.load %arg15[%c1_72, %c0_73] : memref<18x128xf32, #tpu.memory_space<vmem>>, vector<16x128xf32>
    %72 = arith.truncf %71 : vector<16x128xf32> to vector<16x128xbf16>
    %c2_74 = arith.constant 2 : index
    %c0_75 = arith.constant 0 : index
    %73 = vector.load %arg15[%c2_74, %c0_75] : memref<18x128xf32, #tpu.memory_space<vmem>>, vector<16x128xf32>
    %74 = arith.truncf %73 : vector<16x128xf32> to vector<16x128xbf16>
    %cst_76 = arith.constant dense<0.000000e+00> : vector<16x128xf32>
    %75 = tpu.matmul %70, %63, %cst_76 {dimension_numbers = #tpu.dot_dimension_numbers<[1], [0], [0], [1], [0, 0, 1, 1], [], []>} : vector<16x128xbf16>, vector<128x128xbf16>, vector<16x128xf32> -> vector<16x128xf32>
    %cst_77 = arith.constant dense<0.000000e+00> : vector<16x128xf32>
    %76 = tpu.matmul %72, %65, %cst_77 {dimension_numbers = #tpu.dot_dimension_numbers<[1], [0], [0], [1], [0, 0, 1, 1], [], []>} : vector<16x128xbf16>, vector<128x128xbf16>, vector<16x128xf32> -> vector<16x128xf32>
    %77 = arith.addf %75, %76 : vector<16x128xf32>
    %cst_78 = arith.constant dense<0.000000e+00> : vector<16x128xf32>
    %78 = tpu.matmul %74, %67, %cst_78 {dimension_numbers = #tpu.dot_dimension_numbers<[1], [0], [0], [1], [0, 0, 1, 1], [], []>} : vector<16x128xbf16>, vector<128x128xbf16>, vector<16x128xf32> -> vector<16x128xf32>
    %79 = arith.addf %77, %78 : vector<16x128xf32>
    %80 = vector.broadcast %68 : vector<1x128xf32> to vector<16x128xf32>
    %81 = arith.addf %79, %80 : vector<16x128xf32>
    %c1_79 = arith.constant 1 : index
    %c0_80 = arith.constant 0 : index
    %82 = vector.load %arg14[%c1_79, %c0_80] : memref<18x128xf32, #tpu.memory_space<vmem>>, vector<16x128xf32>
    %83 = arith.addf %82, %81 : vector<16x128xf32>
    %c1_81 = arith.constant 1 : index
    %c0_82 = arith.constant 0 : index
    %84 = vector.load %arg14[%c1_81, %c0_82] : memref<18x128xf32, #tpu.memory_space<vmem>>, vector<16x128xf32>
    tpu.vector_store %arg14[%c1_81, %c0_82], %83 {strides = array<i32>} : memref<18x128xf32, #tpu.memory_space<vmem>>, vector<16x128xf32>,
    %c3 = arith.constant 3 : index
    %c0_83 = arith.constant 0 : index
    %c0_84 = arith.constant 0 : index
    %85 = vector.load %arg5[%c3, %c0_83, %c0_84] : memref<9x128x128xbf16, #tpu.memory_space<vmem>>, vector<1x128x128xbf16>
    %86 = vector.shape_cast %85 : vector<1x128x128xbf16> to vector<128x128xbf16>
    %c4 = arith.constant 4 : index
    %c0_85 = arith.constant 0 : index
    %c0_86 = arith.constant 0 : index
    %87 = vector.load %arg5[%c4, %c0_85, %c0_86] : memref<9x128x128xbf16, #tpu.memory_space<vmem>>, vector<1x128x128xbf16>
    %88 = vector.shape_cast %87 : vector<1x128x128xbf16> to vector<128x128xbf16>
    %c5 = arith.constant 5 : index
    %c0_87 = arith.constant 0 : index
    %c0_88 = arith.constant 0 : index
    %89 = vector.load %arg5[%c5, %c0_87, %c0_88] : memref<9x128x128xbf16, #tpu.memory_space<vmem>>, vector<1x128x128xbf16>
    %90 = vector.shape_cast %89 : vector<1x128x128xbf16> to vector<128x128xbf16>
    %c1_89 = arith.constant 1 : index
    %c0_90 = arith.constant 0 : index
    %91 = vector.load %arg6[%c1_89, %c0_90] : memref<3x128xf32, #tpu.memory_space<vmem>>, vector<1x128xf32>
    %c1_91 = arith.constant 1 : index
    %c0_92 = arith.constant 0 : index
    %92 = vector.load %arg7[%c1_91, %c0_92] : memref<3x128xf32, #tpu.memory_space<vmem>>, vector<1x128xf32>
    %c0_93 = arith.constant 0 : index
    %c0_94 = arith.constant 0 : index
    %93 = vector.load %arg14[%c0_93, %c0_94] : memref<18x128xf32, #tpu.memory_space<vmem>>, vector<16x128xf32>
    %94 = arith.truncf %93 : vector<16x128xf32> to vector<16x128xbf16>
    %c1_95 = arith.constant 1 : index
    %c0_96 = arith.constant 0 : index
    %95 = vector.load %arg14[%c1_95, %c0_96] : memref<18x128xf32, #tpu.memory_space<vmem>>, vector<16x128xf32>
    %96 = arith.truncf %95 : vector<16x128xf32> to vector<16x128xbf16>
    %c2_97 = arith.constant 2 : index
    %c0_98 = arith.constant 0 : index
    %97 = vector.load %arg14[%c2_97, %c0_98] : memref<18x128xf32, #tpu.memory_space<vmem>>, vector<16x128xf32>
    %98 = arith.truncf %97 : vector<16x128xf32> to vector<16x128xbf16>
    %cst_99 = arith.constant dense<0.000000e+00> : vector<16x128xf32>
    %99 = tpu.matmul %94, %86, %cst_99 {dimension_numbers = #tpu.dot_dimension_numbers<[1], [0], [0], [1], [0, 0, 1, 1], [], []>} : vector<16x128xbf16>, vector<128x128xbf16>, vector<16x128xf32> -> vector<16x128xf32>
    %cst_100 = arith.constant dense<0.000000e+00> : vector<16x128xf32>
    %100 = tpu.matmul %96, %88, %cst_100 {dimension_numbers = #tpu.dot_dimension_numbers<[1], [0], [0], [1], [0, 0, 1, 1], [], []>} : vector<16x128xbf16>, vector<128x128xbf16>, vector<16x128xf32> -> vector<16x128xf32>
    %101 = arith.addf %99, %100 : vector<16x128xf32>
    %cst_101 = arith.constant dense<0.000000e+00> : vector<16x128xf32>
    %102 = tpu.matmul %98, %90, %cst_101 {dimension_numbers = #tpu.dot_dimension_numbers<[1], [0], [0], [1], [0, 0, 1, 1], [], []>} : vector<16x128xbf16>, vector<128x128xbf16>, vector<16x128xf32> -> vector<16x128xf32>
    %103 = arith.addf %101, %102 : vector<16x128xf32>
    %104 = vector.broadcast %91 : vector<1x128xf32> to vector<16x128xf32>
    %105 = arith.addf %103, %104 : vector<16x128xf32>
    %cst_102 = arith.constant 0.000000e+00 : f32
    %106 = vector.broadcast %cst_102 : f32 to vector<16x128xf32>
    %107 = arith.cmpf oge, %105, %106 : vector<16x128xf32>
    %108 = vector.broadcast %92 : vector<1x128xf32> to vector<16x128xf32>
    %109 = arith.mulf %108, %105 : vector<16x128xf32>
    %110 = arith.select %107, %105, %109 : vector<16x128xi1>, vector<16x128xf32>
    %c1_103 = arith.constant 1 : index
    %c0_104 = arith.constant 0 : index
    %111 = vector.load %arg15[%c1_103, %c0_104] : memref<18x128xf32, #tpu.memory_space<vmem>>, vector<16x128xf32>
    tpu.vector_store %arg15[%c1_103, %c0_104], %110 {strides = array<i32>} : memref<18x128xf32, #tpu.memory_space<vmem>>, vector<16x128xf32>,
    %c3_105 = arith.constant 3 : index
    %c0_106 = arith.constant 0 : index
    %c0_107 = arith.constant 0 : index
    %112 = vector.load %arg8[%c3_105, %c0_106, %c0_107] : memref<9x128x128xbf16, #tpu.memory_space<vmem>>, vector<1x128x128xbf16>
    %113 = vector.shape_cast %112 : vector<1x128x128xbf16> to vector<128x128xbf16>
    %c4_108 = arith.constant 4 : index
    %c0_109 = arith.constant 0 : index
    %c0_110 = arith.constant 0 : index
    %114 = vector.load %arg8[%c4_108, %c0_109, %c0_110] : memref<9x128x128xbf16, #tpu.memory_space<vmem>>, vector<1x128x128xbf16>
    %115 = vector.shape_cast %114 : vector<1x128x128xbf16> to vector<128x128xbf16>
    %c5_111 = arith.constant 5 : index
    %c0_112 = arith.constant 0 : index
    %c0_113 = arith.constant 0 : index
    %116 = vector.load %arg8[%c5_111, %c0_112, %c0_113] : memref<9x128x128xbf16, #tpu.memory_space<vmem>>, vector<1x128x128xbf16>
    %117 = vector.shape_cast %116 : vector<1x128x128xbf16> to vector<128x128xbf16>
    %c1_114 = arith.constant 1 : index
    %c0_115 = arith.constant 0 : index
    %118 = vector.load %arg9[%c1_114, %c0_115] : memref<3x128xf32, #tpu.memory_space<vmem>>, vector<1x128xf32>
    %c0_116 = arith.constant 0 : index
    %c0_117 = arith.constant 0 : index
    %119 = vector.load %arg15[%c0_116, %c0_117] : memref<18x128xf32, #tpu.memory_space<vmem>>, vector<16x128xf32>
    %120 = arith.truncf %119 : vector<16x128xf32> to vector<16x128xbf16>
    %c1_118 = arith.constant 1 : index
    %c0_119 = arith.constant 0 : index
    %121 = vector.load %arg15[%c1_118, %c0_119] : memref<18x128xf32, #tpu.memory_space<vmem>>, vector<16x128xf32>
    %122 = arith.truncf %121 : vector<16x128xf32> to vector<16x128xbf16>
    %c2_120 = arith.constant 2 : index
    %c0_121 = arith.constant 0 : index
    %123 = vector.load %arg15[%c2_120, %c0_121] : memref<18x128xf32, #tpu.memory_space<vmem>>, vector<16x128xf32>
    %124 = arith.truncf %123 : vector<16x128xf32> to vector<16x128xbf16>
    %cst_122 = arith.constant dense<0.000000e+00> : vector<16x128xf32>
    %125 = tpu.matmul %120, %113, %cst_122 {dimension_numbers = #tpu.dot_dimension_numbers<[1], [0], [0], [1], [0, 0, 1, 1], [], []>} : vector<16x128xbf16>, vector<128x128xbf16>, vector<16x128xf32> -> vector<16x128xf32>
    %cst_123 = arith.constant dense<0.000000e+00> : vector<16x128xf32>
    %126 = tpu.matmul %122, %115, %cst_123 {dimension_numbers = #tpu.dot_dimension_numbers<[1], [0], [0], [1], [0, 0, 1, 1], [], []>} : vector<16x128xbf16>, vector<128x128xbf16>, vector<16x128xf32> -> vector<16x128xf32>
    %127 = arith.addf %125, %126 : vector<16x128xf32>
    %cst_124 = arith.constant dense<0.000000e+00> : vector<16x128xf32>
    %128 = tpu.matmul %124, %117, %cst_124 {dimension_numbers = #tpu.dot_dimension_numbers<[1], [0], [0], [1], [0, 0, 1, 1], [], []>} : vector<16x128xbf16>, vector<128x128xbf16>, vector<16x128xf32> -> vector<16x128xf32>
    %129 = arith.addf %127, %128 : vector<16x128xf32>
    %130 = vector.broadcast %118 : vector<1x128xf32> to vector<16x128xf32>
    %131 = arith.addf %129, %130 : vector<16x128xf32>
    %c1_125 = arith.constant 1 : index
    %c0_126 = arith.constant 0 : index
    %132 = vector.load %arg14[%c1_125, %c0_126] : memref<18x128xf32, #tpu.memory_space<vmem>>, vector<16x128xf32>
    %133 = arith.addf %132, %131 : vector<16x128xf32>
    %c1_127 = arith.constant 1 : index
    %c0_128 = arith.constant 0 : index
    %134 = vector.load %arg14[%c1_127, %c0_128] : memref<18x128xf32, #tpu.memory_space<vmem>>, vector<16x128xf32>
    tpu.vector_store %arg14[%c1_127, %c0_128], %133 {strides = array<i32>} : memref<18x128xf32, #tpu.memory_space<vmem>>, vector<16x128xf32>,
    %c6 = arith.constant 6 : index
    %c0_129 = arith.constant 0 : index
    %c0_130 = arith.constant 0 : index
    %135 = vector.load %arg5[%c6, %c0_129, %c0_130] : memref<9x128x128xbf16, #tpu.memory_space<vmem>>, vector<1x128x128xbf16>
    %136 = vector.shape_cast %135 : vector<1x128x128xbf16> to vector<128x128xbf16>
    %c7 = arith.constant 7 : index
    %c0_131 = arith.constant 0 : index
    %c0_132 = arith.constant 0 : index
    %137 = vector.load %arg5[%c7, %c0_131, %c0_132] : memref<9x128x128xbf16, #tpu.memory_space<vmem>>, vector<1x128x128xbf16>
    %138 = vector.shape_cast %137 : vector<1x128x128xbf16> to vector<128x128xbf16>
    %c8 = arith.constant 8 : index
    %c0_133 = arith.constant 0 : index
    %c0_134 = arith.constant 0 : index
    %139 = vector.load %arg5[%c8, %c0_133, %c0_134] : memref<9x128x128xbf16, #tpu.memory_space<vmem>>, vector<1x128x128xbf16>
    %140 = vector.shape_cast %139 : vector<1x128x128xbf16> to vector<128x128xbf16>
    %c2_135 = arith.constant 2 : index
    %c0_136 = arith.constant 0 : index
    %141 = vector.load %arg6[%c2_135, %c0_136] : memref<3x128xf32, #tpu.memory_space<vmem>>, vector<1x128xf32>
    %c2_137 = arith.constant 2 : index
    %c0_138 = arith.constant 0 : index
    %142 = vector.load %arg7[%c2_137, %c0_138] : memref<3x128xf32, #tpu.memory_space<vmem>>, vector<1x128xf32>
    %c0_139 = arith.constant 0 : index
    %c0_140 = arith.constant 0 : index
    %143 = vector.load %arg14[%c0_139, %c0_140] : memref<18x128xf32, #tpu.memory_space<vmem>>, vector<16x128xf32>
    %144 = arith.truncf %143 : vector<16x128xf32> to vector<16x128xbf16>
    %c1_141 = arith.constant 1 : index
    %c0_142 = arith.constant 0 : index
    %145 = vector.load %arg14[%c1_141, %c0_142] : memref<18x128xf32, #tpu.memory_space<vmem>>, vector<16x128xf32>
    %146 = arith.truncf %145 : vector<16x128xf32> to vector<16x128xbf16>
    %c2_143 = arith.constant 2 : index
    %c0_144 = arith.constant 0 : index
    %147 = vector.load %arg14[%c2_143, %c0_144] : memref<18x128xf32, #tpu.memory_space<vmem>>, vector<16x128xf32>
    %148 = arith.truncf %147 : vector<16x128xf32> to vector<16x128xbf16>
    %cst_145 = arith.constant dense<0.000000e+00> : vector<16x128xf32>
    %149 = tpu.matmul %144, %136, %cst_145 {dimension_numbers = #tpu.dot_dimension_numbers<[1], [0], [0], [1], [0, 0, 1, 1], [], []>} : vector<16x128xbf16>, vector<128x128xbf16>, vector<16x128xf32> -> vector<16x128xf32>
    %cst_146 = arith.constant dense<0.000000e+00> : vector<16x128xf32>
    %150 = tpu.matmul %146, %138, %cst_146 {dimension_numbers = #tpu.dot_dimension_numbers<[1], [0], [0], [1], [0, 0, 1, 1], [], []>} : vector<16x128xbf16>, vector<128x128xbf16>, vector<16x128xf32> -> vector<16x128xf32>
    %151 = arith.addf %149, %150 : vector<16x128xf32>
    %cst_147 = arith.constant dense<0.000000e+00> : vector<16x128xf32>
    %152 = tpu.matmul %148, %140, %cst_147 {dimension_numbers = #tpu.dot_dimension_numbers<[1], [0], [0], [1], [0, 0, 1, 1], [], []>} : vector<16x128xbf16>, vector<128x128xbf16>, vector<16x128xf32> -> vector<16x128xf32>
    %153 = arith.addf %151, %152 : vector<16x128xf32>
    %154 = vector.broadcast %141 : vector<1x128xf32> to vector<16x128xf32>
    %155 = arith.addf %153, %154 : vector<16x128xf32>
    %cst_148 = arith.constant 0.000000e+00 : f32
    %156 = vector.broadcast %cst_148 : f32 to vector<16x128xf32>
    %157 = arith.cmpf oge, %155, %156 : vector<16x128xf32>
    %158 = vector.broadcast %142 : vector<1x128xf32> to vector<16x128xf32>
    %159 = arith.mulf %158, %155 : vector<16x128xf32>
    %160 = arith.select %157, %155, %159 : vector<16x128xi1>, vector<16x128xf32>
    %c1_149 = arith.constant 1 : index
    %c0_150 = arith.constant 0 : index
    %161 = vector.load %arg15[%c1_149, %c0_150] : memref<18x128xf32, #tpu.memory_space<vmem>>, vector<16x128xf32>
    tpu.vector_store %arg15[%c1_149, %c0_150], %160 {strides = array<i32>} : memref<18x128xf32, #tpu.memory_space<vmem>>, vector<16x128xf32>,
    %c6_151 = arith.constant 6 : index
    %c0_152 = arith.constant 0 : index
    %c0_153 = arith.constant 0 : index
    %162 = vector.load %arg8[%c6_151, %c0_152, %c0_153] : memref<9x128x128xbf16, #tpu.memory_space<vmem>>, vector<1x128x128xbf16>
    %163 = vector.shape_cast %162 : vector<1x128x128xbf16> to vector<128x128xbf16>
    %c7_154 = arith.constant 7 : index
    %c0_155 = arith.constant 0 : index
    %c0_156 = arith.constant 0 : index
    %164 = vector.load %arg8[%c7_154, %c0_155, %c0_156] : memref<9x128x128xbf16, #tpu.memory_space<vmem>>, vector<1x128x128xbf16>
    %165 = vector.shape_cast %164 : vector<1x128x128xbf16> to vector<128x128xbf16>
    %c8_157 = arith.constant 8 : index
    %c0_158 = arith.constant 0 : index
    %c0_159 = arith.constant 0 : index
    %166 = vector.load %arg8[%c8_157, %c0_158, %c0_159] : memref<9x128x128xbf16, #tpu.memory_space<vmem>>, vector<1x128x128xbf16>
    %167 = vector.shape_cast %166 : vector<1x128x128xbf16> to vector<128x128xbf16>
    %c2_160 = arith.constant 2 : index
    %c0_161 = arith.constant 0 : index
    %168 = vector.load %arg9[%c2_160, %c0_161] : memref<3x128xf32, #tpu.memory_space<vmem>>, vector<1x128xf32>
    %c0_162 = arith.constant 0 : index
    %c0_163 = arith.constant 0 : index
    %169 = vector.load %arg15[%c0_162, %c0_163] : memref<18x128xf32, #tpu.memory_space<vmem>>, vector<16x128xf32>
    %170 = arith.truncf %169 : vector<16x128xf32> to vector<16x128xbf16>
    %c1_164 = arith.constant 1 : index
    %c0_165 = arith.constant 0 : index
    %171 = vector.load %arg15[%c1_164, %c0_165] : memref<18x128xf32, #tpu.memory_space<vmem>>, vector<16x128xf32>
    %172 = arith.truncf %171 : vector<16x128xf32> to vector<16x128xbf16>
    %c2_166 = arith.constant 2 : index
    %c0_167 = arith.constant 0 : index
    %173 = vector.load %arg15[%c2_166, %c0_167] : memref<18x128xf32, #tpu.memory_space<vmem>>, vector<16x128xf32>
    %174 = arith.truncf %173 : vector<16x128xf32> to vector<16x128xbf16>
    %cst_168 = arith.constant dense<0.000000e+00> : vector<16x128xf32>
    %175 = tpu.matmul %170, %163, %cst_168 {dimension_numbers = #tpu.dot_dimension_numbers<[1], [0], [0], [1], [0, 0, 1, 1], [], []>} : vector<16x128xbf16>, vector<128x128xbf16>, vector<16x128xf32> -> vector<16x128xf32>
    %cst_169 = arith.constant dense<0.000000e+00> : vector<16x128xf32>
    %176 = tpu.matmul %172, %165, %cst_169 {dimension_numbers = #tpu.dot_dimension_numbers<[1], [0], [0], [1], [0, 0, 1, 1], [], []>} : vector<16x128xbf16>, vector<128x128xbf16>, vector<16x128xf32> -> vector<16x128xf32>
    %177 = arith.addf %175, %176 : vector<16x128xf32>
    %cst_170 = arith.constant dense<0.000000e+00> : vector<16x128xf32>
    %178 = tpu.matmul %174, %167, %cst_170 {dimension_numbers = #tpu.dot_dimension_numbers<[1], [0], [0], [1], [0, 0, 1, 1], [], []>} : vector<16x128xbf16>, vector<128x128xbf16>, vector<16x128xf32> -> vector<16x128xf32>
    %179 = arith.addf %177, %178 : vector<16x128xf32>
    %180 = vector.broadcast %168 : vector<1x128xf32> to vector<16x128xf32>
    %181 = arith.addf %179, %180 : vector<16x128xf32>
    %c1_171 = arith.constant 1 : index
    %c0_172 = arith.constant 0 : index
    %182 = vector.load %arg14[%c1_171, %c0_172] : memref<18x128xf32, #tpu.memory_space<vmem>>, vector<16x128xf32>
    %183 = arith.addf %182, %181 : vector<16x128xf32>
    %c1_173 = arith.constant 1 : index
    %c0_174 = arith.constant 0 : index
    %184 = vector.load %arg14[%c1_173, %c0_174] : memref<18x128xf32, #tpu.memory_space<vmem>>, vector<16x128xf32>
    tpu.vector_store %arg14[%c1_173, %c0_174], %183 {strides = array<i32>} : memref<18x128xf32, #tpu.memory_space<vmem>>, vector<16x128xf32>,
    %c1_175 = arith.constant 1 : index
    %c0_176 = arith.constant 0 : index
    %185 = vector.load %arg14[%c1_175, %c0_176] : memref<18x128xf32, #tpu.memory_space<vmem>>, vector<16x128xf32>
    %c0_177 = arith.constant 0 : index
    %c0_178 = arith.constant 0 : index
    %c0_179 = arith.constant 0 : index
    %186 = vector.load %arg12[%c0_177, %c0_178, %c0_179] : memref<1x16x128xf32, #tpu.memory_space<vmem>>, vector<1x16x128xf32>
    %187 = vector.shape_cast %186 : vector<1x16x128xf32> to vector<16x128xf32>
    %188 = vector.shape_cast %185 : vector<16x128xf32> to vector<1x16x128xf32>
    tpu.vector_store %arg12[%c0_177, %c0_178, %c0_179], %188 {strides = array<i32>} : memref<1x16x128xf32, #tpu.memory_space<vmem>>, vector<1x16x128xf32>,
    %c0_180 = arith.constant 0 : index
    %c0_181 = arith.constant 0 : index
    %c0_182 = arith.constant 0 : index
    %189 = vector.load %arg10[%c0_180, %c0_181, %c0_182] : memref<3x128x128xbf16, #tpu.memory_space<vmem>>, vector<1x128x128xbf16>
    %190 = vector.shape_cast %189 : vector<1x128x128xbf16> to vector<128x128xbf16>
    %c1_183 = arith.constant 1 : index
    %c0_184 = arith.constant 0 : index
    %c0_185 = arith.constant 0 : index
    %191 = vector.load %arg10[%c1_183, %c0_184, %c0_185] : memref<3x128x128xbf16, #tpu.memory_space<vmem>>, vector<1x128x128xbf16>
    %192 = vector.shape_cast %191 : vector<1x128x128xbf16> to vector<128x128xbf16>
    %c2_186 = arith.constant 2 : index
    %c0_187 = arith.constant 0 : index
    %c0_188 = arith.constant 0 : index
    %193 = vector.load %arg10[%c2_186, %c0_187, %c0_188] : memref<3x128x128xbf16, #tpu.memory_space<vmem>>, vector<1x128x128xbf16>
    %194 = vector.shape_cast %193 : vector<1x128x128xbf16> to vector<128x128xbf16>
    %c0_189 = arith.constant 0 : index
    %c0_190 = arith.constant 0 : index
    %195 = vector.load %arg11[%c0_189, %c0_190] : memref<1x128xf32, #tpu.memory_space<vmem>>, vector<1x128xf32>
    %c0_191 = arith.constant 0 : index
    %c0_192 = arith.constant 0 : index
    %196 = vector.load %arg14[%c0_191, %c0_192] : memref<18x128xf32, #tpu.memory_space<vmem>>, vector<16x128xf32>
    %197 = arith.truncf %196 : vector<16x128xf32> to vector<16x128xbf16>
    %c1_193 = arith.constant 1 : index
    %c0_194 = arith.constant 0 : index
    %198 = vector.load %arg14[%c1_193, %c0_194] : memref<18x128xf32, #tpu.memory_space<vmem>>, vector<16x128xf32>
    %199 = arith.truncf %198 : vector<16x128xf32> to vector<16x128xbf16>
    %c2_195 = arith.constant 2 : index
    %c0_196 = arith.constant 0 : index
    %200 = vector.load %arg14[%c2_195, %c0_196] : memref<18x128xf32, #tpu.memory_space<vmem>>, vector<16x128xf32>
    %201 = arith.truncf %200 : vector<16x128xf32> to vector<16x128xbf16>
    %cst_197 = arith.constant dense<0.000000e+00> : vector<16x128xf32>
    %202 = tpu.matmul %197, %190, %cst_197 {dimension_numbers = #tpu.dot_dimension_numbers<[1], [0], [0], [1], [0, 0, 1, 1], [], []>} : vector<16x128xbf16>, vector<128x128xbf16>, vector<16x128xf32> -> vector<16x128xf32>
    %cst_198 = arith.constant dense<0.000000e+00> : vector<16x128xf32>
    %203 = tpu.matmul %199, %192, %cst_198 {dimension_numbers = #tpu.dot_dimension_numbers<[1], [0], [0], [1], [0, 0, 1, 1], [], []>} : vector<16x128xbf16>, vector<128x128xbf16>, vector<16x128xf32> -> vector<16x128xf32>
    %204 = arith.addf %202, %203 : vector<16x128xf32>
    %cst_199 = arith.constant dense<0.000000e+00> : vector<16x128xf32>
    %205 = tpu.matmul %201, %194, %cst_199 {dimension_numbers = #tpu.dot_dimension_numbers<[1], [0], [0], [1], [0, 0, 1, 1], [], []>} : vector<16x128xbf16>, vector<128x128xbf16>, vector<16x128xf32> -> vector<16x128xf32>
    %206 = arith.addf %204, %205 : vector<16x128xf32>
    %207 = vector.broadcast %195 : vector<1x128xf32> to vector<16x128xf32>
    %208 = arith.addf %206, %207 : vector<16x128xf32>
    %c0_200 = arith.constant 0 : index
    %c0_201 = arith.constant 0 : index
    %c0_202 = arith.constant 0 : index
    %209 = vector.load %arg13[%c0_200, %c0_201, %c0_202] : memref<1x16x128xf32, #tpu.memory_space<vmem>>, vector<1x16x128xf32>
    %210 = vector.shape_cast %209 : vector<1x16x128xf32> to vector<16x128xf32>
    %211 = vector.shape_cast %208 : vector<16x128xf32> to vector<1x16x128xf32>
    tpu.vector_store %arg13[%c0_200, %c0_201, %c0_202], %211 {strides = array<i32>} : memref<1x16x128xf32, #tpu.memory_space<vmem>>, vector<1x16x128xf32>,
    return
  }
  func.func @transform_0(%arg0: i32) -> (i32, i32, i32) {
    %c0_i32 = arith.constant 0 : i32
    %c0_i32_0 = arith.constant 0 : i32
    %c0_i32_1 = arith.constant 0 : i32
    return %arg0, %c0_i32, %c0_i32_0 : i32, i32, i32
  }
  func.func @transform_1(%arg0: i32) -> (i32, i32, i32) {
    %c0_i32 = arith.constant 0 : i32
    %c0_i32_0 = arith.constant 0 : i32
    %c0_i32_1 = arith.constant 0 : i32
    %c0_i32_2 = arith.constant 0 : i32
    return %c0_i32, %c0_i32_0, %c0_i32_1 : i32, i32, i32
  }
  func.func @transform_2(%arg0: i32) -> (i32, i32) {
    %c0_i32 = arith.constant 0 : i32
    %c0_i32_0 = arith.constant 0 : i32
    %c0_i32_1 = arith.constant 0 : i32
    return %c0_i32, %c0_i32_0 : i32, i32
  }
  func.func @transform_3(%arg0: i32) -> (i32, i32) {
    %c0_i32 = arith.constant 0 : i32
    %c0_i32_0 = arith.constant 0 : i32
    %c0_i32_1 = arith.constant 0 : i32
    return %c0_i32, %c0_i32_0 : i32, i32
  }
  func.func @transform_4(%arg0: i32) -> (i32, i32, i32) {
    %c0_i32 = arith.constant 0 : i32
    %c0_i32_0 = arith.constant 0 : i32
    %c0_i32_1 = arith.constant 0 : i32
    %c0_i32_2 = arith.constant 0 : i32
    return %c0_i32, %c0_i32_0, %c0_i32_1 : i32, i32, i32
  }
  func.func @transform_5(%arg0: i32) -> (i32, i32) {
    %c0_i32 = arith.constant 0 : i32
    %c0_i32_0 = arith.constant 0 : i32
    %c0_i32_1 = arith.constant 0 : i32
    return %c0_i32, %c0_i32_0 : i32, i32
  }
  func.func @transform_6(%arg0: i32) -> (i32, i32) {
    %c0_i32 = arith.constant 0 : i32
    %c0_i32_0 = arith.constant 0 : i32
    %c0_i32_1 = arith.constant 0 : i32
    return %c0_i32, %c0_i32_0 : i32, i32
  }
  func.func @transform_7(%arg0: i32) -> (i32, i32, i32) {
    %c0_i32 = arith.constant 0 : i32
    %c0_i32_0 = arith.constant 0 : i32
    %c0_i32_1 = arith.constant 0 : i32
    %c0_i32_2 = arith.constant 0 : i32
    return %c0_i32, %c0_i32_0, %c0_i32_1 : i32, i32, i32
  }
  func.func @transform_8(%arg0: i32) -> (i32, i32) {
    %c0_i32 = arith.constant 0 : i32
    %c0_i32_0 = arith.constant 0 : i32
    %c0_i32_1 = arith.constant 0 : i32
    return %c0_i32, %c0_i32_0 : i32, i32
  }
  func.func @transform_9(%arg0: i32) -> (i32, i32, i32) {
    %c0_i32 = arith.constant 0 : i32
    %c0_i32_0 = arith.constant 0 : i32
    %c0_i32_1 = arith.constant 0 : i32
    %c0_i32_2 = arith.constant 0 : i32
    return %c0_i32, %c0_i32_0, %c0_i32_1 : i32, i32, i32
  }
  func.func @transform_10(%arg0: i32) -> (i32, i32) {
    %c0_i32 = arith.constant 0 : i32
    %c0_i32_0 = arith.constant 0 : i32
    %c0_i32_1 = arith.constant 0 : i32
    return %c0_i32, %c0_i32_0 : i32, i32
  }
  func.func @transform_11(%arg0: i32) -> (i32, i32, i32) {
    %c0_i32 = arith.constant 0 : i32
    %c0_i32_0 = arith.constant 0 : i32
    %c0_i32_1 = arith.constant 0 : i32
    return %arg0, %c0_i32, %c0_i32_0 : i32, i32, i32
  }
  func.func @transform_12(%arg0: i32) -> (i32, i32, i32) {
    %c0_i32 = arith.constant 0 : i32
    %c0_i32_0 = arith.constant 0 : i32
    %c0_i32_1 = arith.constant 0 : i32
    return %arg0, %c0_i32, %c0_i32_0 : i32, i32, i32
  }
}

</mosaic_0001>

<llo_original>
// kernel: tile.118
$region0: #{tile.118}
  #allocation0 [shape = 's32[1]{0}', space=sflag, size = 0x4, scoped, tag = 'scoped memory for tile.118']
  %s0 = inlined_call_operand.vmem [shape: f32[8], index: 0, kind: input, shape index: {}]
  %s1 = inlined_call_operand.vmem [shape: f32[16,8], index: 1, kind: output, shape index: {}]
  // Predicated region
  $region2: #{tile.118} parent=0 // pred_check
    _
  $region3: #{tile.118} parent=0 // pred_check_branch
    %3 = sbr.rel (0) target = $region5
  $region4: #{tile.118} parent=0 // pred_region
    _
  $region5: #{tile.118} parent=0 // pred_fallthru
    _
  %v4 = vld [vmem:[%s0] ss:$0 sm:$0xff]
  %5 = vst [vmem:[%s1] sm:$0xff] %v4
  %s6 = scalar_lea.vmem %s1, 8
  %7 = vst [vmem:[%s6] sm:$0xff] %v4

// kernel: tile.119
$region0: #{tile.119}
  %s0 = inlined_call_operand.vmem [shape: f32[16,8], index: 0, kind: input, shape index: {}]
  %s1 = inlined_call_operand.vmem [shape: f32[1,128], index: 1, kind: output, shape index: {}]
  $region1: #{tile.119} parent=0
    #allocation0 [shape = 'u8[4096]{0}', space=vmem, size = 0x1000, scoped, tag = 'scoped mem for output reshape']
    %v2 = vld [vmem:[%s0] sm:$0x1]
    %vm3 = vcmask 64512
    %4 = vst.msk [vmem:[#allocation0] sm:$0x1] %vm3, %v2
    %s5 = scalar_lea.vmem %s0, 15
    %v6 = vld [vmem:[%s5] sm:$0x1]
    %7 = vrot.lane.b32.xlu0 %v6, 120
    %v8 = vpop.permute.xlu0 %7
    %vm9 = vcmask 1048512
    %10 = vst.msk [vmem:[#allocation0] sm:$0x1] %vm9, %v8
    %s11 = scalar_lea.vmem %s0, 14
    %v12 = vld [vmem:[%s11] sm:$0x1]
    %13 = vrot.lane.b32.xlu0 %v12, 112
    %v14 = vpop.permute.xlu0 %13
    %vm15 = vcmask 982912
    %16 = vst.msk [vmem:[#allocation0] sm:$0x1] %vm15, %v14
    %s17 = scalar_lea.vmem %s0, 13
    %v18 = vld [vmem:[%s17] sm:$0x1]
    %19 = vrot.lane.b32.xlu0 %v18, 104
    %v20 = vpop.permute.xlu0 %19
    %vm21 = vcmask 917312
    %22 = vst.msk [vmem:[#allocation0] sm:$0x1] %vm21, %v20
    %s23 = scalar_lea.vmem %s0, 12
    %v24 = vld [vmem:[%s23] sm:$0x1]
    %25 = vrot.lane.b32.xlu0 %v24, 96
    %v26 = vpop.permute.xlu0 %25
    %vm27 = vcmask 851712
    %28 = vst.msk [vmem:[#allocation0] sm:$0x1] %vm27, %v26
    %s29 = scalar_lea.vmem %s0, 11
    %v30 = vld [vmem:[%s29] sm:$0x1]
    %31 = vrot.lane.b32.xlu0 %v30, 88
    %v32 = vpop.permute.xlu0 %31
    %vm33 = vcmask 786112
    %34 = vst.msk [vmem:[#allocation0] sm:$0x1] %vm33, %v32
    %s35 = scalar_lea.vmem %s0, 10
    %v36 = vld [vmem:[%s35] sm:$0x1]
    %37 = vrot.lane.b32.xlu0 %v36, 80
    %v38 = vpop.permute.xlu0 %37
    %vm39 = vcmask 720512
    %40 = vst.msk [vmem:[#allocation0] sm:$0x1] %vm39, %v38
    %s41 = scalar_lea.vmem %s0, 9
    %v42 = vld [vmem:[%s41] sm:$0x1]
    %43 = vrot.lane.b32.xlu0 %v42, 72
    %v44 = vpop.permute.xlu0 %43
    %vm45 = vcmask 654912
    %46 = vst.msk [vmem:[#allocation0] sm:$0x1] %vm45, %v44
    %s47 = scalar_lea.vmem %s0, 8
    %v48 = vld [vmem:[%s47] sm:$0x1]
    %49 = vrot.lane.b32.xlu0 %v48, 64
    %v50 = vpop.permute.xlu0 %49
    %vm51 = vcmask 589312
    %52 = vst.msk [vmem:[#allocation0] sm:$0x1] %vm51, %v50
    %s53 = scalar_lea.vmem %s0, 7
    %v54 = vld [vmem:[%s53] sm:$0x1]
    %55 = vrot.lane.b32.xlu0 %v54, 56
    %v56 = vpop.permute.xlu0 %55
    %vm57 = vcmask 523712
    %58 = vst.msk [vmem:[#allocation0] sm:$0x1] %vm57, %v56
    %s59 = scalar_lea.vmem %s0, 6
    %v60 = vld [vmem:[%s59] sm:$0x1]
    %61 = vrot.lane.b32.xlu0 %v60, 48
    %v62 = vpop.permute.xlu0 %61
    %vm63 = vcmask 458112
    %64 = vst.msk [vmem:[#allocation0] sm:$0x1] %vm63, %v62
    %s65 = scalar_lea.vmem %s0, 5
    %v66 = vld [vmem:[%s65] sm:$0x1]
    %67 = vrot.lane.b32.xlu0 %v66, 40
    %v68 = vpop.permute.xlu0 %67
    %vm69 = vcmask 392512
    %70 = vst.msk [vmem:[#allocation0] sm:$0x1] %vm69, %v68
    %s71 = scalar_lea.vmem %s0, 4
    %v72 = vld [vmem:[%s71] sm:$0x1]
    %73 = vrot.lane.b32.xlu0 %v72, 32
    %v74 = vpop.permute.xlu0 %73
    %vm75 = vcmask 326912
    %76 = vst.msk [vmem:[#allocation0] sm:$0x1] %vm75, %v74
    %s77 = scalar_lea.vmem %s0, 3
    %v78 = vld [vmem:[%s77] sm:$0x1]
    %79 = vrot.lane.b32.xlu0 %v78, 24
    %v80 = vpop.permute.xlu0 %79
    %vm81 = vcmask 261312
    %82 = vst.msk [vmem:[#allocation0] sm:$0x1] %vm81, %v80
    %s83 = scalar_lea.vmem %s0, 2
    %v84 = vld [vmem:[%s83] sm:$0x1]
    %85 = vrot.lane.b32.xlu0 %v84, 16
    %v86 = vpop.permute.xlu0 %85
    %vm87 = vcmask 195712
    %88 = vst.msk [vmem:[#allocation0] sm:$0x1] %vm87, %v86
    %s89 = scalar_lea.vmem %s0, 1
    %v90 = vld [vmem:[%s89] sm:$0x1]
    %91 = vrot.lane.b32.xlu0 %v90, 8
    %v92 = vpop.permute.xlu0 %91
    %vm93 = vcmask 130112
    %94 = vst.msk [vmem:[#allocation0] sm:$0x1] %vm93, %v92
    %s96 = sshll.u32 1, 1
    %s97 = ssub.s32 %s96, 1
    %v99 = vld [vmem:[#allocation0] sm:%s97]
    %s100 = sshll.u32 1, 1
    %s101 = ssub.s32 %s100, 1
    %102 = vst [vmem:[%s1] sm:%s101] %v99

// kernel: jam_decoder_top_level.1
$region0: #{jam_decoder_top_level.1}
  #allocation0 [shape = 'u32[]', space=smem, size = 0x4, offset = 0x4, fixed_abs, tag = 'smem constant byte address 0x4 - core index']
  #allocation1 [shape = 'u32[144,128]{1,0:T(1,128)}', space=vmem, size = 0x12000, scoped, tag = 'internal scratch']
  #allocation2 [shape = 'f32[18,128]{1,0:T(8,128)}', space=vmem, size = 0x3000, scoped, tag = 'scratch operand']
  #allocation3 [shape = 'f32[18,128]{1,0:T(8,128)}', space=vmem, size = 0x3000, scoped, tag = 'scratch operand']
  %s0 = inlined_call_operand.vmem [shape: f32[2,16,128], index: 0, kind: input, shape index: {}]
  %s1 = inlined_call_operand.vmem [shape: bf16[3,128,128], index: 1, kind: input, shape index: {}]
  %s2 = inlined_call_operand.vmem [shape: f32[1,128], index: 2, kind: input, shape index: {}]
  %s3 = inlined_call_operand.vmem [shape: f32[1,128], index: 3, kind: input, shape index: {}]
  %s4 = inlined_call_operand.vmem [shape: bf16[9,128,128], index: 4, kind: input, shape index: {}]
  %s5 = inlined_call_operand.vmem [shape: f32[3,128], index: 5, kind: input, shape index: {}]
  %s6 = inlined_call_operand.vmem [shape: f32[3,128], index: 6, kind: input, shape index: {}]
  %s7 = inlined_call_operand.vmem [shape: bf16[9,128,128], index: 7, kind: input, shape index: {}]
  %s8 = inlined_call_operand.vmem [shape: f32[3,128], index: 8, kind: input, shape index: {}]
  %s9 = inlined_call_operand.vmem [shape: bf16[3,128,128], index: 9, kind: input, shape index: {}]
  %s10 = inlined_call_operand.vmem [shape: f32[1,128], index: 10, kind: input, shape index: {}]
  %s11 = inlined_call_operand.vmem [shape: f32[2,16,128], index: 11, kind: output, shape index: {0}]
  %s12 = inlined_call_operand.vmem [shape: f32[2,16,128], index: 12, kind: output, shape index: {1}]
  %13 = xla_tuple %s11, %s12
  %s14 = sld [smem:[#allocation0]]
  $region85: #{jam_decoder_top_level.1} parent=0
    _
  %s16 = ssub.s32 1, %s14
  %s17 = scalar_select 0, %s16, %s14
  loop: start=0, step=1, limit=4
  $region2: #{jam_decoder_top_level.1} parent=0 // loop_pre_header
    _
  $region3: #{jam_decoder_top_level.1} parent=0 // loop_header
    %s19 = sphi 0, %s23
    %p20 = scmp.ge.s32.totalorder %s19, 4
    %s29 = sphi 0, %s31
    %s32 = sphi 0, %s29
    %s33 = sphi 0, %s32
    %s49 = sphi 0, %s33
    %s53 = sphi 0, %s53
    %s55 = sphi 0, %s53
    %s56 = sphi 0, %s55
    %s70 = sphi 0, %s56
    %s74 = sphi 0, %s74
    %s76 = sphi 0, %s74
    %s77 = sphi 0, %s76
    %s91 = sphi 0, %s77
    %s95 = sphi 0, %s95
    %s97 = sphi 0, %s95
    %s98 = sphi 0, %s97
    %s112 = sphi 0, %s98
    %s116 = sphi 0, %s116
    %s118 = sphi 0, %s116
    %s119 = sphi 0, %s118
    %s133 = sphi 0, %s119
    %s137 = sphi 0, %s137
    %s139 = sphi 0, %s137
    %s140 = sphi 0, %s139
    %s154 = sphi 0, %s140
    %s158 = sphi 0, %s158
    %s160 = sphi 0, %s158
    %s161 = sphi 0, %s160
    %s175 = sphi 0, %s161
    %s179 = sphi 0, %s179
    %s181 = sphi 0, %s179
    %s182 = sphi 0, %s181
    %s196 = sphi 0, %s182
    %s200 = sphi 0, %s200
    %s202 = sphi 0, %s200
    %s203 = sphi 0, %s202
    %s217 = sphi 0, %s203
    %s221 = sphi 0, %s221
    %s223 = sphi 0, %s221
    %s224 = sphi 0, %s223
    %s238 = sphi 0, %s224
    %s242 = sphi 0, %s242
    %s244 = sphi 0, %s242
    %s245 = sphi 0, %s244
    %s259 = sphi 0, %s245
    %s265 = sphi 0, %s267
    %s268 = sphi 0, %s265
    %s269 = sphi 0, %s268
    %s285 = sphi 0, %s269
    %s291 = sphi 0, %s293
    %s294 = sphi 0, %s291
    %s295 = sphi 0, %s294
    %s311 = sphi 0, %s295
  $region4: #{jam_decoder_top_level.1} parent=0 // loop_header_branch
    %22 = sbr.rel (%p20) target = $region8
  $region5: #{jam_decoder_top_level.1} parent=0 // loop_body
    %s24 = ssub.s32 %s19, 1
    %s25 = ssub.s32 %s19, 2
    %s26 = sadd.s32 %s19, 1
    %s27 = ssub.s32 %s19, %s26
    %p28 = scmp.eq.s32.totalorder %s27, 0
    %s30 = sadd.s32 %s29, 1
    %s31 = scalar_select %p28, %s29, %s30
    %p34 = pneg %p28
    %p35 = scmp.eq.s32.totalorder %s19, 1
    %p36 = por %p34, %p35
    %p37 = scmp.ne.s32.totalorder %s29, %s32
    %p38 = scmp.eq.s32.totalorder %s19, 0
    %p39 = por %p37, %p38
    %p40 = scmp.ne.s32.totalorder %s29, %s32
    %p41 = scmp.eq.s32.totalorder %s24, 1
    %p42 = por %p40, %p41
    %p43 = scmp.ne.s32.totalorder %s32, %s33
    %p44 = scmp.eq.s32.totalorder %s24, 0
    %p45 = por %p43, %p44
    %p46 = scmp.ne.s32.totalorder %s32, %s33
    %p47 = scmp.eq.s32.totalorder %s25, 1
    %p48 = por %p46, %p47
    %p50 = scmp.ne.s32.totalorder %s33, %s49
    %p51 = scmp.eq.s32.totalorder %s25, 0
    %p52 = por %p50, %p51
    %s54 = sadd.s32 %s53, 1
    %p57 = scmp.eq.s32.totalorder %s19, 1
    %p58 = scmp.ne.s32.totalorder %s53, %s55
    %p59 = scmp.eq.s32.totalorder %s19, 0
    %p60 = por %p58, %p59
    %p61 = scmp.ne.s32.totalorder %s53, %s55
    %p62 = scmp.eq.s32.totalorder %s24, 1
    %p63 = por %p61, %p62
    %p64 = scmp.ne.s32.totalorder %s55, %s56
    %p65 = scmp.eq.s32.totalorder %s24, 0
    %p66 = por %p64, %p65
    %p67 = scmp.ne.s32.totalorder %s55, %s56
    %p68 = scmp.eq.s32.totalorder %s25, 1
    %p69 = por %p67, %p68
    %p71 = scmp.ne.s32.totalorder %s56, %s70
    %p72 = scmp.eq.s32.totalorder %s25, 0
    %p73 = por %p71, %p72
    %s75 = sadd.s32 %s74, 1
    %p78 = scmp.eq.s32.totalorder %s19, 1
    %p79 = scmp.ne.s32.totalorder %s74, %s76
    %p80 = scmp.eq.s32.totalorder %s19, 0
    %p81 = por %p79, %p80
    %p82 = scmp.ne.s32.totalorder %s74, %s76
    %p83 = scmp.eq.s32.totalorder %s24, 1
    %p84 = por %p82, %p83
    %p85 = scmp.ne.s32.totalorder %s76, %s77
    %p86 = scmp.eq.s32.totalorder %s24, 0
    %p87 = por %p85, %p86
    %p88 = scmp.ne.s32.totalorder %s76, %s77
    %p89 = scmp.eq.s32.totalorder %s25, 1
    %p90 = por %p88, %p89
    %p92 = scmp.ne.s32.totalorder %s77, %s91
    %p93 = scmp.eq.s32.totalorder %s25, 0
    %p94 = por %p92, %p93
    %s96 = sadd.s32 %s95, 1
    %p99 = scmp.eq.s32.totalorder %s19, 1
    %p100 = scmp.ne.s32.totalorder %s95, %s97
    %p101 = scmp.eq.s32.totalorder %s19, 0
    %p102 = por %p100, %p101
    %p103 = scmp.ne.s32.totalorder %s95, %s97
    %p104 = scmp.eq.s32.totalorder %s24, 1
    %p105 = por %p103, %p104
    %p106 = scmp.ne.s32.totalorder %s97, %s98
    %p107 = scmp.eq.s32.totalorder %s24, 0
    %p108 = por %p106, %p107
    %p109 = scmp.ne.s32.totalorder %s97, %s98
    %p110 = scmp.eq.s32.totalorder %s25, 1
    %p111 = por %p109, %p110
    %p113 = scmp.ne.s32.totalorder %s98, %s112
    %p114 = scmp.eq.s32.totalorder %s25, 0
    %p115 = por %p113, %p114
    %s117 = sadd.s32 %s116, 1
    %p120 = scmp.eq.s32.totalorder %s19, 1
    %p121 = scmp.ne.s32.totalorder %s116, %s118
    %p122 = scmp.eq.s32.totalorder %s19, 0
    %p123 = por %p121, %p122
    %p124 = scmp.ne.s32.totalorder %s116, %s118
    %p125 = scmp.eq.s32.totalorder %s24, 1
    %p126 = por %p124, %p125
    %p127 = scmp.ne.s32.totalorder %s118, %s119
    %p128 = scmp.eq.s32.totalorder %s24, 0
    %p129 = por %p127, %p128
    %p130 = scmp.ne.s32.totalorder %s118, %s119
    %p131 = scmp.eq.s32.totalorder %s25, 1
    %p132 = por %p130, %p131
    %p134 = scmp.ne.s32.totalorder %s119, %s133
    %p135 = scmp.eq.s32.totalorder %s25, 0
    %p136 = por %p134, %p135
    %s138 = sadd.s32 %s137, 1
    %p141 = scmp.eq.s32.totalorder %s19, 1
    %p142 = scmp.ne.s32.totalorder %s137, %s139
    %p143 = scmp.eq.s32.totalorder %s19, 0
    %p144 = por %p142, %p143
    %p145 = scmp.ne.s32.totalorder %s137, %s139
    %p146 = scmp.eq.s32.totalorder %s24, 1
    %p147 = por %p145, %p146
    %p148 = scmp.ne.s32.totalorder %s139, %s140
    %p149 = scmp.eq.s32.totalorder %s24, 0
    %p150 = por %p148, %p149
    %p151 = scmp.ne.s32.totalorder %s139, %s140
    %p152 = scmp.eq.s32.totalorder %s25, 1
    %p153 = por %p151, %p152
    %p155 = scmp.ne.s32.totalorder %s140, %s154
    %p156 = scmp.eq.s32.totalorder %s25, 0
    %p157 = por %p155, %p156
    %s159 = sadd.s32 %s158, 1
    %p162 = scmp.eq.s32.totalorder %s19, 1
    %p163 = scmp.ne.s32.totalorder %s158, %s160
    %p164 = scmp.eq.s32.totalorder %s19, 0
    %p165 = por %p163, %p164
    %p166 = scmp.ne.s32.totalorder %s158, %s160
    %p167 = scmp.eq.s32.totalorder %s24, 1
    %p168 = por %p166, %p167
    %p169 = scmp.ne.s32.totalorder %s160, %s161
    %p170 = scmp.eq.s32.totalorder %s24, 0
    %p171 = por %p169, %p170
    %p172 = scmp.ne.s32.totalorder %s160, %s161
    %p173 = scmp.eq.s32.totalorder %s25, 1
    %p174 = por %p172, %p173
    %p176 = scmp.ne.s32.totalorder %s161, %s175
    %p177 = scmp.eq.s32.totalorder %s25, 0
    %p178 = por %p176, %p177
    %s180 = sadd.s32 %s179, 1
    %p183 = scmp.eq.s32.totalorder %s19, 1
    %p184 = scmp.ne.s32.totalorder %s179, %s181
    %p185 = scmp.eq.s32.totalorder %s19, 0
    %p186 = por %p184, %p185
    %p187 = scmp.ne.s32.totalorder %s179, %s181
    %p188 = scmp.eq.s32.totalorder %s24, 1
    %p189 = por %p187, %p188
    %p190 = scmp.ne.s32.totalorder %s181, %s182
    %p191 = scmp.eq.s32.totalorder %s24, 0
    %p192 = por %p190, %p191
    %p193 = scmp.ne.s32.totalorder %s181, %s182
    %p194 = scmp.eq.s32.totalorder %s25, 1
    %p195 = por %p193, %p194
    %p197 = scmp.ne.s32.totalorder %s182, %s196
    %p198 = scmp.eq.s32.totalorder %s25, 0
    %p199 = por %p197, %p198
    %s201 = sadd.s32 %s200, 1
    %p204 = scmp.eq.s32.totalorder %s19, 1
    %p205 = scmp.ne.s32.totalorder %s200, %s202
    %p206 = scmp.eq.s32.totalorder %s19, 0
    %p207 = por %p205, %p206
    %p208 = scmp.ne.s32.totalorder %s200, %s202
    %p209 = scmp.eq.s32.totalorder %s24, 1
    %p210 = por %p208, %p209
    %p211 = scmp.ne.s32.totalorder %s202, %s203
    %p212 = scmp.eq.s32.totalorder %s24, 0
    %p213 = por %p211, %p212
    %p214 = scmp.ne.s32.totalorder %s202, %s203
    %p215 = scmp.eq.s32.totalorder %s25, 1
    %p216 = por %p214, %p215
    %p218 = scmp.ne.s32.totalorder %s203, %s217
    %p219 = scmp.eq.s32.totalorder %s25, 0
    %p220 = por %p218, %p219
    %s222 = sadd.s32 %s221, 1
    %p225 = scmp.eq.s32.totalorder %s19, 1
    %p226 = scmp.ne.s32.totalorder %s221, %s223
    %p227 = scmp.eq.s32.totalorder %s19, 0
    %p228 = por %p226, %p227
    %p229 = scmp.ne.s32.totalorder %s221, %s223
    %p230 = scmp.eq.s32.totalorder %s24, 1
    %p231 = por %p229, %p230
    %p232 = scmp.ne.s32.totalorder %s223, %s224
    %p233 = scmp.eq.s32.totalorder %s24, 0
    %p234 = por %p232, %p233
    %p235 = scmp.ne.s32.totalorder %s223, %s224
    %p236 = scmp.eq.s32.totalorder %s25, 1
    %p237 = por %p235, %p236
    %p239 = scmp.ne.s32.totalorder %s224, %s238
    %p240 = scmp.eq.s32.totalorder %s25, 0
    %p241 = por %p239, %p240
    %s243 = sadd.s32 %s242, 1
    %p246 = scmp.eq.s32.totalorder %s19, 1
    %p247 = scmp.ne.s32.totalorder %s242, %s244
    %p248 = scmp.eq.s32.totalorder %s19, 0
    %p249 = por %p247, %p248
    %p250 = scmp.ne.s32.totalorder %s242, %s244
    %p251 = scmp.eq.s32.totalorder %s24, 1
    %p252 = por %p250, %p251
    %p253 = scmp.ne.s32.totalorder %s244, %s245
    %p254 = scmp.eq.s32.totalorder %s24, 0
    %p255 = por %p253, %p254
    %p256 = scmp.ne.s32.totalorder %s244, %s245
    %p257 = scmp.eq.s32.totalorder %s25, 1
    %p258 = por %p256, %p257
    %p260 = scmp.ne.s32.totalorder %s245, %s259
    %p261 = scmp.eq.s32.totalorder %s25, 0
    %p262 = por %p260, %p261
    %s263 = ssub.s32 %s19, %s26
    %p264 = scmp.eq.s32.totalorder %s263, 0
    %s266 = sadd.s32 %s265, 1
    %s267 = scalar_select %p264, %s265, %s266
    %p270 = pneg %p264
    %p271 = scmp.eq.s32.totalorder %s19, 1
    %p272 = por %p270, %p271
    %p273 = scmp.ne.s32.totalorder %s265, %s268
    %p274 = scmp.eq.s32.totalorder %s19, 0
    %p275 = por %p273, %p274
    %p276 = scmp.ne.s32.totalorder %s265, %s268
    %p277 = scmp.eq.s32.totalorder %s24, 1
    %p278 = por %p276, %p277
    %p279 = scmp.ne.s32.totalorder %s268, %s269
    %p280 = scmp.eq.s32.totalorder %s24, 0
    %p281 = por %p279, %p280
    %p282 = scmp.ne.s32.totalorder %s268, %s269
    %p283 = scmp.eq.s32.totalorder %s25, 1
    %p284 = por %p282, %p283
    %p286 = scmp.ne.s32.totalorder %s269, %s285
    %p287 = scmp.eq.s32.totalorder %s25, 0
    %p288 = por %p286, %p287
    %s289 = ssub.s32 %s19, %s26
    %p290 = scmp.eq.s32.totalorder %s289, 0
    %s292 = sadd.s32 %s291, 1
    %s293 = scalar_select %p290, %s291, %s292
    %p296 = pneg %p290
    %p297 = scmp.eq.s32.totalorder %s19, 1
    %p298 = por %p296, %p297
    %p299 = scmp.ne.s32.totalorder %s291, %s294
    %p300 = scmp.eq.s32.totalorder %s19, 0
    %p301 = por %p299, %p300
    %p302 = scmp.ne.s32.totalorder %s291, %s294
    %p303 = scmp.eq.s32.totalorder %s24, 1
    %p304 = por %p302, %p303
    %p305 = scmp.ne.s32.totalorder %s294, %s295
    %p306 = scmp.eq.s32.totalorder %s24, 0
    %p307 = por %p305, %p306
    %p308 = scmp.ne.s32.totalorder %s294, %s295
    %p309 = scmp.eq.s32.totalorder %s25, 1
    %p310 = por %p308, %p309
    %p312 = scmp.ne.s32.totalorder %s295, %s311
    %p313 = scmp.eq.s32.totalorder %s25, 0
    %p314 = por %p312, %p313
    %p315 = scmp.le.s32.totalorder 1, %s19
    %p316 = scmp.lt.s32.totalorder %s19, 3
    %p317 = pnand %p315, %p316
    %p318 = pneg %p317
    // Predicated region
    $region9: #{jam_decoder_top_level.1} parent=5 // pred_check
      _
    $region10: #{jam_decoder_top_level.1} parent=5 // pred_check_branch
      %320 = sbr.rel (%p317) target = $region12
    $region11: #{jam_decoder_top_level.1} parent=5 // pred_region
      %s321 = ssub.s32 %s19, 1
      // Predicated region
      $region13: #{jam_decoder_top_level.1} parent=11 // pred_check
        %p322 = pneg %p66
      $region14: #{jam_decoder_top_level.1} parent=11 // pred_check_branch
        %324 = sbr.rel (%p322) target = $region16
      $region15: #{jam_decoder_top_level.1} parent=11 // pred_region
        _
      $region16: #{jam_decoder_top_level.1} parent=11 // pred_fallthru
        _
      // Predicated region
      $region17: #{jam_decoder_top_level.1} parent=11 // pred_check
        %p325 = pneg %p87
      $region18: #{jam_decoder_top_level.1} parent=11 // pred_check_branch
        %327 = sbr.rel (%p325) target = $region20
      $region19: #{jam_decoder_top_level.1} parent=11 // pred_region
        _
      $region20: #{jam_decoder_top_level.1} parent=11 // pred_fallthru
        _
      // Predicated region
      $region21: #{jam_decoder_top_level.1} parent=11 // pred_check
        %p328 = pneg %p108
      $region22: #{jam_decoder_top_level.1} parent=11 // pred_check_branch
        %330 = sbr.rel (%p328) target = $region24
      $region23: #{jam_decoder_top_level.1} parent=11 // pred_region
        _
      $region24: #{jam_decoder_top_level.1} parent=11 // pred_fallthru
        _
      // Predicated region
      $region25: #{jam_decoder_top_level.1} parent=11 // pred_check
        %p331 = pneg %p129
      $region26: #{jam_decoder_top_level.1} parent=11 // pred_check_branch
        %333 = sbr.rel (%p331) target = $region28
      $region27: #{jam_decoder_top_level.1} parent=11 // pred_region
        _
      $region28: #{jam_decoder_top_level.1} parent=11 // pred_fallthru
        _
      // Predicated region
      $region29: #{jam_decoder_top_level.1} parent=11 // pred_check
        %p334 = pneg %p150
      $region30: #{jam_decoder_top_level.1} parent=11 // pred_check_branch
        %336 = sbr.rel (%p334) target = $region32
      $region31: #{jam_decoder_top_level.1} parent=11 // pred_region
        _
      $region32: #{jam_decoder_top_level.1} parent=11 // pred_fallthru
        _
      // Predicated region
      $region33: #{jam_decoder_top_level.1} parent=11 // pred_check
        %p337 = pneg %p171
      $region34: #{jam_decoder_top_level.1} parent=11 // pred_check_branch
        %339 = sbr.rel (%p337) target = $region36
      $region35: #{jam_decoder_top_level.1} parent=11 // pred_region
        _
      $region36: #{jam_decoder_top_level.1} parent=11 // pred_fallthru
        _
      // Predicated region
      $region37: #{jam_decoder_top_level.1} parent=11 // pred_check
        %p340 = pneg %p192
      $region38: #{jam_decoder_top_level.1} parent=11 // pred_check_branch
        %342 = sbr.rel (%p340) target = $region40
      $region39: #{jam_decoder_top_level.1} parent=11 // pred_region
        _
      $region40: #{jam_decoder_top_level.1} parent=11 // pred_fallthru
        _
      // Predicated region
      $region41: #{jam_decoder_top_level.1} parent=11 // pred_check
        %p343 = pneg %p213
      $region42: #{jam_decoder_top_level.1} parent=11 // pred_check_branch
        %345 = sbr.rel (%p343) target = $region44
      $region43: #{jam_decoder_top_level.1} parent=11 // pred_region
        _
      $region44: #{jam_decoder_top_level.1} parent=11 // pred_fallthru
        _
      // Predicated region
      $region45: #{jam_decoder_top_level.1} parent=11 // pred_check
        %p346 = pneg %p234
      $region46: #{jam_decoder_top_level.1} parent=11 // pred_check_branch
        %348 = sbr.rel (%p346) target = $region48
      $region47: #{jam_decoder_top_level.1} parent=11 // pred_region
        _
      $region48: #{jam_decoder_top_level.1} parent=11 // pred_fallthru
        _
      // Predicated region
      $region49: #{jam_decoder_top_level.1} parent=11 // pred_check
        %p349 = pneg %p255
      $region50: #{jam_decoder_top_level.1} parent=11 // pred_check_branch
        %351 = sbr.rel (%p349) target = $region52
      $region51: #{jam_decoder_top_level.1} parent=11 // pred_region
        _
      $region52: #{jam_decoder_top_level.1} parent=11 // pred_fallthru
        _
    $region12: #{jam_decoder_top_level.1} parent=5 // pred_fallthru
      _
    %p352 = scmp.lt.s32.totalorder %s19, 2
    // Predicated region
    $region53: #{jam_decoder_top_level.1} parent=5 // pred_check
      %p353 = pneg %p352
    $region54: #{jam_decoder_top_level.1} parent=5 // pred_check_branch
      %355 = sbr.rel (%p353) target = $region56
    $region55: #{jam_decoder_top_level.1} parent=5 // pred_region
      // Predicated region
      $region57: #{jam_decoder_top_level.1} parent=55 // pred_check
        %p356 = pneg %p39
      $region58: #{jam_decoder_top_level.1} parent=55 // pred_check_branch
        %358 = sbr.rel (%p356) target = $region60
      $region59: #{jam_decoder_top_level.1} parent=55 // pred_region
        %p359 = scmp.lt.s32.totalorder %s19, 1
        %s360 = scalar_select %p359, %s19, 1
        %s361 = smul.addr %s360, 2
        %s362 = smul.addr %s361, 8
        %s363 = scalar_lea.vmem %s0, %s362
      $region60: #{jam_decoder_top_level.1} parent=55 // pred_fallthru
        _
    $region56: #{jam_decoder_top_level.1} parent=5 // pred_fallthru
      _
    %p364 = scmp.le.s32.totalorder 1, %s19
    %p365 = scmp.lt.s32.totalorder %s19, 3
    %p366 = pnand %p364, %p365
    %p367 = pneg %p366
    // Predicated region
    $region61: #{jam_decoder_top_level.1} parent=5 // pred_check
      _
    $region62: #{jam_decoder_top_level.1} parent=5 // pred_check_branch
      %369 = sbr.rel (%p366) target = $region64
    $region63: #{jam_decoder_top_level.1} parent=5 // pred_region
      %s370 = ssub.s32 %s19, 1
      %p371 = scmp.lt.s32.totalorder %s24, 1
      %s372 = scalar_select %p371, %s24, 1
      %s373 = smul.addr %s372, 2
      %s374 = smul.addr %s373, 8
      %s375 = scalar_lea.vmem %s0, %s374
      %p376 = pneg %p45
      %p377 = pneg %p42
      %p378 = pneg %p66
      %p379 = pneg %p63
      %p380 = pneg %p87
      %p381 = pneg %p84
      %p382 = pneg %p108
      %p383 = pneg %p105
      %p384 = pneg %p129
      %p385 = pneg %p126
      %p386 = pneg %p150
      %p387 = pneg %p147
      %p388 = pneg %p171
      %p389 = pneg %p168
      %p390 = pneg %p192
      %p391 = pneg %p189
      %p392 = pneg %p213
      %p393 = pneg %p210
      %p394 = pneg %p234
      %p395 = pneg %p231
      %p396 = pneg %p255
      %p397 = pneg %p252
      %p398 = pneg %p281
      %p399 = pneg %p278
      %p400 = scmp.lt.s32.totalorder %s24, 1
      %s401 = scalar_select %p400, %s24, 1
      %s402 = smul.addr %s401, 2
      %s403 = smul.addr %s402, 8
      %s404 = scalar_lea.vmem %s11, %s403
      %p405 = pneg %p307
      %p406 = pneg %p304
      %p407 = scmp.lt.s32.totalorder %s24, 1
      %s408 = scalar_select %p407, %s24, 1
      %s409 = smul.addr %s408, 2
      %s410 = smul.addr %s409, 8
      %s411 = scalar_lea.vmem %s12, %s410
      %p412 = scmp.lt.s32.totalorder %s24, 1
      %s413 = scalar_select %p412, %s24, 1
      %s414 = smul.addr %s413, 2
      %s415 = smul.addr %s414, 8
      %s416 = scalar_lea.vmem %s0, %s415
      %p417 = scmp.lt.s32.totalorder %s24, 1
      %s418 = scalar_select %p417, %s24, 1
      %s419 = smul.addr %s418, 2
      %s420 = smul.addr %s419, 8
      %s421 = scalar_lea.vmem %s11, %s420
      %p422 = scmp.lt.s32.totalorder %s24, 1
      %s423 = scalar_select %p422, %s24, 1
      %s424 = smul.addr %s423, 2
      %s425 = smul.addr %s424, 8
      %s426 = scalar_lea.vmem %s12, %s425
      %428 = vst [vmem:[#allocation2] sm:$0x1] 0.0
      %429 = vst [vmem:[#allocation2 + $0x11] sm:$0x1] 0.0
      %430 = vst [vmem:[#allocation3] sm:$0x1] 0.0
      %431 = vst [vmem:[#allocation3 + $0x11] sm:$0x1] 0.0
      %v432 = vld [vmem:[%s416] sm:$0xff]
      %v433 = vld [vmem:[%s416 + $0x8] sm:$0xff]
      %434 = vst [vmem:[#allocation2 + $0x1] sm:$0xff] %v432
      %435 = vst [vmem:[#allocation2 + $0x9] sm:$0xff] %v433
      %v436 = vld [vmem:[%s1] sm:$0xf]
      %v437 = vld [vmem:[%s1 + $0x4] sm:$0xf]
      %v438 = vld [vmem:[%s1 + $0x8] sm:$0xf]
      %v439 = vld [vmem:[%s1 + $0xc] sm:$0xf]
      %v440 = vld [vmem:[%s1 + $0x10] sm:$0xf]
      %v441 = vld [vmem:[%s1 + $0x14] sm:$0xf]
      %v442 = vld [vmem:[%s1 + $0x18] sm:$0xf]
      %v443 = vld [vmem:[%s1 + $0x1c] sm:$0xf]
      %v444 = vld [vmem:[%s1 + $0x20] sm:$0xf]
      %v445 = vld [vmem:[%s1 + $0x24] sm:$0xf]
      %v446 = vld [vmem:[%s1 + $0x28] sm:$0xf]
      %v447 = vld [vmem:[%s1 + $0x2c] sm:$0xf]
      %v448 = vld [vmem:[%s1 + $0x30] sm:$0xf]
      %v449 = vld [vmem:[%s1 + $0x34] sm:$0xf]
      %v450 = vld [vmem:[%s1 + $0x38] sm:$0xf]
      %v451 = vld [vmem:[%s1 + $0x3c] sm:$0xf]
      %s452 = scalar_lea.vmem %s1, 64
      %v453 = vld [vmem:[%s452] sm:$0xf]
      %v454 = vld [vmem:[%s452 + $0x4] sm:$0xf]
      %v455 = vld [vmem:[%s452 + $0x8] sm:$0xf]
      %v456 = vld [vmem:[%s452 + $0xc] sm:$0xf]
      %v457 = vld [vmem:[%s452 + $0x10] sm:$0xf]
      %v458 = vld [vmem:[%s452 + $0x14] sm:$0xf]
      %v459 = vld [vmem:[%s452 + $0x18] sm:$0xf]
      %v460 = vld [vmem:[%s452 + $0x1c] sm:$0xf]
      %v461 = vld [vmem:[%s452 + $0x20] sm:$0xf]
      %v462 = vld [vmem:[%s452 + $0x24] sm:$0xf]
      %v463 = vld [vmem:[%s452 + $0x28] sm:$0xf]
      %v464 = vld [vmem:[%s452 + $0x2c] sm:$0xf]
      %v465 = vld [vmem:[%s452 + $0x30] sm:$0xf]
      %v466 = vld [vmem:[%s452 + $0x34] sm:$0xf]
      %v467 = vld [vmem:[%s452 + $0x38] sm:$0xf]
      %v468 = vld [vmem:[%s452 + $0x3c] sm:$0xf]
      %s469 = scalar_lea.vmem %s1, 128
      %v470 = vld [vmem:[%s469] sm:$0xf]
      %v471 = vld [vmem:[%s469 + $0x4] sm:$0xf]
      %v472 = vld [vmem:[%s469 + $0x8] sm:$0xf]
      %v473 = vld [vmem:[%s469 + $0xc] sm:$0xf]
      %v474 = vld [vmem:[%s469 + $0x10] sm:$0xf]
      %v475 = vld [vmem:[%s469 + $0x14] sm:$0xf]
      %v476 = vld [vmem:[%s469 + $0x18] sm:$0xf]
      %v477 = vld [vmem:[%s469 + $0x1c] sm:$0xf]
      %v478 = vld [vmem:[%s469 + $0x20] sm:$0xf]
      %v479 = vld [vmem:[%s469 + $0x24] sm:$0xf]
      %v480 = vld [vmem:[%s469 + $0x28] sm:$0xf]
      %v481 = vld [vmem:[%s469 + $0x2c] sm:$0xf]
      %v482 = vld [vmem:[%s469 + $0x30] sm:$0xf]
      %v483 = vld [vmem:[%s469 + $0x34] sm:$0xf]
      %v484 = vld [vmem:[%s469 + $0x38] sm:$0xf]
      %v485 = vld [vmem:[%s469 + $0x3c] sm:$0xf]
      %v486 = vld [vmem:[%s2] sm:$0x1]
      %v487 = vld [vmem:[%s3] sm:$0x1]
      %v488 = vld [vmem:[#allocation2] sm:$0xff]
      %v489 = vld [vmem:[#allocation2 + $0x8] sm:$0xff]
      %v490 = vpack.c.bf16 %v489, %v488
      %v491 = vld [vmem:[#allocation2 + $0x1] sm:$0xff]
      %v492 = vld [vmem:[#allocation2 + $0x9] sm:$0xff]
      %v493 = vpack.c.bf16 %v492, %v491
      %v494 = vld [vmem:[#allocation2 + $0x2] sm:$0xff]
      %v495 = vld [vmem:[#allocation2 + $0xa] sm:$0xff]
      %v496 = vpack.c.bf16 %v495, %v494
      %v513 = vunpack.c.l.b16 %v453
      %v514 = vunpack.c.l.b16 %v454
      %v515 = vunpack.c.l.b16 %v455
      %v516 = vunpack.c.l.b16 %v456
      %v517 = vunpack.c.l.b16 %v457
      %v518 = vunpack.c.l.b16 %v458
      %v519 = vunpack.c.l.b16 %v459
      %v520 = vunpack.c.l.b16 %v460
      %v521 = vunpack.c.l.b16 %v461
      %v522 = vunpack.c.l.b16 %v462
      %v523 = vunpack.c.l.b16 %v463
      %v524 = vunpack.c.l.b16 %v464
      %v525 = vunpack.c.l.b16 %v465
      %v526 = vunpack.c.l.b16 %v466
      %v527 = vunpack.c.l.b16 %v467
      %v528 = vunpack.c.l.b16 %v468
      %v529 = vpack.c.b16 %v514, %v513
      %v530 = vpack.c.b16 %v516, %v515
      %v531 = vpack.c.b16 %v518, %v517
      %v532 = vpack.c.b16 %v520, %v519
      %v533 = vpack.c.b16 %v522, %v521
      %v534 = vpack.c.b16 %v524, %v523
      %v535 = vpack.c.b16 %v526, %v525
      %v536 = vpack.c.b16 %v528, %v527
      %545 = vmatprep.subr.bf16.mxu0 0
      %546 = vmatpush1.bf16.msra.mxu0 %v536
      %547 = vmatprep.subr.bf16.mxu0 0
      %548 = vmatpush1.bf16.msra.mxu0 %v535
      %549 = vmatprep.subr.bf16.mxu0 0
      %550 = vmatpush1.bf16.msra.mxu0 %v534
      %551 = vmatprep.subr.bf16.mxu0 0
      %552 = vmatpush1.bf16.msra.mxu0 %v533
      %553 = vmatprep.subr.bf16.mxu0 0
      %554 = vmatpush1.bf16.msra.mxu0 %v532
      %555 = vmatprep.subr.bf16.mxu0 0
      %556 = vmatpush1.bf16.msra.mxu0 %v531
      %557 = vmatprep.subr.bf16.mxu0 0
      %558 = vmatpush1.bf16.msra.mxu0 %v530
      %559 = vmatprep.subr.bf16.mxu0 0
      %560 = vmatpush1.bf16.msra.mxu0 %v529
      %561 = vmatprep.subr.bf16.mxu0 0
      %562 = vmatpush2.bf16.msra.mxu0 0
      %563 = vmatprep.subr.bf16.mxu0 0
      %564 = vmatpush2.bf16.msra.mxu0 0
      %565 = vmatprep.subr.bf16.mxu0 0
      %566 = vmatpush2.bf16.msra.mxu0 0
      %567 = vmatprep.subr.bf16.mxu0 0
      %568 = vmatpush2.bf16.msra.mxu0 0
      %569 = vmatprep.subr.bf16.mxu0 0
      %570 = vmatpush2.bf16.msra.mxu0 0
      %571 = vmatprep.subr.bf16.mxu0 0
      %572 = vmatpush2.bf16.msra.mxu0 0
      %573 = vmatprep.subr.bf16.mxu0 0
      %574 = vmatpush2.bf16.msra.mxu0 0
      %575 = vmatprep.subr.bf16.mxu0 0
      %576 = vmatpush2.bf16.msra.mxu0 0
      %577 = vmatprep.mubr.bf16.mxu0 0
      %578 = vmatmul.mubr.bf16.gmra.mxu0 %v493
      %v579 = vpop.f32.mrf.mxu0
      %v580 = vadd.f32 0.0, %v579
      %v581 = vpop.f32.mrf.mxu0
      %v582 = vpop.f32.mrf.mxu0
      %v583 = vadd.f32 0.0, %v582
      %v584 = vpop.f32.mrf.mxu0
      %585 = vdwg.mxu0
      %v602 = vunpack.c.l.b16 %v436
      %v603 = vunpack.c.l.b16 %v437
      %v604 = vunpack.c.l.b16 %v438
      %v605 = vunpack.c.l.b16 %v439
      %v606 = vunpack.c.l.b16 %v440
      %v607 = vunpack.c.l.b16 %v441
      %v608 = vunpack.c.l.b16 %v442
      %v609 = vunpack.c.l.b16 %v443
      %v610 = vunpack.c.l.b16 %v444
      %v611 = vunpack.c.l.b16 %v445
      %v612 = vunpack.c.l.b16 %v446
      %v613 = vunpack.c.l.b16 %v447
      %v614 = vunpack.c.l.b16 %v448
      %v615 = vunpack.c.l.b16 %v449
      %v616 = vunpack.c.l.b16 %v450
      %v617 = vunpack.c.l.b16 %v451
      %v618 = vpack.c.b16 %v603, %v602
      %v619 = vpack.c.b16 %v605, %v604
      %v620 = vpack.c.b16 %v607, %v606
      %v621 = vpack.c.b16 %v609, %v608
      %v622 = vpack.c.b16 %v611, %v610
      %v623 = vpack.c.b16 %v613, %v612
      %v624 = vpack.c.b16 %v615, %v614
      %v625 = vpack.c.b16 %v617, %v616
      %634 = vmatprep.subr.bf16.mxu0 0
      %635 = vmatpush1.bf16.msra.mxu0 %v625
      %636 = vmatprep.subr.bf16.mxu0 0
      %637 = vmatpush1.bf16.msra.mxu0 %v624
      %638 = vmatprep.subr.bf16.mxu0 0
      %639 = vmatpush1.bf16.msra.mxu0 %v623
      %640 = vmatprep.subr.bf16.mxu0 0
      %641 = vmatpush1.bf16.msra.mxu0 %v622
      %642 = vmatprep.subr.bf16.mxu0 0
      %643 = vmatpush1.bf16.msra.mxu0 %v621
      %644 = vmatprep.subr.bf16.mxu0 0
      %645 = vmatpush1.bf16.msra.mxu0 %v620
      %646 = vmatprep.subr.bf16.mxu0 0
      %647 = vmatpush1.bf16.msra.mxu0 %v619
      %648 = vmatprep.subr.bf16.mxu0 0
      %649 = vmatpush1.bf16.msra.mxu0 %v618
      %650 = vmatprep.subr.bf16.mxu0 0
      %651 = vmatpush2.bf16.msra.mxu0 0
      %652 = vmatprep.subr.bf16.mxu0 0
      %653 = vmatpush2.bf16.msra.mxu0 0
      %654 = vmatprep.subr.bf16.mxu0 0
      %655 = vmatpush2.bf16.msra.mxu0 0
      %656 = vmatprep.subr.bf16.mxu0 0
      %657 = vmatpush2.bf16.msra.mxu0 0
      %658 = vmatprep.subr.bf16.mxu0 0
      %659 = vmatpush2.bf16.msra.mxu0 0
      %660 = vmatprep.subr.bf16.mxu0 0
      %661 = vmatpush2.bf16.msra.mxu0 0
      %662 = vmatprep.subr.bf16.mxu0 0
      %663 = vmatpush2.bf16.msra.mxu0 0
      %664 = vmatprep.subr.bf16.mxu0 0
      %665 = vmatpush2.bf16.msra.mxu0 0
      %666 = vmatprep.mubr.bf16.mxu0 0
      %667 = vmatmul.mubr.bf16.gmra.mxu0 %v490
      %v668 = vpop.f32.mrf.mxu0
      %v669 = vadd.f32 %v580, %v668
      %v670 = vpop.f32.mrf.mxu0
      %v671 = vpop.f32.mrf.mxu0
      %v672 = vadd.f32 %v583, %v671
      %v673 = vpop.f32.mrf.mxu0
      %674 = vdwg.mxu0
      %v691 = vunpack.c.l.b16 %v470
      %v692 = vunpack.c.l.b16 %v471
      %v693 = vunpack.c.l.b16 %v472
      %v694 = vunpack.c.l.b16 %v473
      %v695 = vunpack.c.l.b16 %v474
      %v696 = vunpack.c.l.b16 %v475
      %v697 = vunpack.c.l.b16 %v476
      %v698 = vunpack.c.l.b16 %v477
      %v699 = vunpack.c.l.b16 %v478
      %v700 = vunpack.c.l.b16 %v479
      %v701 = vunpack.c.l.b16 %v480
      %v702 = vunpack.c.l.b16 %v481
      %v703 = vunpack.c.l.b16 %v482
      %v704 = vunpack.c.l.b16 %v483
      %v705 = vunpack.c.l.b16 %v484
      %v706 = vunpack.c.l.b16 %v485
      %v707 = vpack.c.b16 %v692, %v691
      %v708 = vpack.c.b16 %v694, %v693
      %v709 = vpack.c.b16 %v696, %v695
      %v710 = vpack.c.b16 %v698, %v697
      %v711 = vpack.c.b16 %v700, %v699
      %v712 = vpack.c.b16 %v702, %v701
      %v713 = vpack.c.b16 %v704, %v703
      %v714 = vpack.c.b16 %v706, %v705
      %723 = vmatprep.subr.bf16.mxu0 0
      %724 = vmatpush1.bf16.msra.mxu0 %v714
      %725 = vmatprep.subr.bf16.mxu0 0
      %726 = vmatpush1.bf16.msra.mxu0 %v713
      %727 = vmatprep.subr.bf16.mxu0 0
      %728 = vmatpush1.bf16.msra.mxu0 %v712
      %729 = vmatprep.subr.bf16.mxu0 0
      %730 = vmatpush1.bf16.msra.mxu0 %v711
      %731 = vmatprep.subr.bf16.mxu0 0
      %732 = vmatpush1.bf16.msra.mxu0 %v710
      %733 = vmatprep.subr.bf16.mxu0 0
      %734 = vmatpush1.bf16.msra.mxu0 %v709
      %735 = vmatprep.subr.bf16.mxu0 0
      %736 = vmatpush1.bf16.msra.mxu0 %v708
      %737 = vmatprep.subr.bf16.mxu0 0
      %738 = vmatpush1.bf16.msra.mxu0 %v707
      %739 = vmatprep.subr.bf16.mxu0 0
      %740 = vmatpush2.bf16.msra.mxu0 0
      %741 = vmatprep.subr.bf16.mxu0 0
      %742 = vmatpush2.bf16.msra.mxu0 0
      %743 = vmatprep.subr.bf16.mxu0 0
      %744 = vmatpush2.bf16.msra.mxu0 0
      %745 = vmatprep.subr.bf16.mxu0 0
      %746 = vmatpush2.bf16.msra.mxu0 0
      %747 = vmatprep.subr.bf16.mxu0 0
      %748 = vmatpush2.bf16.msra.mxu0 0
      %749 = vmatprep.subr.bf16.mxu0 0
      %750 = vmatpush2.bf16.msra.mxu0 0
      %751 = vmatprep.subr.bf16.mxu0 0
      %752 = vmatpush2.bf16.msra.mxu0 0
      %753 = vmatprep.subr.bf16.mxu0 0
      %754 = vmatpush2.bf16.msra.mxu0 0
      %755 = vmatprep.mubr.bf16.mxu0 0
      %756 = vmatmul.mubr.bf16.gmra.mxu0 %v496
      %v757 = vpop.f32.mrf.mxu0
      %v758 = vadd.f32 0.0, %v757
      %v759 = vpop.f32.mrf.mxu0
      %v760 = vpop.f32.mrf.mxu0
      %v761 = vadd.f32 0.0, %v760
      %v762 = vpop.f32.mrf.mxu0
      %763 = vdwg.mxu0
      %v764 = vadd.f32 %v669, %v758
      %v765 = vadd.f32 %v672, %v761
      %v767 = vlaneseq
      %v768 = vshrl.u32 %v767, 7
      %v769 = vsub.s32 0, %v768
      %v770 = vrot.slane %v486, %v769
      %v772 = vadd.f32 %v764, %v770
      %v773 = vadd.f32 %v765, %v770
      %vm774 = vcmp.ge.f32.partialorder %v772, 0.0
      %vm775 = vcmp.ge.f32.partialorder %v773, 0.0
      %v777 = vlaneseq
      %v778 = vshrl.u32 %v777, 7
      %v779 = vsub.s32 0, %v778
      %v780 = vrot.slane %v487, %v779
      %v782 = vmul.f32 %v780, %v772
      %v783 = vmul.f32 %v780, %v773
      %v784 = vsel %vm774, %v772, %v782
      %v785 = vsel %vm775, %v773, %v783
      %786 = vst [vmem:[#allocation2 + $0x1] sm:$0xff] %v784
      %787 = vst [vmem:[#allocation2 + $0x9] sm:$0xff] %v785
      %v788 = vld [vmem:[%s4] sm:$0xf]
      %v789 = vld [vmem:[%s4 + $0x4] sm:$0xf]
      %v790 = vld [vmem:[%s4 + $0x8] sm:$0xf]
      %v791 = vld [vmem:[%s4 + $0xc] sm:$0xf]
      %v792 = vld [vmem:[%s4 + $0x10] sm:$0xf]
      %v793 = vld [vmem:[%s4 + $0x14] sm:$0xf]
      %v794 = vld [vmem:[%s4 + $0x18] sm:$0xf]
      %v795 = vld [vmem:[%s4 + $0x1c] sm:$0xf]
      %v796 = vld [vmem:[%s4 + $0x20] sm:$0xf]
      %v797 = vld [vmem:[%s4 + $0x24] sm:$0xf]
      %v798 = vld [vmem:[%s4 + $0x28] sm:$0xf]
      %v799 = vld [vmem:[%s4 + $0x2c] sm:$0xf]
      %v800 = vld [vmem:[%s4 + $0x30] sm:$0xf]
      %v801 = vld [vmem:[%s4 + $0x34] sm:$0xf]
      %v802 = vld [vmem:[%s4 + $0x38] sm:$0xf]
      %v803 = vld [vmem:[%s4 + $0x3c] sm:$0xf]
      %s804 = scalar_lea.vmem %s4, 64
      %v805 = vld [vmem:[%s804] sm:$0xf]
      %v806 = vld [vmem:[%s804 + $0x4] sm:$0xf]
      %v807 = vld [vmem:[%s804 + $0x8] sm:$0xf]
      %v808 = vld [vmem:[%s804 + $0xc] sm:$0xf]
      %v809 = vld [vmem:[%s804 + $0x10] sm:$0xf]
      %v810 = vld [vmem:[%s804 + $0x14] sm:$0xf]
      %v811 = vld [vmem:[%s804 + $0x18] sm:$0xf]
      %v812 = vld [vmem:[%s804 + $0x1c] sm:$0xf]
      %v813 = vld [vmem:[%s804 + $0x20] sm:$0xf]
      %v814 = vld [vmem:[%s804 + $0x24] sm:$0xf]
      %v815 = vld [vmem:[%s804 + $0x28] sm:$0xf]
      %v816 = vld [vmem:[%s804 + $0x2c] sm:$0xf]
      %v817 = vld [vmem:[%s804 + $0x30] sm:$0xf]
      %v818 = vld [vmem:[%s804 + $0x34] sm:$0xf]
      %v819 = vld [vmem:[%s804 + $0x38] sm:$0xf]
      %v820 = vld [vmem:[%s804 + $0x3c] sm:$0xf]
      %s821 = scalar_lea.vmem %s4, 128
      %v822 = vld [vmem:[%s821] sm:$0xf]
      %v823 = vld [vmem:[%s821 + $0x4] sm:$0xf]
      %v824 = vld [vmem:[%s821 + $0x8] sm:$0xf]
      %v825 = vld [vmem:[%s821 + $0xc] sm:$0xf]
      %v826 = vld [vmem:[%s821 + $0x10] sm:$0xf]
      %v827 = vld [vmem:[%s821 + $0x14] sm:$0xf]
      %v828 = vld [vmem:[%s821 + $0x18] sm:$0xf]
      %v829 = vld [vmem:[%s821 + $0x1c] sm:$0xf]
      %v830 = vld [vmem:[%s821 + $0x20] sm:$0xf]
      %v831 = vld [vmem:[%s821 + $0x24] sm:$0xf]
      %v832 = vld [vmem:[%s821 + $0x28] sm:$0xf]
      %v833 = vld [vmem:[%s821 + $0x2c] sm:$0xf]
      %v834 = vld [vmem:[%s821 + $0x30] sm:$0xf]
      %v835 = vld [vmem:[%s821 + $0x34] sm:$0xf]
      %v836 = vld [vmem:[%s821 + $0x38] sm:$0xf]
      %v837 = vld [vmem:[%s821 + $0x3c] sm:$0xf]
      %v838 = vld [vmem:[%s5] sm:$0x1]
      %v839 = vld [vmem:[%s6] sm:$0x1]
      %v840 = vld [vmem:[#allocation2] sm:$0xff]
      %v841 = vld [vmem:[#allocation2 + $0x8] sm:$0xff]
      %v842 = vpack.c.bf16 %v841, %v840
      %v843 = vld [vmem:[#allocation2 + $0x1] sm:$0xff]
      %v844 = vld [vmem:[#allocation2 + $0x9] sm:$0xff]
      %v845 = vpack.c.bf16 %v844, %v843
      %v846 = vld [vmem:[#allocation2 + $0x2] sm:$0xff]
      %v847 = vld [vmem:[#allocation2 + $0xa] sm:$0xff]
      %v848 = vpack.c.bf16 %v847, %v846
      %v865 = vunpack.c.l.b16 %v805
      %v866 = vunpack.c.l.b16 %v806
      %v867 = vunpack.c.l.b16 %v807
      %v868 = vunpack.c.l.b16 %v808
      %v869 = vunpack.c.l.b16 %v809
      %v870 = vunpack.c.l.b16 %v810
      %v871 = vunpack.c.l.b16 %v811
      %v872 = vunpack.c.l.b16 %v812
      %v873 = vunpack.c.l.b16 %v813
      %v874 = vunpack.c.l.b16 %v814
      %v875 = vunpack.c.l.b16 %v815
      %v876 = vunpack.c.l.b16 %v816
      %v877 = vunpack.c.l.b16 %v817
      %v878 = vunpack.c.l.b16 %v818
      %v879 = vunpack.c.l.b16 %v819
      %v880 = vunpack.c.l.b16 %v820
      %v881 = vpack.c.b16 %v866, %v865
      %v882 = vpack.c.b16 %v868, %v867
      %v883 = vpack.c.b16 %v870, %v869
      %v884 = vpack.c.b16 %v872, %v871
      %v885 = vpack.c.b16 %v874, %v873
      %v886 = vpack.c.b16 %v876, %v875
      %v887 = vpack.c.b16 %v878, %v877
      %v888 = vpack.c.b16 %v880, %v879
      %897 = vmatprep.subr.bf16.mxu0 0
      %898 = vmatpush1.bf16.msra.mxu0 %v888
      %899 = vmatprep.subr.bf16.mxu0 0
      %900 = vmatpush1.bf16.msra.mxu0 %v887
      %901 = vmatprep.subr.bf16.mxu0 0
      %902 = vmatpush1.bf16.msra.mxu0 %v886
      %903 = vmatprep.subr.bf16.mxu0 0
      %904 = vmatpush1.bf16.msra.mxu0 %v885
      %905 = vmatprep.subr.bf16.mxu0 0
      %906 = vmatpush1.bf16.msra.mxu0 %v884
      %907 = vmatprep.subr.bf16.mxu0 0
      %908 = vmatpush1.bf16.msra.mxu0 %v883
      %909 = vmatprep.subr.bf16.mxu0 0
      %910 = vmatpush1.bf16.msra.mxu0 %v882
      %911 = vmatprep.subr.bf16.mxu0 0
      %912 = vmatpush1.bf16.msra.mxu0 %v881
      %913 = vmatprep.subr.bf16.mxu0 0
      %914 = vmatpush2.bf16.msra.mxu0 0
      %915 = vmatprep.subr.bf16.mxu0 0
      %916 = vmatpush2.bf16.msra.mxu0 0
      %917 = vmatprep.subr.bf16.mxu0 0
      %918 = vmatpush2.bf16.msra.mxu0 0
      %919 = vmatprep.subr.bf16.mxu0 0
      %920 = vmatpush2.bf16.msra.mxu0 0
      %921 = vmatprep.subr.bf16.mxu0 0
      %922 = vmatpush2.bf16.msra.mxu0 0
      %923 = vmatprep.subr.bf16.mxu0 0
      %924 = vmatpush2.bf16.msra.mxu0 0
      %925 = vmatprep.subr.bf16.mxu0 0
      %926 = vmatpush2.bf16.msra.mxu0 0
      %927 = vmatprep.subr.bf16.mxu0 0
      %928 = vmatpush2.bf16.msra.mxu0 0
      %929 = vmatprep.mubr.bf16.mxu0 0
      %930 = vmatmul.mubr.bf16.gmra.mxu0 %v845
      %v931 = vpop.f32.mrf.mxu0
      %v932 = vadd.f32 0.0, %v931
      %v933 = vpop.f32.mrf.mxu0
      %v934 = vpop.f32.mrf.mxu0
      %v935 = vadd.f32 0.0, %v934
      %v936 = vpop.f32.mrf.mxu0
      %937 = vdwg.mxu0
      %v954 = vunpack.c.l.b16 %v788
      %v955 = vunpack.c.l.b16 %v789
      %v956 = vunpack.c.l.b16 %v790
      %v957 = vunpack.c.l.b16 %v791
      %v958 = vunpack.c.l.b16 %v792
      %v959 = vunpack.c.l.b16 %v793
      %v960 = vunpack.c.l.b16 %v794
      %v961 = vunpack.c.l.b16 %v795
      %v962 = vunpack.c.l.b16 %v796
      %v963 = vunpack.c.l.b16 %v797
      %v964 = vunpack.c.l.b16 %v798
      %v965 = vunpack.c.l.b16 %v799
      %v966 = vunpack.c.l.b16 %v800
      %v967 = vunpack.c.l.b16 %v801
      %v968 = vunpack.c.l.b16 %v802
      %v969 = vunpack.c.l.b16 %v803
      %v970 = vpack.c.b16 %v955, %v954
      %v971 = vpack.c.b16 %v957, %v956
      %v972 = vpack.c.b16 %v959, %v958
      %v973 = vpack.c.b16 %v961, %v960
      %v974 = vpack.c.b16 %v963, %v962
      %v975 = vpack.c.b16 %v965, %v964
      %v976 = vpack.c.b16 %v967, %v966
      %v977 = vpack.c.b16 %v969, %v968
      %986 = vmatprep.subr.bf16.mxu0 0
      %987 = vmatpush1.bf16.msra.mxu0 %v977
      %988 = vmatprep.subr.bf16.mxu0 0
      %989 = vmatpush1.bf16.msra.mxu0 %v976
      %990 = vmatprep.subr.bf16.mxu0 0
      %991 = vmatpush1.bf16.msra.mxu0 %v975
      %992 = vmatprep.subr.bf16.mxu0 0
      %993 = vmatpush1.bf16.msra.mxu0 %v974
      %994 = vmatprep.subr.bf16.mxu0 0
      %995 = vmatpush1.bf16.msra.mxu0 %v973
      %996 = vmatprep.subr.bf16.mxu0 0
      %997 = vmatpush1.bf16.msra.mxu0 %v972
      %998 = vmatprep.subr.bf16.mxu0 0
      %999 = vmatpush1.bf16.msra.mxu0 %v971
      %1000 = vmatprep.subr.bf16.mxu0 0
      %1001 = vmatpush1.bf16.msra.mxu0 %v970
      %1002 = vmatprep.subr.bf16.mxu0 0
      %1003 = vmatpush2.bf16.msra.mxu0 0
      %1004 = vmatprep.subr.bf16.mxu0 0
      %1005 = vmatpush2.bf16.msra.mxu0 0
      %1006 = vmatprep.subr.bf16.mxu0 0
      %1007 = vmatpush2.bf16.msra.mxu0 0
      %1008 = vmatprep.subr.bf16.mxu0 0
      %1009 = vmatpush2.bf16.msra.mxu0 0
      %1010 = vmatprep.subr.bf16.mxu0 0
      %1011 = vmatpush2.bf16.msra.mxu0 0
      %1012 = vmatprep.subr.bf16.mxu0 0
      %1013 = vmatpush2.bf16.msra.mxu0 0
      %1014 = vmatprep.subr.bf16.mxu0 0
      %1015 = vmatpush2.bf16.msra.mxu0 0
      %1016 = vmatprep.subr.bf16.mxu0 0
      %1017 = vmatpush2.bf16.msra.mxu0 0
      %1018 = vmatprep.mubr.bf16.mxu0 0
      %1019 = vmatmul.mubr.bf16.gmra.mxu0 %v842
      %v1020 = vpop.f32.mrf.mxu0
      %v1021 = vadd.f32 %v932, %v1020
      %v1022 = vpop.f32.mrf.mxu0
      %v1023 = vpop.f32.mrf.mxu0
      %v1024 = vadd.f32 %v935, %v1023
      %v1025 = vpop.f32.mrf.mxu0
      %1026 = vdwg.mxu0
      %v1043 = vunpack.c.l.b16 %v822
      %v1044 = vunpack.c.l.b16 %v823
      %v1045 = vunpack.c.l.b16 %v824
      %v1046 = vunpack.c.l.b16 %v825
      %v1047 = vunpack.c.l.b16 %v826
      %v1048 = vunpack.c.l.b16 %v827
      %v1049 = vunpack.c.l.b16 %v828
      %v1050 = vunpack.c.l.b16 %v829
      %v1051 = vunpack.c.l.b16 %v830
      %v1052 = vunpack.c.l.b16 %v831
      %v1053 = vunpack.c.l.b16 %v832
      %v1054 = vunpack.c.l.b16 %v833
      %v1055 = vunpack.c.l.b16 %v834
      %v1056 = vunpack.c.l.b16 %v835
      %v1057 = vunpack.c.l.b16 %v836
      %v1058 = vunpack.c.l.b16 %v837
      %v1059 = vpack.c.b16 %v1044, %v1043
      %v1060 = vpack.c.b16 %v1046, %v1045
      %v1061 = vpack.c.b16 %v1048, %v1047
      %v1062 = vpack.c.b16 %v1050, %v1049
      %v1063 = vpack.c.b16 %v1052, %v1051
      %v1064 = vpack.c.b16 %v1054, %v1053
      %v1065 = vpack.c.b16 %v1056, %v1055
      %v1066 = vpack.c.b16 %v1058, %v1057
      %1075 = vmatprep.subr.bf16.mxu0 0
      %1076 = vmatpush1.bf16.msra.mxu0 %v1066
      %1077 = vmatprep.subr.bf16.mxu0 0
      %1078 = vmatpush1.bf16.msra.mxu0 %v1065
      %1079 = vmatprep.subr.bf16.mxu0 0
      %1080 = vmatpush1.bf16.msra.mxu0 %v1064
      %1081 = vmatprep.subr.bf16.mxu0 0
      %1082 = vmatpush1.bf16.msra.mxu0 %v1063
      %1083 = vmatprep.subr.bf16.mxu0 0
      %1084 = vmatpush1.bf16.msra.mxu0 %v1062
      %1085 = vmatprep.subr.bf16.mxu0 0
      %1086 = vmatpush1.bf16.msra.mxu0 %v1061
      %1087 = vmatprep.subr.bf16.mxu0 0
      %1088 = vmatpush1.bf16.msra.mxu0 %v1060
      %1089 = vmatprep.subr.bf16.mxu0 0
      %1090 = vmatpush1.bf16.msra.mxu0 %v1059
      %1091 = vmatprep.subr.bf16.mxu0 0
      %1092 = vmatpush2.bf16.msra.mxu0 0
      %1093 = vmatprep.subr.bf16.mxu0 0
      %1094 = vmatpush2.bf16.msra.mxu0 0
      %1095 = vmatprep.subr.bf16.mxu0 0
      %1096 = vmatpush2.bf16.msra.mxu0 0
      %1097 = vmatprep.subr.bf16.mxu0 0
      %1098 = vmatpush2.bf16.msra.mxu0 0
      %1099 = vmatprep.subr.bf16.mxu0 0
      %1100 = vmatpush2.bf16.msra.mxu0 0
      %1101 = vmatprep.subr.bf16.mxu0 0
      %1102 = vmatpush2.bf16.msra.mxu0 0
      %1103 = vmatprep.subr.bf16.mxu0 0
      %1104 = vmatpush2.bf16.msra.mxu0 0
      %1105 = vmatprep.subr.bf16.mxu0 0
      %1106 = vmatpush2.bf16.msra.mxu0 0
      %1107 = vmatprep.mubr.bf16.mxu0 0
      %1108 = vmatmul.mubr.bf16.gmra.mxu0 %v848
      %v1109 = vpop.f32.mrf.mxu0
      %v1110 = vadd.f32 0.0, %v1109
      %v1111 = vpop.f32.mrf.mxu0
      %v1112 = vpop.f32.mrf.mxu0
      %v1113 = vadd.f32 0.0, %v1112
      %v1114 = vpop.f32.mrf.mxu0
      %1115 = vdwg.mxu0
      %v1116 = vadd.f32 %v1021, %v1110
      %v1117 = vadd.f32 %v1024, %v1113
      %v1118 = vlaneseq
      %v1119 = vshrl.u32 %v1118, 7
      %v1120 = vsub.s32 0, %v1119
      %v1121 = vrot.slane %v838, %v1120
      %v1122 = vadd.f32 %v1116, %v1121
      %v1123 = vadd.f32 %v1117, %v1121
      %vm1124 = vcmp.ge.f32.partialorder %v1122, 0.0
      %vm1125 = vcmp.ge.f32.partialorder %v1123, 0.0
      %v1126 = vlaneseq
      %v1127 = vshrl.u32 %v1126, 7
      %v1128 = vsub.s32 0, %v1127
      %v1129 = vrot.slane %v839, %v1128
      %v1130 = vmul.f32 %v1129, %v1122
      %v1131 = vmul.f32 %v1129, %v1123
      %v1132 = vsel %vm1124, %v1122, %v1130
      %v1133 = vsel %vm1125, %v1123, %v1131
      %1134 = vst [vmem:[#allocation3 + $0x1] sm:$0xff] %v1132
      %1135 = vst [vmem:[#allocation3 + $0x9] sm:$0xff] %v1133
      %v1136 = vld [vmem:[%s7] sm:$0xf]
      %v1137 = vld [vmem:[%s7 + $0x4] sm:$0xf]
      %v1138 = vld [vmem:[%s7 + $0x8] sm:$0xf]
      %v1139 = vld [vmem:[%s7 + $0xc] sm:$0xf]
      %v1140 = vld [vmem:[%s7 + $0x10] sm:$0xf]
      %v1141 = vld [vmem:[%s7 + $0x14] sm:$0xf]
      %v1142 = vld [vmem:[%s7 + $0x18] sm:$0xf]
      %v1143 = vld [vmem:[%s7 + $0x1c] sm:$0xf]
      %v1144 = vld [vmem:[%s7 + $0x20] sm:$0xf]
      %v1145 = vld [vmem:[%s7 + $0x24] sm:$0xf]
      %v1146 = vld [vmem:[%s7 + $0x28] sm:$0xf]
      %v1147 = vld [vmem:[%s7 + $0x2c] sm:$0xf]
      %v1148 = vld [vmem:[%s7 + $0x30] sm:$0xf]
      %v1149 = vld [vmem:[%s7 + $0x34] sm:$0xf]
      %v1150 = vld [vmem:[%s7 + $0x38] sm:$0xf]
      %v1151 = vld [vmem:[%s7 + $0x3c] sm:$0xf]
      %s1152 = scalar_lea.vmem %s7, 64
      %v1153 = vld [vmem:[%s1152] sm:$0xf]
      %v1154 = vld [vmem:[%s1152 + $0x4] sm:$0xf]
      %v1155 = vld [vmem:[%s1152 + $0x8] sm:$0xf]
      %v1156 = vld [vmem:[%s1152 + $0xc] sm:$0xf]
      %v1157 = vld [vmem:[%s1152 + $0x10] sm:$0xf]
      %v1158 = vld [vmem:[%s1152 + $0x14] sm:$0xf]
      %v1159 = vld [vmem:[%s1152 + $0x18] sm:$0xf]
      %v1160 = vld [vmem:[%s1152 + $0x1c] sm:$0xf]
      %v1161 = vld [vmem:[%s1152 + $0x20] sm:$0xf]
      %v1162 = vld [vmem:[%s1152 + $0x24] sm:$0xf]
      %v1163 = vld [vmem:[%s1152 + $0x28] sm:$0xf]
      %v1164 = vld [vmem:[%s1152 + $0x2c] sm:$0xf]
      %v1165 = vld [vmem:[%s1152 + $0x30] sm:$0xf]
      %v1166 = vld [vmem:[%s1152 + $0x34] sm:$0xf]
      %v1167 = vld [vmem:[%s1152 + $0x38] sm:$0xf]
      %v1168 = vld [vmem:[%s1152 + $0x3c] sm:$0xf]
      %s1169 = scalar_lea.vmem %s7, 128
      %v1170 = vld [vmem:[%s1169] sm:$0xf]
      %v1171 = vld [vmem:[%s1169 + $0x4] sm:$0xf]
      %v1172 = vld [vmem:[%s1169 + $0x8] sm:$0xf]
      %v1173 = vld [vmem:[%s1169 + $0xc] sm:$0xf]
      %v1174 = vld [vmem:[%s1169 + $0x10] sm:$0xf]
      %v1175 = vld [vmem:[%s1169 + $0x14] sm:$0xf]
      %v1176 = vld [vmem:[%s1169 + $0x18] sm:$0xf]
      %v1177 = vld [vmem:[%s1169 + $0x1c] sm:$0xf]
      %v1178 = vld [vmem:[%s1169 + $0x20] sm:$0xf]
      %v1179 = vld [vmem:[%s1169 + $0x24] sm:$0xf]
      %v1180 = vld [vmem:[%s1169 + $0x28] sm:$0xf]
      %v1181 = vld [vmem:[%s1169 + $0x2c] sm:$0xf]
      %v1182 = vld [vmem:[%s1169 + $0x30] sm:$0xf]
      %v1183 = vld [vmem:[%s1169 + $0x34] sm:$0xf]
      %v1184 = vld [vmem:[%s1169 + $0x38] sm:$0xf]
      %v1185 = vld [vmem:[%s1169 + $0x3c] sm:$0xf]
      %v1186 = vld [vmem:[%s8] sm:$0x1]
      %v1187 = vld [vmem:[#allocation3] sm:$0xff]
      %v1188 = vld [vmem:[#allocation3 + $0x8] sm:$0xff]
      %v1189 = vpack.c.bf16 %v1188, %v1187
      %v1190 = vld [vmem:[#allocation3 + $0x1] sm:$0xff]
      %v1191 = vld [vmem:[#allocation3 + $0x9] sm:$0xff]
      %v1192 = vpack.c.bf16 %v1191, %v1190
      %v1193 = vld [vmem:[#allocation3 + $0x2] sm:$0xff]
      %v1194 = vld [vmem:[#allocation3 + $0xa] sm:$0xff]
      %v1195 = vpack.c.bf16 %v1194, %v1193
      %v1212 = vunpack.c.l.b16 %v1153
      %v1213 = vunpack.c.l.b16 %v1154
      %v1214 = vunpack.c.l.b16 %v1155
      %v1215 = vunpack.c.l.b16 %v1156
      %v1216 = vunpack.c.l.b16 %v1157
      %v1217 = vunpack.c.l.b16 %v1158
      %v1218 = vunpack.c.l.b16 %v1159
      %v1219 = vunpack.c.l.b16 %v1160
      %v1220 = vunpack.c.l.b16 %v1161
      %v1221 = vunpack.c.l.b16 %v1162
      %v1222 = vunpack.c.l.b16 %v1163
      %v1223 = vunpack.c.l.b16 %v1164
      %v1224 = vunpack.c.l.b16 %v1165
      %v1225 = vunpack.c.l.b16 %v1166
      %v1226 = vunpack.c.l.b16 %v1167
      %v1227 = vunpack.c.l.b16 %v1168
      %v1228 = vpack.c.b16 %v1213, %v1212
      %v1229 = vpack.c.b16 %v1215, %v1214
      %v1230 = vpack.c.b16 %v1217, %v1216
      %v1231 = vpack.c.b16 %v1219, %v1218
      %v1232 = vpack.c.b16 %v1221, %v1220
      %v1233 = vpack.c.b16 %v1223, %v1222
      %v1234 = vpack.c.b16 %v1225, %v1224
      %v1235 = vpack.c.b16 %v1227, %v1226
      %1244 = vmatprep.subr.bf16.mxu0 0
      %1245 = vmatpush1.bf16.msra.mxu0 %v1235
      %1246 = vmatprep.subr.bf16.mxu0 0
      %1247 = vmatpush1.bf16.msra.mxu0 %v1234
      %1248 = vmatprep.subr.bf16.mxu0 0
      %1249 = vmatpush1.bf16.msra.mxu0 %v1233
      %1250 = vmatprep.subr.bf16.mxu0 0
      %1251 = vmatpush1.bf16.msra.mxu0 %v1232
      %1252 = vmatprep.subr.bf16.mxu0 0
      %1253 = vmatpush1.bf16.msra.mxu0 %v1231
      %1254 = vmatprep.subr.bf16.mxu0 0
      %1255 = vmatpush1.bf16.msra.mxu0 %v1230
      %1256 = vmatprep.subr.bf16.mxu0 0
      %1257 = vmatpush1.bf16.msra.mxu0 %v1229
      %1258 = vmatprep.subr.bf16.mxu0 0
      %1259 = vmatpush1.bf16.msra.mxu0 %v1228
      %1260 = vmatprep.subr.bf16.mxu0 0
      %1261 = vmatpush2.bf16.msra.mxu0 0
      %1262 = vmatprep.subr.bf16.mxu0 0
      %1263 = vmatpush2.bf16.msra.mxu0 0
      %1264 = vmatprep.subr.bf16.mxu0 0
      %1265 = vmatpush2.bf16.msra.mxu0 0
      %1266 = vmatprep.subr.bf16.mxu0 0
      %1267 = vmatpush2.bf16.msra.mxu0 0
      %1268 = vmatprep.subr.bf16.mxu0 0
      %1269 = vmatpush2.bf16.msra.mxu0 0
      %1270 = vmatprep.subr.bf16.mxu0 0
      %1271 = vmatpush2.bf16.msra.mxu0 0
      %1272 = vmatprep.subr.bf16.mxu0 0
      %1273 = vmatpush2.bf16.msra.mxu0 0
      %1274 = vmatprep.subr.bf16.mxu0 0
      %1275 = vmatpush2.bf16.msra.mxu0 0
      %1276 = vmatprep.mubr.bf16.mxu0 0
      %1277 = vmatmul.mubr.bf16.gmra.mxu0 %v1192
      %v1278 = vpop.f32.mrf.mxu0
      %v1279 = vadd.f32 0.0, %v1278
      %v1280 = vpop.f32.mrf.mxu0
      %v1281 = vpop.f32.mrf.mxu0
      %v1282 = vadd.f32 0.0, %v1281
      %v1283 = vpop.f32.mrf.mxu0
      %1284 = vdwg.mxu0
      %v1301 = vunpack.c.l.b16 %v1136
      %v1302 = vunpack.c.l.b16 %v1137
      %v1303 = vunpack.c.l.b16 %v1138
      %v1304 = vunpack.c.l.b16 %v1139
      %v1305 = vunpack.c.l.b16 %v1140
      %v1306 = vunpack.c.l.b16 %v1141
      %v1307 = vunpack.c.l.b16 %v1142
      %v1308 = vunpack.c.l.b16 %v1143
      %v1309 = vunpack.c.l.b16 %v1144
      %v1310 = vunpack.c.l.b16 %v1145
      %v1311 = vunpack.c.l.b16 %v1146
      %v1312 = vunpack.c.l.b16 %v1147
      %v1313 = vunpack.c.l.b16 %v1148
      %v1314 = vunpack.c.l.b16 %v1149
      %v1315 = vunpack.c.l.b16 %v1150
      %v1316 = vunpack.c.l.b16 %v1151
      %v1317 = vpack.c.b16 %v1302, %v1301
      %v1318 = vpack.c.b16 %v1304, %v1303
      %v1319 = vpack.c.b16 %v1306, %v1305
      %v1320 = vpack.c.b16 %v1308, %v1307
      %v1321 = vpack.c.b16 %v1310, %v1309
      %v1322 = vpack.c.b16 %v1312, %v1311
      %v1323 = vpack.c.b16 %v1314, %v1313
      %v1324 = vpack.c.b16 %v1316, %v1315
      %1333 = vmatprep.subr.bf16.mxu0 0
      %1334 = vmatpush1.bf16.msra.mxu0 %v1324
      %1335 = vmatprep.subr.bf16.mxu0 0
      %1336 = vmatpush1.bf16.msra.mxu0 %v1323
      %1337 = vmatprep.subr.bf16.mxu0 0
      %1338 = vmatpush1.bf16.msra.mxu0 %v1322
      %1339 = vmatprep.subr.bf16.mxu0 0
      %1340 = vmatpush1.bf16.msra.mxu0 %v1321
      %1341 = vmatprep.subr.bf16.mxu0 0
      %1342 = vmatpush1.bf16.msra.mxu0 %v1320
      %1343 = vmatprep.subr.bf16.mxu0 0
      %1344 = vmatpush1.bf16.msra.mxu0 %v1319
      %1345 = vmatprep.subr.bf16.mxu0 0
      %1346 = vmatpush1.bf16.msra.mxu0 %v1318
      %1347 = vmatprep.subr.bf16.mxu0 0
      %1348 = vmatpush1.bf16.msra.mxu0 %v1317
      %1349 = vmatprep.subr.bf16.mxu0 0
      %1350 = vmatpush2.bf16.msra.mxu0 0
      %1351 = vmatprep.subr.bf16.mxu0 0
      %1352 = vmatpush2.bf16.msra.mxu0 0
      %1353 = vmatprep.subr.bf16.mxu0 0
      %1354 = vmatpush2.bf16.msra.mxu0 0
      %1355 = vmatprep.subr.bf16.mxu0 0
      %1356 = vmatpush2.bf16.msra.mxu0 0
      %1357 = vmatprep.subr.bf16.mxu0 0
      %1358 = vmatpush2.bf16.msra.mxu0 0
      %1359 = vmatprep.subr.bf16.mxu0 0
      %1360 = vmatpush2.bf16.msra.mxu0 0
      %1361 = vmatprep.subr.bf16.mxu0 0
      %1362 = vmatpush2.bf16.msra.mxu0 0
      %1363 = vmatprep.subr.bf16.mxu0 0
      %1364 = vmatpush2.bf16.msra.mxu0 0
      %1365 = vmatprep.mubr.bf16.mxu0 0
      %1366 = vmatmul.mubr.bf16.gmra.mxu0 %v1189
      %v1367 = vpop.f32.mrf.mxu0
      %v1368 = vadd.f32 %v1279, %v1367
      %v1369 = vpop.f32.mrf.mxu0
      %v1370 = vpop.f32.mrf.mxu0
      %v1371 = vadd.f32 %v1282, %v1370
      %v1372 = vpop.f32.mrf.mxu0
      %1373 = vdwg.mxu0
      %v1390 = vunpack.c.l.b16 %v1170
      %v1391 = vunpack.c.l.b16 %v1171
      %v1392 = vunpack.c.l.b16 %v1172
      %v1393 = vunpack.c.l.b16 %v1173
      %v1394 = vunpack.c.l.b16 %v1174
      %v1395 = vunpack.c.l.b16 %v1175
      %v1396 = vunpack.c.l.b16 %v1176
      %v1397 = vunpack.c.l.b16 %v1177
      %v1398 = vunpack.c.l.b16 %v1178
      %v1399 = vunpack.c.l.b16 %v1179
      %v1400 = vunpack.c.l.b16 %v1180
      %v1401 = vunpack.c.l.b16 %v1181
      %v1402 = vunpack.c.l.b16 %v1182
      %v1403 = vunpack.c.l.b16 %v1183
      %v1404 = vunpack.c.l.b16 %v1184
      %v1405 = vunpack.c.l.b16 %v1185
      %v1406 = vpack.c.b16 %v1391, %v1390
      %v1407 = vpack.c.b16 %v1393, %v1392
      %v1408 = vpack.c.b16 %v1395, %v1394
      %v1409 = vpack.c.b16 %v1397, %v1396
      %v1410 = vpack.c.b16 %v1399, %v1398
      %v1411 = vpack.c.b16 %v1401, %v1400
      %v1412 = vpack.c.b16 %v1403, %v1402
      %v1413 = vpack.c.b16 %v1405, %v1404
      %1422 = vmatprep.subr.bf16.mxu0 0
      %1423 = vmatpush1.bf16.msra.mxu0 %v1413
      %1424 = vmatprep.subr.bf16.mxu0 0
      %1425 = vmatpush1.bf16.msra.mxu0 %v1412
      %1426 = vmatprep.subr.bf16.mxu0 0
      %1427 = vmatpush1.bf16.msra.mxu0 %v1411
      %1428 = vmatprep.subr.bf16.mxu0 0
      %1429 = vmatpush1.bf16.msra.mxu0 %v1410
      %1430 = vmatprep.subr.bf16.mxu0 0
      %1431 = vmatpush1.bf16.msra.mxu0 %v1409
      %1432 = vmatprep.subr.bf16.mxu0 0
      %1433 = vmatpush1.bf16.msra.mxu0 %v1408
      %1434 = vmatprep.subr.bf16.mxu0 0
      %1435 = vmatpush1.bf16.msra.mxu0 %v1407
      %1436 = vmatprep.subr.bf16.mxu0 0
      %1437 = vmatpush1.bf16.msra.mxu0 %v1406
      %1438 = vmatprep.subr.bf16.mxu0 0
      %1439 = vmatpush2.bf16.msra.mxu0 0
      %1440 = vmatprep.subr.bf16.mxu0 0
      %1441 = vmatpush2.bf16.msra.mxu0 0
      %1442 = vmatprep.subr.bf16.mxu0 0
      %1443 = vmatpush2.bf16.msra.mxu0 0
      %1444 = vmatprep.subr.bf16.mxu0 0
      %1445 = vmatpush2.bf16.msra.mxu0 0
      %1446 = vmatprep.subr.bf16.mxu0 0
      %1447 = vmatpush2.bf16.msra.mxu0 0
      %1448 = vmatprep.subr.bf16.mxu0 0
      %1449 = vmatpush2.bf16.msra.mxu0 0
      %1450 = vmatprep.subr.bf16.mxu0 0
      %1451 = vmatpush2.bf16.msra.mxu0 0
      %1452 = vmatprep.subr.bf16.mxu0 0
      %1453 = vmatpush2.bf16.msra.mxu0 0
      %1454 = vmatprep.mubr.bf16.mxu0 0
      %1455 = vmatmul.mubr.bf16.gmra.mxu0 %v1195
      %v1456 = vpop.f32.mrf.mxu0
      %v1457 = vadd.f32 0.0, %v1456
      %v1458 = vpop.f32.mrf.mxu0
      %v1459 = vpop.f32.mrf.mxu0
      %v1460 = vadd.f32 0.0, %v1459
      %v1461 = vpop.f32.mrf.mxu0
      %1462 = vdwg.mxu0
      %v1463 = vadd.f32 %v1368, %v1457
      %v1464 = vadd.f32 %v1371, %v1460
      %v1465 = vlaneseq
      %v1466 = vshrl.u32 %v1465, 7
      %v1467 = vsub.s32 0, %v1466
      %v1468 = vrot.slane %v1186, %v1467
      %v1469 = vadd.f32 %v1463, %v1468
      %v1470 = vadd.f32 %v1464, %v1468
      %v1471 = vld [vmem:[#allocation2 + $0x1] sm:$0xff]
      %v1472 = vld [vmem:[#allocation2 + $0x9] sm:$0xff]
      %v1473 = vadd.f32 %v1471, %v1469
      %v1474 = vadd.f32 %v1472, %v1470
      %1475 = vst [vmem:[#allocation2 + $0x1] sm:$0xff] %v1473
      %1476 = vst [vmem:[#allocation2 + $0x9] sm:$0xff] %v1474
      %s1477 = scalar_lea.vmem %s4, 192
      %v1478 = vld [vmem:[%s1477] sm:$0xf]
      %v1479 = vld [vmem:[%s1477 + $0x4] sm:$0xf]
      %v1480 = vld [vmem:[%s1477 + $0x8] sm:$0xf]
      %v1481 = vld [vmem:[%s1477 + $0xc] sm:$0xf]
      %v1482 = vld [vmem:[%s1477 + $0x10] sm:$0xf]
      %v1483 = vld [vmem:[%s1477 + $0x14] sm:$0xf]
      %v1484 = vld [vmem:[%s1477 + $0x18] sm:$0xf]
      %v1485 = vld [vmem:[%s1477 + $0x1c] sm:$0xf]
      %v1486 = vld [vmem:[%s1477 + $0x20] sm:$0xf]
      %v1487 = vld [vmem:[%s1477 + $0x24] sm:$0xf]
      %v1488 = vld [vmem:[%s1477 + $0x28] sm:$0xf]
      %v1489 = vld [vmem:[%s1477 + $0x2c] sm:$0xf]
      %v1490 = vld [vmem:[%s1477 + $0x30] sm:$0xf]
      %v1491 = vld [vmem:[%s1477 + $0x34] sm:$0xf]
      %v1492 = vld [vmem:[%s1477 + $0x38] sm:$0xf]
      %v1493 = vld [vmem:[%s1477 + $0x3c] sm:$0xf]
      %s1494 = scalar_lea.vmem %s4, 256
      %v1495 = vld [vmem:[%s1494] sm:$0xf]
      %v1496 = vld [vmem:[%s1494 + $0x4] sm:$0xf]
      %v1497 = vld [vmem:[%s1494 + $0x8] sm:$0xf]
      %v1498 = vld [vmem:[%s1494 + $0xc] sm:$0xf]
      %v1499 = vld [vmem:[%s1494 + $0x10] sm:$0xf]
      %v1500 = vld [vmem:[%s1494 + $0x14] sm:$0xf]
      %v1501 = vld [vmem:[%s1494 + $0x18] sm:$0xf]
      %v1502 = vld [vmem:[%s1494 + $0x1c] sm:$0xf]
      %v1503 = vld [vmem:[%s1494 + $0x20] sm:$0xf]
      %v1504 = vld [vmem:[%s1494 + $0x24] sm:$0xf]
      %v1505 = vld [vmem:[%s1494 + $0x28] sm:$0xf]
      %v1506 = vld [vmem:[%s1494 + $0x2c] sm:$0xf]
      %v1507 = vld [vmem:[%s1494 + $0x30] sm:$0xf]
      %v1508 = vld [vmem:[%s1494 + $0x34] sm:$0xf]
      %v1509 = vld [vmem:[%s1494 + $0x38] sm:$0xf]
      %v1510 = vld [vmem:[%s1494 + $0x3c] sm:$0xf]
      %s1511 = scalar_lea.vmem %s4, 320
      %v1512 = vld [vmem:[%s1511] sm:$0xf]
      %v1513 = vld [vmem:[%s1511 + $0x4] sm:$0xf]
      %v1514 = vld [vmem:[%s1511 + $0x8] sm:$0xf]
      %v1515 = vld [vmem:[%s1511 + $0xc] sm:$0xf]
      %v1516 = vld [vmem:[%s1511 + $0x10] sm:$0xf]
      %v1517 = vld [vmem:[%s1511 + $0x14] sm:$0xf]
      %v1518 = vld [vmem:[%s1511 + $0x18] sm:$0xf]
      %v1519 = vld [vmem:[%s1511 + $0x1c] sm:$0xf]
      %v1520 = vld [vmem:[%s1511 + $0x20] sm:$0xf]
      %v1521 = vld [vmem:[%s1511 + $0x24] sm:$0xf]
      %v1522 = vld [vmem:[%s1511 + $0x28] sm:$0xf]
      %v1523 = vld [vmem:[%s1511 + $0x2c] sm:$0xf]
      %v1524 = vld [vmem:[%s1511 + $0x30] sm:$0xf]
      %v1525 = vld [vmem:[%s1511 + $0x34] sm:$0xf]
      %v1526 = vld [vmem:[%s1511 + $0x38] sm:$0xf]
      %v1527 = vld [vmem:[%s1511 + $0x3c] sm:$0xf]
      %v1528 = vld [vmem:[%s5 + $0x1] sm:$0x1]
      %v1529 = vld [vmem:[%s6 + $0x1] sm:$0x1]
      %v1530 = vld [vmem:[#allocation2] sm:$0xff]
      %v1531 = vld [vmem:[#allocation2 + $0x8] sm:$0xff]
      %v1532 = vpack.c.bf16 %v1531, %v1530
      %v1533 = vld [vmem:[#allocation2 + $0x1] sm:$0xff]
      %v1534 = vld [vmem:[#allocation2 + $0x9] sm:$0xff]
      %v1535 = vpack.c.bf16 %v1534, %v1533
      %v1536 = vld [vmem:[#allocation2 + $0x2] sm:$0xff]
      %v1537 = vld [vmem:[#allocation2 + $0xa] sm:$0xff]
      %v1538 = vpack.c.bf16 %v1537, %v1536
      %v1555 = vunpack.c.l.b16 %v1495
      %v1556 = vunpack.c.l.b16 %v1496
      %v1557 = vunpack.c.l.b16 %v1497
      %v1558 = vunpack.c.l.b16 %v1498
      %v1559 = vunpack.c.l.b16 %v1499
      %v1560 = vunpack.c.l.b16 %v1500
      %v1561 = vunpack.c.l.b16 %v1501
      %v1562 = vunpack.c.l.b16 %v1502
      %v1563 = vunpack.c.l.b16 %v1503
      %v1564 = vunpack.c.l.b16 %v1504
      %v1565 = vunpack.c.l.b16 %v1505
      %v1566 = vunpack.c.l.b16 %v1506
      %v1567 = vunpack.c.l.b16 %v1507
      %v1568 = vunpack.c.l.b16 %v1508
      %v1569 = vunpack.c.l.b16 %v1509
      %v1570 = vunpack.c.l.b16 %v1510
      %v1571 = vpack.c.b16 %v1556, %v1555
      %v1572 = vpack.c.b16 %v1558, %v1557
      %v1573 = vpack.c.b16 %v1560, %v1559
      %v1574 = vpack.c.b16 %v1562, %v1561
      %v1575 = vpack.c.b16 %v1564, %v1563
      %v1576 = vpack.c.b16 %v1566, %v1565
      %v1577 = vpack.c.b16 %v1568, %v1567
      %v1578 = vpack.c.b16 %v1570, %v1569
      %1587 = vmatprep.subr.bf16.mxu0 0
      %1588 = vmatpush1.bf16.msra.mxu0 %v1578
      %1589 = vmatprep.subr.bf16.mxu0 0
      %1590 = vmatpush1.bf16.msra.mxu0 %v1577
      %1591 = vmatprep.subr.bf16.mxu0 0
      %1592 = vmatpush1.bf16.msra.mxu0 %v1576
      %1593 = vmatprep.subr.bf16.mxu0 0
      %1594 = vmatpush1.bf16.msra.mxu0 %v1575
      %1595 = vmatprep.subr.bf16.mxu0 0
      %1596 = vmatpush1.bf16.msra.mxu0 %v1574
      %1597 = vmatprep.subr.bf16.mxu0 0
      %1598 = vmatpush1.bf16.msra.mxu0 %v1573
      %1599 = vmatprep.subr.bf16.mxu0 0
      %1600 = vmatpush1.bf16.msra.mxu0 %v1572
      %1601 = vmatprep.subr.bf16.mxu0 0
      %1602 = vmatpush1.bf16.msra.mxu0 %v1571
      %1603 = vmatprep.subr.bf16.mxu0 0
      %1604 = vmatpush2.bf16.msra.mxu0 0
      %1605 = vmatprep.subr.bf16.mxu0 0
      %1606 = vmatpush2.bf16.msra.mxu0 0
      %1607 = vmatprep.subr.bf16.mxu0 0
      %1608 = vmatpush2.bf16.msra.mxu0 0
      %1609 = vmatprep.subr.bf16.mxu0 0
      %1610 = vmatpush2.bf16.msra.mxu0 0
      %1611 = vmatprep.subr.bf16.mxu0 0
      %1612 = vmatpush2.bf16.msra.mxu0 0
      %1613 = vmatprep.subr.bf16.mxu0 0
      %1614 = vmatpush2.bf16.msra.mxu0 0
      %1615 = vmatprep.subr.bf16.mxu0 0
      %1616 = vmatpush2.bf16.msra.mxu0 0
      %1617 = vmatprep.subr.bf16.mxu0 0
      %1618 = vmatpush2.bf16.msra.mxu0 0
      %1619 = vmatprep.mubr.bf16.mxu0 0
      %1620 = vmatmul.mubr.bf16.gmra.mxu0 %v1535
      %v1621 = vpop.f32.mrf.mxu0
      %v1622 = vadd.f32 0.0, %v1621
      %v1623 = vpop.f32.mrf.mxu0
      %v1624 = vpop.f32.mrf.mxu0
      %v1625 = vadd.f32 0.0, %v1624
      %v1626 = vpop.f32.mrf.mxu0
      %1627 = vdwg.mxu0
      %v1644 = vunpack.c.l.b16 %v1478
      %v1645 = vunpack.c.l.b16 %v1479
      %v1646 = vunpack.c.l.b16 %v1480
      %v1647 = vunpack.c.l.b16 %v1481
      %v1648 = vunpack.c.l.b16 %v1482
      %v1649 = vunpack.c.l.b16 %v1483
      %v1650 = vunpack.c.l.b16 %v1484
      %v1651 = vunpack.c.l.b16 %v1485
      %v1652 = vunpack.c.l.b16 %v1486
      %v1653 = vunpack.c.l.b16 %v1487
      %v1654 = vunpack.c.l.b16 %v1488
      %v1655 = vunpack.c.l.b16 %v1489
      %v1656 = vunpack.c.l.b16 %v1490
      %v1657 = vunpack.c.l.b16 %v1491
      %v1658 = vunpack.c.l.b16 %v1492
      %v1659 = vunpack.c.l.b16 %v1493
      %v1660 = vpack.c.b16 %v1645, %v1644
      %v1661 = vpack.c.b16 %v1647, %v1646
      %v1662 = vpack.c.b16 %v1649, %v1648
      %v1663 = vpack.c.b16 %v1651, %v1650
      %v1664 = vpack.c.b16 %v1653, %v1652
      %v1665 = vpack.c.b16 %v1655, %v1654
      %v1666 = vpack.c.b16 %v1657, %v1656
      %v1667 = vpack.c.b16 %v1659, %v1658
      %1676 = vmatprep.subr.bf16.mxu0 0
      %1677 = vmatpush1.bf16.msra.mxu0 %v1667
      %1678 = vmatprep.subr.bf16.mxu0 0
      %1679 = vmatpush1.bf16.msra.mxu0 %v1666
      %1680 = vmatprep.subr.bf16.mxu0 0
      %1681 = vmatpush1.bf16.msra.mxu0 %v1665
      %1682 = vmatprep.subr.bf16.mxu0 0
      %1683 = vmatpush1.bf16.msra.mxu0 %v1664
      %1684 = vmatprep.subr.bf16.mxu0 0
      %1685 = vmatpush1.bf16.msra.mxu0 %v1663
      %1686 = vmatprep.subr.bf16.mxu0 0
      %1687 = vmatpush1.bf16.msra.mxu0 %v1662
      %1688 = vmatprep.subr.bf16.mxu0 0
      %1689 = vmatpush1.bf16.msra.mxu0 %v1661
      %1690 = vmatprep.subr.bf16.mxu0 0
      %1691 = vmatpush1.bf16.msra.mxu0 %v1660
      %1692 = vmatprep.subr.bf16.mxu0 0
      %1693 = vmatpush2.bf16.msra.mxu0 0
      %1694 = vmatprep.subr.bf16.mxu0 0
      %1695 = vmatpush2.bf16.msra.mxu0 0
      %1696 = vmatprep.subr.bf16.mxu0 0
      %1697 = vmatpush2.bf16.msra.mxu0 0
      %1698 = vmatprep.subr.bf16.mxu0 0
      %1699 = vmatpush2.bf16.msra.mxu0 0
      %1700 = vmatprep.subr.bf16.mxu0 0
      %1701 = vmatpush2.bf16.msra.mxu0 0
      %1702 = vmatprep.subr.bf16.mxu0 0
      %1703 = vmatpush2.bf16.msra.mxu0 0
      %1704 = vmatprep.subr.bf16.mxu0 0
      %1705 = vmatpush2.bf16.msra.mxu0 0
      %1706 = vmatprep.subr.bf16.mxu0 0
      %1707 = vmatpush2.bf16.msra.mxu0 0
      %1708 = vmatprep.mubr.bf16.mxu0 0
      %1709 = vmatmul.mubr.bf16.gmra.mxu0 %v1532
      %v1710 = vpop.f32.mrf.mxu0
      %v1711 = vadd.f32 %v1622, %v1710
      %v1712 = vpop.f32.mrf.mxu0
      %v1713 = vpop.f32.mrf.mxu0
      %v1714 = vadd.f32 %v1625, %v1713
      %v1715 = vpop.f32.mrf.mxu0
      %1716 = vdwg.mxu0
      %v1733 = vunpack.c.l.b16 %v1512
      %v1734 = vunpack.c.l.b16 %v1513
      %v1735 = vunpack.c.l.b16 %v1514
      %v1736 = vunpack.c.l.b16 %v1515
      %v1737 = vunpack.c.l.b16 %v1516
      %v1738 = vunpack.c.l.b16 %v1517
      %v1739 = vunpack.c.l.b16 %v1518
      %v1740 = vunpack.c.l.b16 %v1519
      %v1741 = vunpack.c.l.b16 %v1520
      %v1742 = vunpack.c.l.b16 %v1521
      %v1743 = vunpack.c.l.b16 %v1522
      %v1744 = vunpack.c.l.b16 %v1523
      %v1745 = vunpack.c.l.b16 %v1524
      %v1746 = vunpack.c.l.b16 %v1525
      %v1747 = vunpack.c.l.b16 %v1526
      %v1748 = vunpack.c.l.b16 %v1527
      %v1749 = vpack.c.b16 %v1734, %v1733
      %v1750 = vpack.c.b16 %v1736, %v1735
      %v1751 = vpack.c.b16 %v1738, %v1737
      %v1752 = vpack.c.b16 %v1740, %v1739
      %v1753 = vpack.c.b16 %v1742, %v1741
      %v1754 = vpack.c.b16 %v1744, %v1743
      %v1755 = vpack.c.b16 %v1746, %v1745
      %v1756 = vpack.c.b16 %v1748, %v1747
      %1765 = vmatprep.subr.bf16.mxu0 0
      %1766 = vmatpush1.bf16.msra.mxu0 %v1756
      %1767 = vmatprep.subr.bf16.mxu0 0
      %1768 = vmatpush1.bf16.msra.mxu0 %v1755
      %1769 = vmatprep.subr.bf16.mxu0 0
      %1770 = vmatpush1.bf16.msra.mxu0 %v1754
      %1771 = vmatprep.subr.bf16.mxu0 0
      %1772 = vmatpush1.bf16.msra.mxu0 %v1753
      %1773 = vmatprep.subr.bf16.mxu0 0
      %1774 = vmatpush1.bf16.msra.mxu0 %v1752
      %1775 = vmatprep.subr.bf16.mxu0 0
      %1776 = vmatpush1.bf16.msra.mxu0 %v1751
      %1777 = vmatprep.subr.bf16.mxu0 0
      %1778 = vmatpush1.bf16.msra.mxu0 %v1750
      %1779 = vmatprep.subr.bf16.mxu0 0
      %1780 = vmatpush1.bf16.msra.mxu0 %v1749
      %1781 = vmatprep.subr.bf16.mxu0 0
      %1782 = vmatpush2.bf16.msra.mxu0 0
      %1783 = vmatprep.subr.bf16.mxu0 0
      %1784 = vmatpush2.bf16.msra.mxu0 0
      %1785 = vmatprep.subr.bf16.mxu0 0
      %1786 = vmatpush2.bf16.msra.mxu0 0
      %1787 = vmatprep.subr.bf16.mxu0 0
      %1788 = vmatpush2.bf16.msra.mxu0 0
      %1789 = vmatprep.subr.bf16.mxu0 0
      %1790 = vmatpush2.bf16.msra.mxu0 0
      %1791 = vmatprep.subr.bf16.mxu0 0
      %1792 = vmatpush2.bf16.msra.mxu0 0
      %1793 = vmatprep.subr.bf16.mxu0 0
      %1794 = vmatpush2.bf16.msra.mxu0 0
      %1795 = vmatprep.subr.bf16.mxu0 0
      %1796 = vmatpush2.bf16.msra.mxu0 0
      %1797 = vmatprep.mubr.bf16.mxu0 0
      %1798 = vmatmul.mubr.bf16.gmra.mxu0 %v1538
      %v1799 = vpop.f32.mrf.mxu0
      %v1800 = vadd.f32 0.0, %v1799
      %v1801 = vpop.f32.mrf.mxu0
      %v1802 = vpop.f32.mrf.mxu0
      %v1803 = vadd.f32 0.0, %v1802
      %v1804 = vpop.f32.mrf.mxu0
      %1805 = vdwg.mxu0
      %v1806 = vadd.f32 %v1711, %v1800
      %v1807 = vadd.f32 %v1714, %v1803
      %v1808 = vlaneseq
      %v1809 = vshrl.u32 %v1808, 7
      %v1810 = vsub.s32 0, %v1809
      %v1811 = vrot.slane %v1528, %v1810
      %v1812 = vadd.f32 %v1806, %v1811
      %v1813 = vadd.f32 %v1807, %v1811
      %vm1814 = vcmp.ge.f32.partialorder %v1812, 0.0
      %vm1815 = vcmp.ge.f32.partialorder %v1813, 0.0
      %v1816 = vlaneseq
      %v1817 = vshrl.u32 %v1816, 7
      %v1818 = vsub.s32 0, %v1817
      %v1819 = vrot.slane %v1529, %v1818
      %v1820 = vmul.f32 %v1819, %v1812
      %v1821 = vmul.f32 %v1819, %v1813
      %v1822 = vsel %vm1814, %v1812, %v1820
      %v1823 = vsel %vm1815, %v1813, %v1821
      %1824 = vst [vmem:[#allocation3 + $0x1] sm:$0xff] %v1822
      %1825 = vst [vmem:[#allocation3 + $0x9] sm:$0xff] %v1823
      %s1826 = scalar_lea.vmem %s7, 192
      %v1827 = vld [vmem:[%s1826] sm:$0xf]
      %v1828 = vld [vmem:[%s1826 + $0x4] sm:$0xf]
      %v1829 = vld [vmem:[%s1826 + $0x8] sm:$0xf]
      %v1830 = vld [vmem:[%s1826 + $0xc] sm:$0xf]
      %v1831 = vld [vmem:[%s1826 + $0x10] sm:$0xf]
      %v1832 = vld [vmem:[%s1826 + $0x14] sm:$0xf]
      %v1833 = vld [vmem:[%s1826 + $0x18] sm:$0xf]
      %v1834 = vld [vmem:[%s1826 + $0x1c] sm:$0xf]
      %v1835 = vld [vmem:[%s1826 + $0x20] sm:$0xf]
      %v1836 = vld [vmem:[%s1826 + $0x24] sm:$0xf]
      %v1837 = vld [vmem:[%s1826 + $0x28] sm:$0xf]
      %v1838 = vld [vmem:[%s1826 + $0x2c] sm:$0xf]
      %v1839 = vld [vmem:[%s1826 + $0x30] sm:$0xf]
      %v1840 = vld [vmem:[%s1826 + $0x34] sm:$0xf]
      %v1841 = vld [vmem:[%s1826 + $0x38] sm:$0xf]
      %v1842 = vld [vmem:[%s1826 + $0x3c] sm:$0xf]
      %s1843 = scalar_lea.vmem %s7, 256
      %v1844 = vld [vmem:[%s1843] sm:$0xf]
      %v1845 = vld [vmem:[%s1843 + $0x4] sm:$0xf]
      %v1846 = vld [vmem:[%s1843 + $0x8] sm:$0xf]
      %v1847 = vld [vmem:[%s1843 + $0xc] sm:$0xf]
      %v1848 = vld [vmem:[%s1843 + $0x10] sm:$0xf]
      %v1849 = vld [vmem:[%s1843 + $0x14] sm:$0xf]
      %v1850 = vld [vmem:[%s1843 + $0x18] sm:$0xf]
      %v1851 = vld [vmem:[%s1843 + $0x1c] sm:$0xf]
      %v1852 = vld [vmem:[%s1843 + $0x20] sm:$0xf]
      %v1853 = vld [vmem:[%s1843 + $0x24] sm:$0xf]
      %v1854 = vld [vmem:[%s1843 + $0x28] sm:$0xf]
      %v1855 = vld [vmem:[%s1843 + $0x2c] sm:$0xf]
      %v1856 = vld [vmem:[%s1843 + $0x30] sm:$0xf]
      %v1857 = vld [vmem:[%s1843 + $0x34] sm:$0xf]
      %v1858 = vld [vmem:[%s1843 + $0x38] sm:$0xf]
      %v1859 = vld [vmem:[%s1843 + $0x3c] sm:$0xf]
      %s1860 = scalar_lea.vmem %s7, 320
      %v1861 = vld [vmem:[%s1860] sm:$0xf]
      %v1862 = vld [vmem:[%s1860 + $0x4] sm:$0xf]
      %v1863 = vld [vmem:[%s1860 + $0x8] sm:$0xf]
      %v1864 = vld [vmem:[%s1860 + $0xc] sm:$0xf]
      %v1865 = vld [vmem:[%s1860 + $0x10] sm:$0xf]
      %v1866 = vld [vmem:[%s1860 + $0x14] sm:$0xf]
      %v1867 = vld [vmem:[%s1860 + $0x18] sm:$0xf]
      %v1868 = vld [vmem:[%s1860 + $0x1c] sm:$0xf]
      %v1869 = vld [vmem:[%s1860 + $0x20] sm:$0xf]
      %v1870 = vld [vmem:[%s1860 + $0x24] sm:$0xf]
      %v1871 = vld [vmem:[%s1860 + $0x28] sm:$0xf]
      %v1872 = vld [vmem:[%s1860 + $0x2c] sm:$0xf]
      %v1873 = vld [vmem:[%s1860 + $0x30] sm:$0xf]
      %v1874 = vld [vmem:[%s1860 + $0x34] sm:$0xf]
      %v1875 = vld [vmem:[%s1860 + $0x38] sm:$0xf]
      %v1876 = vld [vmem:[%s1860 + $0x3c] sm:$0xf]
      %v1877 = vld [vmem:[%s8 + $0x1] sm:$0x1]
      %v1878 = vld [vmem:[#allocation3] sm:$0xff]
      %v1879 = vld [vmem:[#allocation3 + $0x8] sm:$0xff]
      %v1880 = vpack.c.bf16 %v1879, %v1878
      %v1881 = vld [vmem:[#allocation3 + $0x1] sm:$0xff]
      %v1882 = vld [vmem:[#allocation3 + $0x9] sm:$0xff]
      %v1883 = vpack.c.bf16 %v1882, %v1881
      %v1884 = vld [vmem:[#allocation3 + $0x2] sm:$0xff]
      %v1885 = vld [vmem:[#allocation3 + $0xa] sm:$0xff]
      %v1886 = vpack.c.bf16 %v1885, %v1884
      %v1903 = vunpack.c.l.b16 %v1844
      %v1904 = vunpack.c.l.b16 %v1845
      %v1905 = vunpack.c.l.b16 %v1846
      %v1906 = vunpack.c.l.b16 %v1847
      %v1907 = vunpack.c.l.b16 %v1848
      %v1908 = vunpack.c.l.b16 %v1849
      %v1909 = vunpack.c.l.b16 %v1850
      %v1910 = vunpack.c.l.b16 %v1851
      %v1911 = vunpack.c.l.b16 %v1852
      %v1912 = vunpack.c.l.b16 %v1853
      %v1913 = vunpack.c.l.b16 %v1854
      %v1914 = vunpack.c.l.b16 %v1855
      %v1915 = vunpack.c.l.b16 %v1856
      %v1916 = vunpack.c.l.b16 %v1857
      %v1917 = vunpack.c.l.b16 %v1858
      %v1918 = vunpack.c.l.b16 %v1859
      %v1919 = vpack.c.b16 %v1904, %v1903
      %v1920 = vpack.c.b16 %v1906, %v1905
      %v1921 = vpack.c.b16 %v1908, %v1907
      %v1922 = vpack.c.b16 %v1910, %v1909
      %v1923 = vpack.c.b16 %v1912, %v1911
      %v1924 = vpack.c.b16 %v1914, %v1913
      %v1925 = vpack.c.b16 %v1916, %v1915
      %v1926 = vpack.c.b16 %v1918, %v1917
      %1935 = vmatprep.subr.bf16.mxu0 0
      %1936 = vmatpush1.bf16.msra.mxu0 %v1926
      %1937 = vmatprep.subr.bf16.mxu0 0
      %1938 = vmatpush1.bf16.msra.mxu0 %v1925
      %1939 = vmatprep.subr.bf16.mxu0 0
      %1940 = vmatpush1.bf16.msra.mxu0 %v1924
      %1941 = vmatprep.subr.bf16.mxu0 0
      %1942 = vmatpush1.bf16.msra.mxu0 %v1923
      %1943 = vmatprep.subr.bf16.mxu0 0
      %1944 = vmatpush1.bf16.msra.mxu0 %v1922
      %1945 = vmatprep.subr.bf16.mxu0 0
      %1946 = vmatpush1.bf16.msra.mxu0 %v1921
      %1947 = vmatprep.subr.bf16.mxu0 0
      %1948 = vmatpush1.bf16.msra.mxu0 %v1920
      %1949 = vmatprep.subr.bf16.mxu0 0
      %1950 = vmatpush1.bf16.msra.mxu0 %v1919
      %1951 = vmatprep.subr.bf16.mxu0 0
      %1952 = vmatpush2.bf16.msra.mxu0 0
      %1953 = vmatprep.subr.bf16.mxu0 0
      %1954 = vmatpush2.bf16.msra.mxu0 0
      %1955 = vmatprep.subr.bf16.mxu0 0
      %1956 = vmatpush2.bf16.msra.mxu0 0
      %1957 = vmatprep.subr.bf16.mxu0 0
      %1958 = vmatpush2.bf16.msra.mxu0 0
      %1959 = vmatprep.subr.bf16.mxu0 0
      %1960 = vmatpush2.bf16.msra.mxu0 0
      %1961 = vmatprep.subr.bf16.mxu0 0
      %1962 = vmatpush2.bf16.msra.mxu0 0
      %1963 = vmatprep.subr.bf16.mxu0 0
      %1964 = vmatpush2.bf16.msra.mxu0 0
      %1965 = vmatprep.subr.bf16.mxu0 0
      %1966 = vmatpush2.bf16.msra.mxu0 0
      %1967 = vmatprep.mubr.bf16.mxu0 0
      %1968 = vmatmul.mubr.bf16.gmra.mxu0 %v1883
      %v1969 = vpop.f32.mrf.mxu0
      %v1970 = vadd.f32 0.0, %v1969
      %v1971 = vpop.f32.mrf.mxu0
      %v1972 = vpop.f32.mrf.mxu0
      %v1973 = vadd.f32 0.0, %v1972
      %v1974 = vpop.f32.mrf.mxu0
      %1975 = vdwg.mxu0
      %v1992 = vunpack.c.l.b16 %v1827
      %v1993 = vunpack.c.l.b16 %v1828
      %v1994 = vunpack.c.l.b16 %v1829
      %v1995 = vunpack.c.l.b16 %v1830
      %v1996 = vunpack.c.l.b16 %v1831
      %v1997 = vunpack.c.l.b16 %v1832
      %v1998 = vunpack.c.l.b16 %v1833
      %v1999 = vunpack.c.l.b16 %v1834
      %v2000 = vunpack.c.l.b16 %v1835
      %v2001 = vunpack.c.l.b16 %v1836
      %v2002 = vunpack.c.l.b16 %v1837
      %v2003 = vunpack.c.l.b16 %v1838
      %v2004 = vunpack.c.l.b16 %v1839
      %v2005 = vunpack.c.l.b16 %v1840
      %v2006 = vunpack.c.l.b16 %v1841
      %v2007 = vunpack.c.l.b16 %v1842
      %v2008 = vpack.c.b16 %v1993, %v1992
      %v2009 = vpack.c.b16 %v1995, %v1994
      %v2010 = vpack.c.b16 %v1997, %v1996
      %v2011 = vpack.c.b16 %v1999, %v1998
      %v2012 = vpack.c.b16 %v2001, %v2000
      %v2013 = vpack.c.b16 %v2003, %v2002
      %v2014 = vpack.c.b16 %v2005, %v2004
      %v2015 = vpack.c.b16 %v2007, %v2006
      %2024 = vmatprep.subr.bf16.mxu0 0
      %2025 = vmatpush1.bf16.msra.mxu0 %v2015
      %2026 = vmatprep.subr.bf16.mxu0 0
      %2027 = vmatpush1.bf16.msra.mxu0 %v2014
      %2028 = vmatprep.subr.bf16.mxu0 0
      %2029 = vmatpush1.bf16.msra.mxu0 %v2013
      %2030 = vmatprep.subr.bf16.mxu0 0
      %2031 = vmatpush1.bf16.msra.mxu0 %v2012
      %2032 = vmatprep.subr.bf16.mxu0 0
      %2033 = vmatpush1.bf16.msra.mxu0 %v2011
      %2034 = vmatprep.subr.bf16.mxu0 0
      %2035 = vmatpush1.bf16.msra.mxu0 %v2010
      %2036 = vmatprep.subr.bf16.mxu0 0
      %2037 = vmatpush1.bf16.msra.mxu0 %v2009
      %2038 = vmatprep.subr.bf16.mxu0 0
      %2039 = vmatpush1.bf16.msra.mxu0 %v2008
      %2040 = vmatprep.subr.bf16.mxu0 0
      %2041 = vmatpush2.bf16.msra.mxu0 0
      %2042 = vmatprep.subr.bf16.mxu0 0
      %2043 = vmatpush2.bf16.msra.mxu0 0
      %2044 = vmatprep.subr.bf16.mxu0 0
      %2045 = vmatpush2.bf16.msra.mxu0 0
      %2046 = vmatprep.subr.bf16.mxu0 0
      %2047 = vmatpush2.bf16.msra.mxu0 0
      %2048 = vmatprep.subr.bf16.mxu0 0
      %2049 = vmatpush2.bf16.msra.mxu0 0
      %2050 = vmatprep.subr.bf16.mxu0 0
      %2051 = vmatpush2.bf16.msra.mxu0 0
      %2052 = vmatprep.subr.bf16.mxu0 0
      %2053 = vmatpush2.bf16.msra.mxu0 0
      %2054 = vmatprep.subr.bf16.mxu0 0
      %2055 = vmatpush2.bf16.msra.mxu0 0
      %2056 = vmatprep.mubr.bf16.mxu0 0
      %2057 = vmatmul.mubr.bf16.gmra.mxu0 %v1880
      %v2058 = vpop.f32.mrf.mxu0
      %v2059 = vadd.f32 %v1970, %v2058
      %v2060 = vpop.f32.mrf.mxu0
      %v2061 = vpop.f32.mrf.mxu0
      %v2062 = vadd.f32 %v1973, %v2061
      %v2063 = vpop.f32.mrf.mxu0
      %2064 = vdwg.mxu0
      %v2081 = vunpack.c.l.b16 %v1861
      %v2082 = vunpack.c.l.b16 %v1862
      %v2083 = vunpack.c.l.b16 %v1863
      %v2084 = vunpack.c.l.b16 %v1864
      %v2085 = vunpack.c.l.b16 %v1865
      %v2086 = vunpack.c.l.b16 %v1866
      %v2087 = vunpack.c.l.b16 %v1867
      %v2088 = vunpack.c.l.b16 %v1868
      %v2089 = vunpack.c.l.b16 %v1869
      %v2090 = vunpack.c.l.b16 %v1870
      %v2091 = vunpack.c.l.b16 %v1871
      %v2092 = vunpack.c.l.b16 %v1872
      %v2093 = vunpack.c.l.b16 %v1873
      %v2094 = vunpack.c.l.b16 %v1874
      %v2095 = vunpack.c.l.b16 %v1875
      %v2096 = vunpack.c.l.b16 %v1876
      %v2097 = vpack.c.b16 %v2082, %v2081
      %v2098 = vpack.c.b16 %v2084, %v2083
      %v2099 = vpack.c.b16 %v2086, %v2085
      %v2100 = vpack.c.b16 %v2088, %v2087
      %v2101 = vpack.c.b16 %v2090, %v2089
      %v2102 = vpack.c.b16 %v2092, %v2091
      %v2103 = vpack.c.b16 %v2094, %v2093
      %v2104 = vpack.c.b16 %v2096, %v2095
      %2113 = vmatprep.subr.bf16.mxu0 0
      %2114 = vmatpush1.bf16.msra.mxu0 %v2104
      %2115 = vmatprep.subr.bf16.mxu0 0
      %2116 = vmatpush1.bf16.msra.mxu0 %v2103
      %2117 = vmatprep.subr.bf16.mxu0 0
      %2118 = vmatpush1.bf16.msra.mxu0 %v2102
      %2119 = vmatprep.subr.bf16.mxu0 0
      %2120 = vmatpush1.bf16.msra.mxu0 %v2101
      %2121 = vmatprep.subr.bf16.mxu0 0
      %2122 = vmatpush1.bf16.msra.mxu0 %v2100
      %2123 = vmatprep.subr.bf16.mxu0 0
      %2124 = vmatpush1.bf16.msra.mxu0 %v2099
      %2125 = vmatprep.subr.bf16.mxu0 0
      %2126 = vmatpush1.bf16.msra.mxu0 %v2098
      %2127 = vmatprep.subr.bf16.mxu0 0
      %2128 = vmatpush1.bf16.msra.mxu0 %v2097
      %2129 = vmatprep.subr.bf16.mxu0 0
      %2130 = vmatpush2.bf16.msra.mxu0 0
      %2131 = vmatprep.subr.bf16.mxu0 0
      %2132 = vmatpush2.bf16.msra.mxu0 0
      %2133 = vmatprep.subr.bf16.mxu0 0
      %2134 = vmatpush2.bf16.msra.mxu0 0
      %2135 = vmatprep.subr.bf16.mxu0 0
      %2136 = vmatpush2.bf16.msra.mxu0 0
      %2137 = vmatprep.subr.bf16.mxu0 0
      %2138 = vmatpush2.bf16.msra.mxu0 0
      %2139 = vmatprep.subr.bf16.mxu0 0
      %2140 = vmatpush2.bf16.msra.mxu0 0
      %2141 = vmatprep.subr.bf16.mxu0 0
      %2142 = vmatpush2.bf16.msra.mxu0 0
      %2143 = vmatprep.subr.bf16.mxu0 0
      %2144 = vmatpush2.bf16.msra.mxu0 0
      %2145 = vmatprep.mubr.bf16.mxu0 0
      %2146 = vmatmul.mubr.bf16.gmra.mxu0 %v1886
      %v2147 = vpop.f32.mrf.mxu0
      %v2148 = vadd.f32 0.0, %v2147
      %v2149 = vpop.f32.mrf.mxu0
      %v2150 = vpop.f32.mrf.mxu0
      %v2151 = vadd.f32 0.0, %v2150
      %v2152 = vpop.f32.mrf.mxu0
      %2153 = vdwg.mxu0
      %v2154 = vadd.f32 %v2059, %v2148
      %v2155 = vadd.f32 %v2062, %v2151
      %v2156 = vlaneseq
      %v2157 = vshrl.u32 %v2156, 7
      %v2158 = vsub.s32 0, %v2157
      %v2159 = vrot.slane %v1877, %v2158
      %v2160 = vadd.f32 %v2154, %v2159
      %v2161 = vadd.f32 %v2155, %v2159
      %v2162 = vld [vmem:[#allocation2 + $0x1] sm:$0xff]
      %v2163 = vld [vmem:[#allocation2 + $0x9] sm:$0xff]
      %v2164 = vadd.f32 %v2162, %v2160
      %v2165 = vadd.f32 %v2163, %v2161
      %2166 = vst [vmem:[#allocation2 + $0x1] sm:$0xff] %v2164
      %2167 = vst [vmem:[#allocation2 + $0x9] sm:$0xff] %v2165
      %s2168 = scalar_lea.vmem %s4, 384
      %v2169 = vld [vmem:[%s2168] sm:$0xf]
      %v2170 = vld [vmem:[%s2168 + $0x4] sm:$0xf]
      %v2171 = vld [vmem:[%s2168 + $0x8] sm:$0xf]
      %v2172 = vld [vmem:[%s2168 + $0xc] sm:$0xf]
      %v2173 = vld [vmem:[%s2168 + $0x10] sm:$0xf]
      %v2174 = vld [vmem:[%s2168 + $0x14] sm:$0xf]
      %v2175 = vld [vmem:[%s2168 + $0x18] sm:$0xf]
      %v2176 = vld [vmem:[%s2168 + $0x1c] sm:$0xf]
      %v2177 = vld [vmem:[%s2168 + $0x20] sm:$0xf]
      %v2178 = vld [vmem:[%s2168 + $0x24] sm:$0xf]
      %v2179 = vld [vmem:[%s2168 + $0x28] sm:$0xf]
      %v2180 = vld [vmem:[%s2168 + $0x2c] sm:$0xf]
      %v2181 = vld [vmem:[%s2168 + $0x30] sm:$0xf]
      %v2182 = vld [vmem:[%s2168 + $0x34] sm:$0xf]
      %v2183 = vld [vmem:[%s2168 + $0x38] sm:$0xf]
      %v2184 = vld [vmem:[%s2168 + $0x3c] sm:$0xf]
      %s2185 = scalar_lea.vmem %s4, 448
      %v2186 = vld [vmem:[%s2185] sm:$0xf]
      %v2187 = vld [vmem:[%s2185 + $0x4] sm:$0xf]
      %v2188 = vld [vmem:[%s2185 + $0x8] sm:$0xf]
      %v2189 = vld [vmem:[%s2185 + $0xc] sm:$0xf]
      %v2190 = vld [vmem:[%s2185 + $0x10] sm:$0xf]
      %v2191 = vld [vmem:[%s2185 + $0x14] sm:$0xf]
      %v2192 = vld [vmem:[%s2185 + $0x18] sm:$0xf]
      %v2193 = vld [vmem:[%s2185 + $0x1c] sm:$0xf]
      %v2194 = vld [vmem:[%s2185 + $0x20] sm:$0xf]
      %v2195 = vld [vmem:[%s2185 + $0x24] sm:$0xf]
      %v2196 = vld [vmem:[%s2185 + $0x28] sm:$0xf]
      %v2197 = vld [vmem:[%s2185 + $0x2c] sm:$0xf]
      %v2198 = vld [vmem:[%s2185 + $0x30] sm:$0xf]
      %v2199 = vld [vmem:[%s2185 + $0x34] sm:$0xf]
      %v2200 = vld [vmem:[%s2185 + $0x38] sm:$0xf]
      %v2201 = vld [vmem:[%s2185 + $0x3c] sm:$0xf]
      %s2202 = scalar_lea.vmem %s4, 512
      %v2203 = vld [vmem:[%s2202] sm:$0xf]
      %v2204 = vld [vmem:[%s2202 + $0x4] sm:$0xf]
      %v2205 = vld [vmem:[%s2202 + $0x8] sm:$0xf]
      %v2206 = vld [vmem:[%s2202 + $0xc] sm:$0xf]
      %v2207 = vld [vmem:[%s2202 + $0x10] sm:$0xf]
      %v2208 = vld [vmem:[%s2202 + $0x14] sm:$0xf]
      %v2209 = vld [vmem:[%s2202 + $0x18] sm:$0xf]
      %v2210 = vld [vmem:[%s2202 + $0x1c] sm:$0xf]
      %v2211 = vld [vmem:[%s2202 + $0x20] sm:$0xf]
      %v2212 = vld [vmem:[%s2202 + $0x24] sm:$0xf]
      %v2213 = vld [vmem:[%s2202 + $0x28] sm:$0xf]
      %v2214 = vld [vmem:[%s2202 + $0x2c] sm:$0xf]
      %v2215 = vld [vmem:[%s2202 + $0x30] sm:$0xf]
      %v2216 = vld [vmem:[%s2202 + $0x34] sm:$0xf]
      %v2217 = vld [vmem:[%s2202 + $0x38] sm:$0xf]
      %v2218 = vld [vmem:[%s2202 + $0x3c] sm:$0xf]
      %v2219 = vld [vmem:[%s5 + $0x2] sm:$0x1]
      %v2220 = vld [vmem:[%s6 + $0x2] sm:$0x1]
      %v2221 = vld [vmem:[#allocation2] sm:$0xff]
      %v2222 = vld [vmem:[#allocation2 + $0x8] sm:$0xff]
      %v2223 = vpack.c.bf16 %v2222, %v2221
      %v2224 = vld [vmem:[#allocation2 + $0x1] sm:$0xff]
      %v2225 = vld [vmem:[#allocation2 + $0x9] sm:$0xff]
      %v2226 = vpack.c.bf16 %v2225, %v2224
      %v2227 = vld [vmem:[#allocation2 + $0x2] sm:$0xff]
      %v2228 = vld [vmem:[#allocation2 + $0xa] sm:$0xff]
      %v2229 = vpack.c.bf16 %v2228, %v2227
      %v2246 = vunpack.c.l.b16 %v2186
      %v2247 = vunpack.c.l.b16 %v2187
      %v2248 = vunpack.c.l.b16 %v2188
      %v2249 = vunpack.c.l.b16 %v2189
      %v2250 = vunpack.c.l.b16 %v2190
      %v2251 = vunpack.c.l.b16 %v2191
      %v2252 = vunpack.c.l.b16 %v2192
      %v2253 = vunpack.c.l.b16 %v2193
      %v2254 = vunpack.c.l.b16 %v2194
      %v2255 = vunpack.c.l.b16 %v2195
      %v2256 = vunpack.c.l.b16 %v2196
      %v2257 = vunpack.c.l.b16 %v2197
      %v2258 = vunpack.c.l.b16 %v2198
      %v2259 = vunpack.c.l.b16 %v2199
      %v2260 = vunpack.c.l.b16 %v2200
      %v2261 = vunpack.c.l.b16 %v2201
      %v2262 = vpack.c.b16 %v2247, %v2246
      %v2263 = vpack.c.b16 %v2249, %v2248
      %v2264 = vpack.c.b16 %v2251, %v2250
      %v2265 = vpack.c.b16 %v2253, %v2252
      %v2266 = vpack.c.b16 %v2255, %v2254
      %v2267 = vpack.c.b16 %v2257, %v2256
      %v2268 = vpack.c.b16 %v2259, %v2258
      %v2269 = vpack.c.b16 %v2261, %v2260
      %2278 = vmatprep.subr.bf16.mxu0 0
      %2279 = vmatpush1.bf16.msra.mxu0 %v2269
      %2280 = vmatprep.subr.bf16.mxu0 0
      %2281 = vmatpush1.bf16.msra.mxu0 %v2268
      %2282 = vmatprep.subr.bf16.mxu0 0
      %2283 = vmatpush1.bf16.msra.mxu0 %v2267
      %2284 = vmatprep.subr.bf16.mxu0 0
      %2285 = vmatpush1.bf16.msra.mxu0 %v2266
      %2286 = vmatprep.subr.bf16.mxu0 0
      %2287 = vmatpush1.bf16.msra.mxu0 %v2265
      %2288 = vmatprep.subr.bf16.mxu0 0
      %2289 = vmatpush1.bf16.msra.mxu0 %v2264
      %2290 = vmatprep.subr.bf16.mxu0 0
      %2291 = vmatpush1.bf16.msra.mxu0 %v2263
      %2292 = vmatprep.subr.bf16.mxu0 0
      %2293 = vmatpush1.bf16.msra.mxu0 %v2262
      %2294 = vmatprep.subr.bf16.mxu0 0
      %2295 = vmatpush2.bf16.msra.mxu0 0
      %2296 = vmatprep.subr.bf16.mxu0 0
      %2297 = vmatpush2.bf16.msra.mxu0 0
      %2298 = vmatprep.subr.bf16.mxu0 0
      %2299 = vmatpush2.bf16.msra.mxu0 0
      %2300 = vmatprep.subr.bf16.mxu0 0
      %2301 = vmatpush2.bf16.msra.mxu0 0
      %2302 = vmatprep.subr.bf16.mxu0 0
      %2303 = vmatpush2.bf16.msra.mxu0 0
      %2304 = vmatprep.subr.bf16.mxu0 0
      %2305 = vmatpush2.bf16.msra.mxu0 0
      %2306 = vmatprep.subr.bf16.mxu0 0
      %2307 = vmatpush2.bf16.msra.mxu0 0
      %2308 = vmatprep.subr.bf16.mxu0 0
      %2309 = vmatpush2.bf16.msra.mxu0 0
      %2310 = vmatprep.mubr.bf16.mxu0 0
      %2311 = vmatmul.mubr.bf16.gmra.mxu0 %v2226
      %v2312 = vpop.f32.mrf.mxu0
      %v2313 = vadd.f32 0.0, %v2312
      %v2314 = vpop.f32.mrf.mxu0
      %v2315 = vpop.f32.mrf.mxu0
      %v2316 = vadd.f32 0.0, %v2315
      %v2317 = vpop.f32.mrf.mxu0
      %2318 = vdwg.mxu0
      %v2335 = vunpack.c.l.b16 %v2169
      %v2336 = vunpack.c.l.b16 %v2170
      %v2337 = vunpack.c.l.b16 %v2171
      %v2338 = vunpack.c.l.b16 %v2172
      %v2339 = vunpack.c.l.b16 %v2173
      %v2340 = vunpack.c.l.b16 %v2174
      %v2341 = vunpack.c.l.b16 %v2175
      %v2342 = vunpack.c.l.b16 %v2176
      %v2343 = vunpack.c.l.b16 %v2177
      %v2344 = vunpack.c.l.b16 %v2178
      %v2345 = vunpack.c.l.b16 %v2179
      %v2346 = vunpack.c.l.b16 %v2180
      %v2347 = vunpack.c.l.b16 %v2181
      %v2348 = vunpack.c.l.b16 %v2182
      %v2349 = vunpack.c.l.b16 %v2183
      %v2350 = vunpack.c.l.b16 %v2184
      %v2351 = vpack.c.b16 %v2336, %v2335
      %v2352 = vpack.c.b16 %v2338, %v2337
      %v2353 = vpack.c.b16 %v2340, %v2339
      %v2354 = vpack.c.b16 %v2342, %v2341
      %v2355 = vpack.c.b16 %v2344, %v2343
      %v2356 = vpack.c.b16 %v2346, %v2345
      %v2357 = vpack.c.b16 %v2348, %v2347
      %v2358 = vpack.c.b16 %v2350, %v2349
      %2367 = vmatprep.subr.bf16.mxu0 0
      %2368 = vmatpush1.bf16.msra.mxu0 %v2358
      %2369 = vmatprep.subr.bf16.mxu0 0
      %2370 = vmatpush1.bf16.msra.mxu0 %v2357
      %2371 = vmatprep.subr.bf16.mxu0 0
      %2372 = vmatpush1.bf16.msra.mxu0 %v2356
      %2373 = vmatprep.subr.bf16.mxu0 0
      %2374 = vmatpush1.bf16.msra.mxu0 %v2355
      %2375 = vmatprep.subr.bf16.mxu0 0
      %2376 = vmatpush1.bf16.msra.mxu0 %v2354
      %2377 = vmatprep.subr.bf16.mxu0 0
      %2378 = vmatpush1.bf16.msra.mxu0 %v2353
      %2379 = vmatprep.subr.bf16.mxu0 0
      %2380 = vmatpush1.bf16.msra.mxu0 %v2352
      %2381 = vmatprep.subr.bf16.mxu0 0
      %2382 = vmatpush1.bf16.msra.mxu0 %v2351
      %2383 = vmatprep.subr.bf16.mxu0 0
      %2384 = vmatpush2.bf16.msra.mxu0 0
      %2385 = vmatprep.subr.bf16.mxu0 0
      %2386 = vmatpush2.bf16.msra.mxu0 0
      %2387 = vmatprep.subr.bf16.mxu0 0
      %2388 = vmatpush2.bf16.msra.mxu0 0
      %2389 = vmatprep.subr.bf16.mxu0 0
      %2390 = vmatpush2.bf16.msra.mxu0 0
      %2391 = vmatprep.subr.bf16.mxu0 0
      %2392 = vmatpush2.bf16.msra.mxu0 0
      %2393 = vmatprep.subr.bf16.mxu0 0
      %2394 = vmatpush2.bf16.msra.mxu0 0
      %2395 = vmatprep.subr.bf16.mxu0 0
      %2396 = vmatpush2.bf16.msra.mxu0 0
      %2397 = vmatprep.subr.bf16.mxu0 0
      %2398 = vmatpush2.bf16.msra.mxu0 0
      %2399 = vmatprep.mubr.bf16.mxu0 0
      %2400 = vmatmul.mubr.bf16.gmra.mxu0 %v2223
      %v2401 = vpop.f32.mrf.mxu0
      %v2402 = vadd.f32 %v2313, %v2401
      %v2403 = vpop.f32.mrf.mxu0
      %v2404 = vpop.f32.mrf.mxu0
      %v2405 = vadd.f32 %v2316, %v2404
      %v2406 = vpop.f32.mrf.mxu0
      %2407 = vdwg.mxu0
      %v2424 = vunpack.c.l.b16 %v2203
      %v2425 = vunpack.c.l.b16 %v2204
      %v2426 = vunpack.c.l.b16 %v2205
      %v2427 = vunpack.c.l.b16 %v2206
      %v2428 = vunpack.c.l.b16 %v2207
      %v2429 = vunpack.c.l.b16 %v2208
      %v2430 = vunpack.c.l.b16 %v2209
      %v2431 = vunpack.c.l.b16 %v2210
      %v2432 = vunpack.c.l.b16 %v2211
      %v2433 = vunpack.c.l.b16 %v2212
      %v2434 = vunpack.c.l.b16 %v2213
      %v2435 = vunpack.c.l.b16 %v2214
      %v2436 = vunpack.c.l.b16 %v2215
      %v2437 = vunpack.c.l.b16 %v2216
      %v2438 = vunpack.c.l.b16 %v2217
      %v2439 = vunpack.c.l.b16 %v2218
      %v2440 = vpack.c.b16 %v2425, %v2424
      %v2441 = vpack.c.b16 %v2427, %v2426
      %v2442 = vpack.c.b16 %v2429, %v2428
      %v2443 = vpack.c.b16 %v2431, %v2430
      %v2444 = vpack.c.b16 %v2433, %v2432
      %v2445 = vpack.c.b16 %v2435, %v2434
      %v2446 = vpack.c.b16 %v2437, %v2436
      %v2447 = vpack.c.b16 %v2439, %v2438
      %2456 = vmatprep.subr.bf16.mxu0 0
      %2457 = vmatpush1.bf16.msra.mxu0 %v2447
      %2458 = vmatprep.subr.bf16.mxu0 0
      %2459 = vmatpush1.bf16.msra.mxu0 %v2446
      %2460 = vmatprep.subr.bf16.mxu0 0
      %2461 = vmatpush1.bf16.msra.mxu0 %v2445
      %2462 = vmatprep.subr.bf16.mxu0 0
      %2463 = vmatpush1.bf16.msra.mxu0 %v2444
      %2464 = vmatprep.subr.bf16.mxu0 0
      %2465 = vmatpush1.bf16.msra.mxu0 %v2443
      %2466 = vmatprep.subr.bf16.mxu0 0
      %2467 = vmatpush1.bf16.msra.mxu0 %v2442
      %2468 = vmatprep.subr.bf16.mxu0 0
      %2469 = vmatpush1.bf16.msra.mxu0 %v2441
      %2470 = vmatprep.subr.bf16.mxu0 0
      %2471 = vmatpush1.bf16.msra.mxu0 %v2440
      %2472 = vmatprep.subr.bf16.mxu0 0
      %2473 = vmatpush2.bf16.msra.mxu0 0
      %2474 = vmatprep.subr.bf16.mxu0 0
      %2475 = vmatpush2.bf16.msra.mxu0 0
      %2476 = vmatprep.subr.bf16.mxu0 0
      %2477 = vmatpush2.bf16.msra.mxu0 0
      %2478 = vmatprep.subr.bf16.mxu0 0
      %2479 = vmatpush2.bf16.msra.mxu0 0
      %2480 = vmatprep.subr.bf16.mxu0 0
      %2481 = vmatpush2.bf16.msra.mxu0 0
      %2482 = vmatprep.subr.bf16.mxu0 0
      %2483 = vmatpush2.bf16.msra.mxu0 0
      %2484 = vmatprep.subr.bf16.mxu0 0
      %2485 = vmatpush2.bf16.msra.mxu0 0
      %2486 = vmatprep.subr.bf16.mxu0 0
      %2487 = vmatpush2.bf16.msra.mxu0 0
      %2488 = vmatprep.mubr.bf16.mxu0 0
      %2489 = vmatmul.mubr.bf16.gmra.mxu0 %v2229
      %v2490 = vpop.f32.mrf.mxu0
      %v2491 = vadd.f32 0.0, %v2490
      %v2492 = vpop.f32.mrf.mxu0
      %v2493 = vpop.f32.mrf.mxu0
      %v2494 = vadd.f32 0.0, %v2493
      %v2495 = vpop.f32.mrf.mxu0
      %2496 = vdwg.mxu0
      %v2497 = vadd.f32 %v2402, %v2491
      %v2498 = vadd.f32 %v2405, %v2494
      %v2499 = vlaneseq
      %v2500 = vshrl.u32 %v2499, 7
      %v2501 = vsub.s32 0, %v2500
      %v2502 = vrot.slane %v2219, %v2501
      %v2503 = vadd.f32 %v2497, %v2502
      %v2504 = vadd.f32 %v2498, %v2502
      %vm2505 = vcmp.ge.f32.partialorder %v2503, 0.0
      %vm2506 = vcmp.ge.f32.partialorder %v2504, 0.0
      %v2507 = vlaneseq
      %v2508 = vshrl.u32 %v2507, 7
      %v2509 = vsub.s32 0, %v2508
      %v2510 = vrot.slane %v2220, %v2509
      %v2511 = vmul.f32 %v2510, %v2503
      %v2512 = vmul.f32 %v2510, %v2504
      %v2513 = vsel %vm2505, %v2503, %v2511
      %v2514 = vsel %vm2506, %v2504, %v2512
      %2515 = vst [vmem:[#allocation3 + $0x1] sm:$0xff] %v2513
      %2516 = vst [vmem:[#allocation3 + $0x9] sm:$0xff] %v2514
      %s2517 = scalar_lea.vmem %s7, 384
      %v2518 = vld [vmem:[%s2517] sm:$0xf]
      %v2519 = vld [vmem:[%s2517 + $0x4] sm:$0xf]
      %v2520 = vld [vmem:[%s2517 + $0x8] sm:$0xf]
      %v2521 = vld [vmem:[%s2517 + $0xc] sm:$0xf]
      %v2522 = vld [vmem:[%s2517 + $0x10] sm:$0xf]
      %v2523 = vld [vmem:[%s2517 + $0x14] sm:$0xf]
      %v2524 = vld [vmem:[%s2517 + $0x18] sm:$0xf]
      %v2525 = vld [vmem:[%s2517 + $0x1c] sm:$0xf]
      %v2526 = vld [vmem:[%s2517 + $0x20] sm:$0xf]
      %v2527 = vld [vmem:[%s2517 + $0x24] sm:$0xf]
      %v2528 = vld [vmem:[%s2517 + $0x28] sm:$0xf]
      %v2529 = vld [vmem:[%s2517 + $0x2c] sm:$0xf]
      %v2530 = vld [vmem:[%s2517 + $0x30] sm:$0xf]
      %v2531 = vld [vmem:[%s2517 + $0x34] sm:$0xf]
      %v2532 = vld [vmem:[%s2517 + $0x38] sm:$0xf]
      %v2533 = vld [vmem:[%s2517 + $0x3c] sm:$0xf]
      %s2534 = scalar_lea.vmem %s7, 448
      %v2535 = vld [vmem:[%s2534] sm:$0xf]
      %v2536 = vld [vmem:[%s2534 + $0x4] sm:$0xf]
      %v2537 = vld [vmem:[%s2534 + $0x8] sm:$0xf]
      %v2538 = vld [vmem:[%s2534 + $0xc] sm:$0xf]
      %v2539 = vld [vmem:[%s2534 + $0x10] sm:$0xf]
      %v2540 = vld [vmem:[%s2534 + $0x14] sm:$0xf]
      %v2541 = vld [vmem:[%s2534 + $0x18] sm:$0xf]
      %v2542 = vld [vmem:[%s2534 + $0x1c] sm:$0xf]
      %v2543 = vld [vmem:[%s2534 + $0x20] sm:$0xf]
      %v2544 = vld [vmem:[%s2534 + $0x24] sm:$0xf]
      %v2545 = vld [vmem:[%s2534 + $0x28] sm:$0xf]
      %v2546 = vld [vmem:[%s2534 + $0x2c] sm:$0xf]
      %v2547 = vld [vmem:[%s2534 + $0x30] sm:$0xf]
      %v2548 = vld [vmem:[%s2534 + $0x34] sm:$0xf]
      %v2549 = vld [vmem:[%s2534 + $0x38] sm:$0xf]
      %v2550 = vld [vmem:[%s2534 + $0x3c] sm:$0xf]
      %s2551 = scalar_lea.vmem %s7, 512
      %v2552 = vld [vmem:[%s2551] sm:$0xf]
      %v2553 = vld [vmem:[%s2551 + $0x4] sm:$0xf]
      %v2554 = vld [vmem:[%s2551 + $0x8] sm:$0xf]
      %v2555 = vld [vmem:[%s2551 + $0xc] sm:$0xf]
      %v2556 = vld [vmem:[%s2551 + $0x10] sm:$0xf]
      %v2557 = vld [vmem:[%s2551 + $0x14] sm:$0xf]
      %v2558 = vld [vmem:[%s2551 + $0x18] sm:$0xf]
      %v2559 = vld [vmem:[%s2551 + $0x1c] sm:$0xf]
      %v2560 = vld [vmem:[%s2551 + $0x20] sm:$0xf]
      %v2561 = vld [vmem:[%s2551 + $0x24] sm:$0xf]
      %v2562 = vld [vmem:[%s2551 + $0x28] sm:$0xf]
      %v2563 = vld [vmem:[%s2551 + $0x2c] sm:$0xf]
      %v2564 = vld [vmem:[%s2551 + $0x30] sm:$0xf]
      %v2565 = vld [vmem:[%s2551 + $0x34] sm:$0xf]
      %v2566 = vld [vmem:[%s2551 + $0x38] sm:$0xf]
      %v2567 = vld [vmem:[%s2551 + $0x3c] sm:$0xf]
      %v2568 = vld [vmem:[%s8 + $0x2] sm:$0x1]
      %v2569 = vld [vmem:[#allocation3] sm:$0xff]
      %v2570 = vld [vmem:[#allocation3 + $0x8] sm:$0xff]
      %v2571 = vpack.c.bf16 %v2570, %v2569
      %v2572 = vld [vmem:[#allocation3 + $0x1] sm:$0xff]
      %v2573 = vld [vmem:[#allocation3 + $0x9] sm:$0xff]
      %v2574 = vpack.c.bf16 %v2573, %v2572
      %v2575 = vld [vmem:[#allocation3 + $0x2] sm:$0xff]
      %v2576 = vld [vmem:[#allocation3 + $0xa] sm:$0xff]
      %v2577 = vpack.c.bf16 %v2576, %v2575
      %v2594 = vunpack.c.l.b16 %v2535
      %v2595 = vunpack.c.l.b16 %v2536
      %v2596 = vunpack.c.l.b16 %v2537
      %v2597 = vunpack.c.l.b16 %v2538
      %v2598 = vunpack.c.l.b16 %v2539
      %v2599 = vunpack.c.l.b16 %v2540
      %v2600 = vunpack.c.l.b16 %v2541
      %v2601 = vunpack.c.l.b16 %v2542
      %v2602 = vunpack.c.l.b16 %v2543
      %v2603 = vunpack.c.l.b16 %v2544
      %v2604 = vunpack.c.l.b16 %v2545
      %v2605 = vunpack.c.l.b16 %v2546
      %v2606 = vunpack.c.l.b16 %v2547
      %v2607 = vunpack.c.l.b16 %v2548
      %v2608 = vunpack.c.l.b16 %v2549
      %v2609 = vunpack.c.l.b16 %v2550
      %v2610 = vpack.c.b16 %v2595, %v2594
      %v2611 = vpack.c.b16 %v2597, %v2596
      %v2612 = vpack.c.b16 %v2599, %v2598
      %v2613 = vpack.c.b16 %v2601, %v2600
      %v2614 = vpack.c.b16 %v2603, %v2602
      %v2615 = vpack.c.b16 %v2605, %v2604
      %v2616 = vpack.c.b16 %v2607, %v2606
      %v2617 = vpack.c.b16 %v2609, %v2608
      %2626 = vmatprep.subr.bf16.mxu0 0
      %2627 = vmatpush1.bf16.msra.mxu0 %v2617
      %2628 = vmatprep.subr.bf16.mxu0 0
      %2629 = vmatpush1.bf16.msra.mxu0 %v2616
      %2630 = vmatprep.subr.bf16.mxu0 0
      %2631 = vmatpush1.bf16.msra.mxu0 %v2615
      %2632 = vmatprep.subr.bf16.mxu0 0
      %2633 = vmatpush1.bf16.msra.mxu0 %v2614
      %2634 = vmatprep.subr.bf16.mxu0 0
      %2635 = vmatpush1.bf16.msra.mxu0 %v2613
      %2636 = vmatprep.subr.bf16.mxu0 0
      %2637 = vmatpush1.bf16.msra.mxu0 %v2612
      %2638 = vmatprep.subr.bf16.mxu0 0
      %2639 = vmatpush1.bf16.msra.mxu0 %v2611
      %2640 = vmatprep.subr.bf16.mxu0 0
      %2641 = vmatpush1.bf16.msra.mxu0 %v2610
      %2642 = vmatprep.subr.bf16.mxu0 0
      %2643 = vmatpush2.bf16.msra.mxu0 0
      %2644 = vmatprep.subr.bf16.mxu0 0
      %2645 = vmatpush2.bf16.msra.mxu0 0
      %2646 = vmatprep.subr.bf16.mxu0 0
      %2647 = vmatpush2.bf16.msra.mxu0 0
      %2648 = vmatprep.subr.bf16.mxu0 0
      %2649 = vmatpush2.bf16.msra.mxu0 0
      %2650 = vmatprep.subr.bf16.mxu0 0
      %2651 = vmatpush2.bf16.msra.mxu0 0
      %2652 = vmatprep.subr.bf16.mxu0 0
      %2653 = vmatpush2.bf16.msra.mxu0 0
      %2654 = vmatprep.subr.bf16.mxu0 0
      %2655 = vmatpush2.bf16.msra.mxu0 0
      %2656 = vmatprep.subr.bf16.mxu0 0
      %2657 = vmatpush2.bf16.msra.mxu0 0
      %2658 = vmatprep.mubr.bf16.mxu0 0
      %2659 = vmatmul.mubr.bf16.gmra.mxu0 %v2574
      %v2660 = vpop.f32.mrf.mxu0
      %v2661 = vadd.f32 0.0, %v2660
      %v2662 = vpop.f32.mrf.mxu0
      %v2663 = vpop.f32.mrf.mxu0
      %v2664 = vadd.f32 0.0, %v2663
      %v2665 = vpop.f32.mrf.mxu0
      %2666 = vdwg.mxu0
      %v2683 = vunpack.c.l.b16 %v2518
      %v2684 = vunpack.c.l.b16 %v2519
      %v2685 = vunpack.c.l.b16 %v2520
      %v2686 = vunpack.c.l.b16 %v2521
      %v2687 = vunpack.c.l.b16 %v2522
      %v2688 = vunpack.c.l.b16 %v2523
      %v2689 = vunpack.c.l.b16 %v2524
      %v2690 = vunpack.c.l.b16 %v2525
      %v2691 = vunpack.c.l.b16 %v2526
      %v2692 = vunpack.c.l.b16 %v2527
      %v2693 = vunpack.c.l.b16 %v2528
      %v2694 = vunpack.c.l.b16 %v2529
      %v2695 = vunpack.c.l.b16 %v2530
      %v2696 = vunpack.c.l.b16 %v2531
      %v2697 = vunpack.c.l.b16 %v2532
      %v2698 = vunpack.c.l.b16 %v2533
      %v2699 = vpack.c.b16 %v2684, %v2683
      %v2700 = vpack.c.b16 %v2686, %v2685
      %v2701 = vpack.c.b16 %v2688, %v2687
      %v2702 = vpack.c.b16 %v2690, %v2689
      %v2703 = vpack.c.b16 %v2692, %v2691
      %v2704 = vpack.c.b16 %v2694, %v2693
      %v2705 = vpack.c.b16 %v2696, %v2695
      %v2706 = vpack.c.b16 %v2698, %v2697
      %2715 = vmatprep.subr.bf16.mxu0 0
      %2716 = vmatpush1.bf16.msra.mxu0 %v2706
      %2717 = vmatprep.subr.bf16.mxu0 0
      %2718 = vmatpush1.bf16.msra.mxu0 %v2705
      %2719 = vmatprep.subr.bf16.mxu0 0
      %2720 = vmatpush1.bf16.msra.mxu0 %v2704
      %2721 = vmatprep.subr.bf16.mxu0 0
      %2722 = vmatpush1.bf16.msra.mxu0 %v2703
      %2723 = vmatprep.subr.bf16.mxu0 0
      %2724 = vmatpush1.bf16.msra.mxu0 %v2702
      %2725 = vmatprep.subr.bf16.mxu0 0
      %2726 = vmatpush1.bf16.msra.mxu0 %v2701
      %2727 = vmatprep.subr.bf16.mxu0 0
      %2728 = vmatpush1.bf16.msra.mxu0 %v2700
      %2729 = vmatprep.subr.bf16.mxu0 0
      %2730 = vmatpush1.bf16.msra.mxu0 %v2699
      %2731 = vmatprep.subr.bf16.mxu0 0
      %2732 = vmatpush2.bf16.msra.mxu0 0
      %2733 = vmatprep.subr.bf16.mxu0 0
      %2734 = vmatpush2.bf16.msra.mxu0 0
      %2735 = vmatprep.subr.bf16.mxu0 0
      %2736 = vmatpush2.bf16.msra.mxu0 0
      %2737 = vmatprep.subr.bf16.mxu0 0
      %2738 = vmatpush2.bf16.msra.mxu0 0
      %2739 = vmatprep.subr.bf16.mxu0 0
      %2740 = vmatpush2.bf16.msra.mxu0 0
      %2741 = vmatprep.subr.bf16.mxu0 0
      %2742 = vmatpush2.bf16.msra.mxu0 0
      %2743 = vmatprep.subr.bf16.mxu0 0
      %2744 = vmatpush2.bf16.msra.mxu0 0
      %2745 = vmatprep.subr.bf16.mxu0 0
      %2746 = vmatpush2.bf16.msra.mxu0 0
      %2747 = vmatprep.mubr.bf16.mxu0 0
      %2748 = vmatmul.mubr.bf16.gmra.mxu0 %v2571
      %v2749 = vpop.f32.mrf.mxu0
      %v2750 = vadd.f32 %v2661, %v2749
      %v2751 = vpop.f32.mrf.mxu0
      %v2752 = vpop.f32.mrf.mxu0
      %v2753 = vadd.f32 %v2664, %v2752
      %v2754 = vpop.f32.mrf.mxu0
      %2755 = vdwg.mxu0
      %v2772 = vunpack.c.l.b16 %v2552
      %v2773 = vunpack.c.l.b16 %v2553
      %v2774 = vunpack.c.l.b16 %v2554
      %v2775 = vunpack.c.l.b16 %v2555
      %v2776 = vunpack.c.l.b16 %v2556
      %v2777 = vunpack.c.l.b16 %v2557
      %v2778 = vunpack.c.l.b16 %v2558
      %v2779 = vunpack.c.l.b16 %v2559
      %v2780 = vunpack.c.l.b16 %v2560
      %v2781 = vunpack.c.l.b16 %v2561
      %v2782 = vunpack.c.l.b16 %v2562
      %v2783 = vunpack.c.l.b16 %v2563
      %v2784 = vunpack.c.l.b16 %v2564
      %v2785 = vunpack.c.l.b16 %v2565
      %v2786 = vunpack.c.l.b16 %v2566
      %v2787 = vunpack.c.l.b16 %v2567
      %v2788 = vpack.c.b16 %v2773, %v2772
      %v2789 = vpack.c.b16 %v2775, %v2774
      %v2790 = vpack.c.b16 %v2777, %v2776
      %v2791 = vpack.c.b16 %v2779, %v2778
      %v2792 = vpack.c.b16 %v2781, %v2780
      %v2793 = vpack.c.b16 %v2783, %v2782
      %v2794 = vpack.c.b16 %v2785, %v2784
      %v2795 = vpack.c.b16 %v2787, %v2786
      %2804 = vmatprep.subr.bf16.mxu0 0
      %2805 = vmatpush1.bf16.msra.mxu0 %v2795
      %2806 = vmatprep.subr.bf16.mxu0 0
      %2807 = vmatpush1.bf16.msra.mxu0 %v2794
      %2808 = vmatprep.subr.bf16.mxu0 0
      %2809 = vmatpush1.bf16.msra.mxu0 %v2793
      %2810 = vmatprep.subr.bf16.mxu0 0
      %2811 = vmatpush1.bf16.msra.mxu0 %v2792
      %2812 = vmatprep.subr.bf16.mxu0 0
      %2813 = vmatpush1.bf16.msra.mxu0 %v2791
      %2814 = vmatprep.subr.bf16.mxu0 0
      %2815 = vmatpush1.bf16.msra.mxu0 %v2790
      %2816 = vmatprep.subr.bf16.mxu0 0
      %2817 = vmatpush1.bf16.msra.mxu0 %v2789
      %2818 = vmatprep.subr.bf16.mxu0 0
      %2819 = vmatpush1.bf16.msra.mxu0 %v2788
      %2820 = vmatprep.subr.bf16.mxu0 0
      %2821 = vmatpush2.bf16.msra.mxu0 0
      %2822 = vmatprep.subr.bf16.mxu0 0
      %2823 = vmatpush2.bf16.msra.mxu0 0
      %2824 = vmatprep.subr.bf16.mxu0 0
      %2825 = vmatpush2.bf16.msra.mxu0 0
      %2826 = vmatprep.subr.bf16.mxu0 0
      %2827 = vmatpush2.bf16.msra.mxu0 0
      %2828 = vmatprep.subr.bf16.mxu0 0
      %2829 = vmatpush2.bf16.msra.mxu0 0
      %2830 = vmatprep.subr.bf16.mxu0 0
      %2831 = vmatpush2.bf16.msra.mxu0 0
      %2832 = vmatprep.subr.bf16.mxu0 0
      %2833 = vmatpush2.bf16.msra.mxu0 0
      %2834 = vmatprep.subr.bf16.mxu0 0
      %2835 = vmatpush2.bf16.msra.mxu0 0
      %2836 = vmatprep.mubr.bf16.mxu0 0
      %2837 = vmatmul.mubr.bf16.gmra.mxu0 %v2577
      %v2838 = vpop.f32.mrf.mxu0
      %v2839 = vadd.f32 0.0, %v2838
      %v2840 = vpop.f32.mrf.mxu0
      %v2841 = vpop.f32.mrf.mxu0
      %v2842 = vadd.f32 0.0, %v2841
      %v2843 = vpop.f32.mrf.mxu0
      %2844 = vdwg.mxu0
      %v2845 = vadd.f32 %v2750, %v2839
      %v2846 = vadd.f32 %v2753, %v2842
      %v2847 = vlaneseq
      %v2848 = vshrl.u32 %v2847, 7
      %v2849 = vsub.s32 0, %v2848
      %v2850 = vrot.slane %v2568, %v2849
      %v2851 = vadd.f32 %v2845, %v2850
      %v2852 = vadd.f32 %v2846, %v2850
      %v2853 = vld [vmem:[#allocation2 + $0x1] sm:$0xff]
      %v2854 = vld [vmem:[#allocation2 + $0x9] sm:$0xff]
      %v2855 = vadd.f32 %v2853, %v2851
      %v2856 = vadd.f32 %v2854, %v2852
      %2857 = vst [vmem:[#allocation2 + $0x1] sm:$0xff] %v2855
      %2858 = vst [vmem:[#allocation2 + $0x9] sm:$0xff] %v2856
      %v2859 = vld [vmem:[#allocation2 + $0x1] sm:$0xff]
      %v2860 = vld [vmem:[#allocation2 + $0x9] sm:$0xff]
      %2861 = vst [vmem:[%s421] sm:$0xff] %v2859
      %2862 = vst [vmem:[%s421 + $0x8] sm:$0xff] %v2860
      %v2863 = vld [vmem:[%s9] sm:$0xf]
      %v2864 = vld [vmem:[%s9 + $0x4] sm:$0xf]
      %v2865 = vld [vmem:[%s9 + $0x8] sm:$0xf]
      %v2866 = vld [vmem:[%s9 + $0xc] sm:$0xf]
      %v2867 = vld [vmem:[%s9 + $0x10] sm:$0xf]
      %v2868 = vld [vmem:[%s9 + $0x14] sm:$0xf]
      %v2869 = vld [vmem:[%s9 + $0x18] sm:$0xf]
      %v2870 = vld [vmem:[%s9 + $0x1c] sm:$0xf]
      %v2871 = vld [vmem:[%s9 + $0x20] sm:$0xf]
      %v2872 = vld [vmem:[%s9 + $0x24] sm:$0xf]
      %v2873 = vld [vmem:[%s9 + $0x28] sm:$0xf]
      %v2874 = vld [vmem:[%s9 + $0x2c] sm:$0xf]
      %v2875 = vld [vmem:[%s9 + $0x30] sm:$0xf]
      %v2876 = vld [vmem:[%s9 + $0x34] sm:$0xf]
      %v2877 = vld [vmem:[%s9 + $0x38] sm:$0xf]
      %v2878 = vld [vmem:[%s9 + $0x3c] sm:$0xf]
      %s2879 = scalar_lea.vmem %s9, 64
      %v2880 = vld [vmem:[%s2879] sm:$0xf]
      %v2881 = vld [vmem:[%s2879 + $0x4] sm:$0xf]
      %v2882 = vld [vmem:[%s2879 + $0x8] sm:$0xf]
      %v2883 = vld [vmem:[%s2879 + $0xc] sm:$0xf]
      %v2884 = vld [vmem:[%s2879 + $0x10] sm:$0xf]
      %v2885 = vld [vmem:[%s2879 + $0x14] sm:$0xf]
      %v2886 = vld [vmem:[%s2879 + $0x18] sm:$0xf]
      %v2887 = vld [vmem:[%s2879 + $0x1c] sm:$0xf]
      %v2888 = vld [vmem:[%s2879 + $0x20] sm:$0xf]
      %v2889 = vld [vmem:[%s2879 + $0x24] sm:$0xf]
      %v2890 = vld [vmem:[%s2879 + $0x28] sm:$0xf]
      %v2891 = vld [vmem:[%s2879 + $0x2c] sm:$0xf]
      %v2892 = vld [vmem:[%s2879 + $0x30] sm:$0xf]
      %v2893 = vld [vmem:[%s2879 + $0x34] sm:$0xf]
      %v2894 = vld [vmem:[%s2879 + $0x38] sm:$0xf]
      %v2895 = vld [vmem:[%s2879 + $0x3c] sm:$0xf]
      %s2896 = scalar_lea.vmem %s9, 128
      %v2897 = vld [vmem:[%s2896] sm:$0xf]
      %v2898 = vld [vmem:[%s2896 + $0x4] sm:$0xf]
      %v2899 = vld [vmem:[%s2896 + $0x8] sm:$0xf]
      %v2900 = vld [vmem:[%s2896 + $0xc] sm:$0xf]
      %v2901 = vld [vmem:[%s2896 + $0x10] sm:$0xf]
      %v2902 = vld [vmem:[%s2896 + $0x14] sm:$0xf]
      %v2903 = vld [vmem:[%s2896 + $0x18] sm:$0xf]
      %v2904 = vld [vmem:[%s2896 + $0x1c] sm:$0xf]
      %v2905 = vld [vmem:[%s2896 + $0x20] sm:$0xf]
      %v2906 = vld [vmem:[%s2896 + $0x24] sm:$0xf]
      %v2907 = vld [vmem:[%s2896 + $0x28] sm:$0xf]
      %v2908 = vld [vmem:[%s2896 + $0x2c] sm:$0xf]
      %v2909 = vld [vmem:[%s2896 + $0x30] sm:$0xf]
      %v2910 = vld [vmem:[%s2896 + $0x34] sm:$0xf]
      %v2911 = vld [vmem:[%s2896 + $0x38] sm:$0xf]
      %v2912 = vld [vmem:[%s2896 + $0x3c] sm:$0xf]
      %v2913 = vld [vmem:[%s10] sm:$0x1]
      %v2914 = vld [vmem:[#allocation2] sm:$0xff]
      %v2915 = vld [vmem:[#allocation2 + $0x8] sm:$0xff]
      %v2916 = vpack.c.bf16 %v2915, %v2914
      %v2917 = vld [vmem:[#allocation2 + $0x1] sm:$0xff]
      %v2918 = vld [vmem:[#allocation2 + $0x9] sm:$0xff]
      %v2919 = vpack.c.bf16 %v2918, %v2917
      %v2920 = vld [vmem:[#allocation2 + $0x2] sm:$0xff]
      %v2921 = vld [vmem:[#allocation2 + $0xa] sm:$0xff]
      %v2922 = vpack.c.bf16 %v2921, %v2920
      %v2939 = vunpack.c.l.b16 %v2880
      %v2940 = vunpack.c.l.b16 %v2881
      %v2941 = vunpack.c.l.b16 %v2882
      %v2942 = vunpack.c.l.b16 %v2883
      %v2943 = vunpack.c.l.b16 %v2884
      %v2944 = vunpack.c.l.b16 %v2885
      %v2945 = vunpack.c.l.b16 %v2886
      %v2946 = vunpack.c.l.b16 %v2887
      %v2947 = vunpack.c.l.b16 %v2888
      %v2948 = vunpack.c.l.b16 %v2889
      %v2949 = vunpack.c.l.b16 %v2890
      %v2950 = vunpack.c.l.b16 %v2891
      %v2951 = vunpack.c.l.b16 %v2892
      %v2952 = vunpack.c.l.b16 %v2893
      %v2953 = vunpack.c.l.b16 %v2894
      %v2954 = vunpack.c.l.b16 %v2895
      %v2955 = vpack.c.b16 %v2940, %v2939
      %v2956 = vpack.c.b16 %v2942, %v2941
      %v2957 = vpack.c.b16 %v2944, %v2943
      %v2958 = vpack.c.b16 %v2946, %v2945
      %v2959 = vpack.c.b16 %v2948, %v2947
      %v2960 = vpack.c.b16 %v2950, %v2949
      %v2961 = vpack.c.b16 %v2952, %v2951
      %v2962 = vpack.c.b16 %v2954, %v2953
      %2971 = vmatprep.subr.bf16.mxu0 0
      %2972 = vmatpush1.bf16.msra.mxu0 %v2962
      %2973 = vmatprep.subr.bf16.mxu0 0
      %2974 = vmatpush1.bf16.msra.mxu0 %v2961
      %2975 = vmatprep.subr.bf16.mxu0 0
      %2976 = vmatpush1.bf16.msra.mxu0 %v2960
      %2977 = vmatprep.subr.bf16.mxu0 0
      %2978 = vmatpush1.bf16.msra.mxu0 %v2959
      %2979 = vmatprep.subr.bf16.mxu0 0
      %2980 = vmatpush1.bf16.msra.mxu0 %v2958
      %2981 = vmatprep.subr.bf16.mxu0 0
      %2982 = vmatpush1.bf16.msra.mxu0 %v2957
      %2983 = vmatprep.subr.bf16.mxu0 0
      %2984 = vmatpush1.bf16.msra.mxu0 %v2956
      %2985 = vmatprep.subr.bf16.mxu0 0
      %2986 = vmatpush1.bf16.msra.mxu0 %v2955
      %2987 = vmatprep.subr.bf16.mxu0 0
      %2988 = vmatpush2.bf16.msra.mxu0 0
      %2989 = vmatprep.subr.bf16.mxu0 0
      %2990 = vmatpush2.bf16.msra.mxu0 0
      %2991 = vmatprep.subr.bf16.mxu0 0
      %2992 = vmatpush2.bf16.msra.mxu0 0
      %2993 = vmatprep.subr.bf16.mxu0 0
      %2994 = vmatpush2.bf16.msra.mxu0 0
      %2995 = vmatprep.subr.bf16.mxu0 0
      %2996 = vmatpush2.bf16.msra.mxu0 0
      %2997 = vmatprep.subr.bf16.mxu0 0
      %2998 = vmatpush2.bf16.msra.mxu0 0
      %2999 = vmatprep.subr.bf16.mxu0 0
      %3000 = vmatpush2.bf16.msra.mxu0 0
      %3001 = vmatprep.subr.bf16.mxu0 0
      %3002 = vmatpush2.bf16.msra.mxu0 0
      %3003 = vmatprep.mubr.bf16.mxu0 0
      %3004 = vmatmul.mubr.bf16.gmra.mxu0 %v2919
      %v3005 = vpop.f32.mrf.mxu0
      %v3006 = vadd.f32 0.0, %v3005
      %v3007 = vpop.f32.mrf.mxu0
      %v3008 = vpop.f32.mrf.mxu0
      %v3009 = vadd.f32 0.0, %v3008
      %v3010 = vpop.f32.mrf.mxu0
      %3011 = vdwg.mxu0
      %v3028 = vunpack.c.l.b16 %v2863
      %v3029 = vunpack.c.l.b16 %v2864
      %v3030 = vunpack.c.l.b16 %v2865
      %v3031 = vunpack.c.l.b16 %v2866
      %v3032 = vunpack.c.l.b16 %v2867
      %v3033 = vunpack.c.l.b16 %v2868
      %v3034 = vunpack.c.l.b16 %v2869
      %v3035 = vunpack.c.l.b16 %v2870
      %v3036 = vunpack.c.l.b16 %v2871
      %v3037 = vunpack.c.l.b16 %v2872
      %v3038 = vunpack.c.l.b16 %v2873
      %v3039 = vunpack.c.l.b16 %v2874
      %v3040 = vunpack.c.l.b16 %v2875
      %v3041 = vunpack.c.l.b16 %v2876
      %v3042 = vunpack.c.l.b16 %v2877
      %v3043 = vunpack.c.l.b16 %v2878
      %v3044 = vpack.c.b16 %v3029, %v3028
      %v3045 = vpack.c.b16 %v3031, %v3030
      %v3046 = vpack.c.b16 %v3033, %v3032
      %v3047 = vpack.c.b16 %v3035, %v3034
      %v3048 = vpack.c.b16 %v3037, %v3036
      %v3049 = vpack.c.b16 %v3039, %v3038
      %v3050 = vpack.c.b16 %v3041, %v3040
      %v3051 = vpack.c.b16 %v3043, %v3042
      %3060 = vmatprep.subr.bf16.mxu0 0
      %3061 = vmatpush1.bf16.msra.mxu0 %v3051
      %3062 = vmatprep.subr.bf16.mxu0 0
      %3063 = vmatpush1.bf16.msra.mxu0 %v3050
      %3064 = vmatprep.subr.bf16.mxu0 0
      %3065 = vmatpush1.bf16.msra.mxu0 %v3049
      %3066 = vmatprep.subr.bf16.mxu0 0
      %3067 = vmatpush1.bf16.msra.mxu0 %v3048
      %3068 = vmatprep.subr.bf16.mxu0 0
      %3069 = vmatpush1.bf16.msra.mxu0 %v3047
      %3070 = vmatprep.subr.bf16.mxu0 0
      %3071 = vmatpush1.bf16.msra.mxu0 %v3046
      %3072 = vmatprep.subr.bf16.mxu0 0
      %3073 = vmatpush1.bf16.msra.mxu0 %v3045
      %3074 = vmatprep.subr.bf16.mxu0 0
      %3075 = vmatpush1.bf16.msra.mxu0 %v3044
      %3076 = vmatprep.subr.bf16.mxu0 0
      %3077 = vmatpush2.bf16.msra.mxu0 0
      %3078 = vmatprep.subr.bf16.mxu0 0
      %3079 = vmatpush2.bf16.msra.mxu0 0
      %3080 = vmatprep.subr.bf16.mxu0 0
      %3081 = vmatpush2.bf16.msra.mxu0 0
      %3082 = vmatprep.subr.bf16.mxu0 0
      %3083 = vmatpush2.bf16.msra.mxu0 0
      %3084 = vmatprep.subr.bf16.mxu0 0
      %3085 = vmatpush2.bf16.msra.mxu0 0
      %3086 = vmatprep.subr.bf16.mxu0 0
      %3087 = vmatpush2.bf16.msra.mxu0 0
      %3088 = vmatprep.subr.bf16.mxu0 0
      %3089 = vmatpush2.bf16.msra.mxu0 0
      %3090 = vmatprep.subr.bf16.mxu0 0
      %3091 = vmatpush2.bf16.msra.mxu0 0
      %3092 = vmatprep.mubr.bf16.mxu0 0
      %3093 = vmatmul.mubr.bf16.gmra.mxu0 %v2916
      %v3094 = vpop.f32.mrf.mxu0
      %v3095 = vadd.f32 %v3006, %v3094
      %v3096 = vpop.f32.mrf.mxu0
      %v3097 = vpop.f32.mrf.mxu0
      %v3098 = vadd.f32 %v3009, %v3097
      %v3099 = vpop.f32.mrf.mxu0
      %3100 = vdwg.mxu0
      %v3117 = vunpack.c.l.b16 %v2897
      %v3118 = vunpack.c.l.b16 %v2898
      %v3119 = vunpack.c.l.b16 %v2899
      %v3120 = vunpack.c.l.b16 %v2900
      %v3121 = vunpack.c.l.b16 %v2901
      %v3122 = vunpack.c.l.b16 %v2902
      %v3123 = vunpack.c.l.b16 %v2903
      %v3124 = vunpack.c.l.b16 %v2904
      %v3125 = vunpack.c.l.b16 %v2905
      %v3126 = vunpack.c.l.b16 %v2906
      %v3127 = vunpack.c.l.b16 %v2907
      %v3128 = vunpack.c.l.b16 %v2908
      %v3129 = vunpack.c.l.b16 %v2909
      %v3130 = vunpack.c.l.b16 %v2910
      %v3131 = vunpack.c.l.b16 %v2911
      %v3132 = vunpack.c.l.b16 %v2912
      %v3133 = vpack.c.b16 %v3118, %v3117
      %v3134 = vpack.c.b16 %v3120, %v3119
      %v3135 = vpack.c.b16 %v3122, %v3121
      %v3136 = vpack.c.b16 %v3124, %v3123
      %v3137 = vpack.c.b16 %v3126, %v3125
      %v3138 = vpack.c.b16 %v3128, %v3127
      %v3139 = vpack.c.b16 %v3130, %v3129
      %v3140 = vpack.c.b16 %v3132, %v3131
      %3149 = vmatprep.subr.bf16.mxu0 0
      %3150 = vmatpush1.bf16.msra.mxu0 %v3140
      %3151 = vmatprep.subr.bf16.mxu0 0
      %3152 = vmatpush1.bf16.msra.mxu0 %v3139
      %3153 = vmatprep.subr.bf16.mxu0 0
      %3154 = vmatpush1.bf16.msra.mxu0 %v3138
      %3155 = vmatprep.subr.bf16.mxu0 0
      %3156 = vmatpush1.bf16.msra.mxu0 %v3137
      %3157 = vmatprep.subr.bf16.mxu0 0
      %3158 = vmatpush1.bf16.msra.mxu0 %v3136
      %3159 = vmatprep.subr.bf16.mxu0 0
      %3160 = vmatpush1.bf16.msra.mxu0 %v3135
      %3161 = vmatprep.subr.bf16.mxu0 0
      %3162 = vmatpush1.bf16.msra.mxu0 %v3134
      %3163 = vmatprep.subr.bf16.mxu0 0
      %3164 = vmatpush1.bf16.msra.mxu0 %v3133
      %3165 = vmatprep.subr.bf16.mxu0 0
      %3166 = vmatpush2.bf16.msra.mxu0 0
      %3167 = vmatprep.subr.bf16.mxu0 0
      %3168 = vmatpush2.bf16.msra.mxu0 0
      %3169 = vmatprep.subr.bf16.mxu0 0
      %3170 = vmatpush2.bf16.msra.mxu0 0
      %3171 = vmatprep.subr.bf16.mxu0 0
      %3172 = vmatpush2.bf16.msra.mxu0 0
      %3173 = vmatprep.subr.bf16.mxu0 0
      %3174 = vmatpush2.bf16.msra.mxu0 0
      %3175 = vmatprep.subr.bf16.mxu0 0
      %3176 = vmatpush2.bf16.msra.mxu0 0
      %3177 = vmatprep.subr.bf16.mxu0 0
      %3178 = vmatpush2.bf16.msra.mxu0 0
      %3179 = vmatprep.subr.bf16.mxu0 0
      %3180 = vmatpush2.bf16.msra.mxu0 0
      %3181 = vmatprep.mubr.bf16.mxu0 0
      %3182 = vmatmul.mubr.bf16.gmra.mxu0 %v2922
      %v3183 = vpop.f32.mrf.mxu0
      %v3184 = vadd.f32 0.0, %v3183
      %v3185 = vpop.f32.mrf.mxu0
      %v3186 = vpop.f32.mrf.mxu0
      %v3187 = vadd.f32 0.0, %v3186
      %v3188 = vpop.f32.mrf.mxu0
      %3189 = vdwg.mxu0
      %v3190 = vadd.f32 %v3095, %v3184
      %v3191 = vadd.f32 %v3098, %v3187
      %v3193 = vlaneseq
      %v3194 = vshrl.u32 %v3193, 7
      %v3195 = vsub.s32 0, %v3194
      %v3196 = vrot.slane %v2913, %v3195
      %v3198 = vadd.f32 %v3190, %v3196
      %v3199 = vadd.f32 %v3191, %v3196
      %3200 = vst [vmem:[%s426] sm:$0xff] %v3198
      %3201 = vst [vmem:[%s426 + $0x8] sm:$0xff] %v3199
      %p3202 = scmp.lt.s32.totalorder %s24, 1
      %s3203 = scalar_select %p3202, %s24, 1
      %s3204 = smul.addr %s3203, 2
      %s3205 = smul.addr %s3204, 8
      %s3206 = scalar_lea.vmem %s11, %s3205
      %p3207 = scmp.lt.s32.totalorder %s24, 1
      %s3208 = scalar_select %p3207, %s24, 1
      %s3209 = smul.addr %s3208, 2
      %s3210 = smul.addr %s3209, 8
      %s3211 = scalar_lea.vmem %s12, %s3210
      // Predicated region
      $region65: #{jam_decoder_top_level.1} parent=63 // pred_check
        %p3212 = pneg %p278
      $region66: #{jam_decoder_top_level.1} parent=63 // pred_check_branch
        %3214 = sbr.rel (%p3212) target = $region68
      $region67: #{jam_decoder_top_level.1} parent=63 // pred_region
        _
      $region68: #{jam_decoder_top_level.1} parent=63 // pred_fallthru
        _
      // Predicated region
      $region69: #{jam_decoder_top_level.1} parent=63 // pred_check
        %p3215 = pneg %p304
      $region70: #{jam_decoder_top_level.1} parent=63 // pred_check_branch
        %3217 = sbr.rel (%p3215) target = $region72
      $region71: #{jam_decoder_top_level.1} parent=63 // pred_region
        _
      $region72: #{jam_decoder_top_level.1} parent=63 // pred_fallthru
        _
    $region64: #{jam_decoder_top_level.1} parent=5 // pred_fallthru
      _
    %p3218 = scmp.le.s32.totalorder 2, %s19
    // Predicated region
    $region73: #{jam_decoder_top_level.1} parent=5 // pred_check
      %p3219 = pneg %p3218
    $region74: #{jam_decoder_top_level.1} parent=5 // pred_check_branch
      %3221 = sbr.rel (%p3219) target = $region76
    $region75: #{jam_decoder_top_level.1} parent=5 // pred_region
      %s3222 = ssub.s32 %s19, 2
      // Predicated region
      $region77: #{jam_decoder_top_level.1} parent=75 // pred_check
        %p3223 = pneg %p284
      $region78: #{jam_decoder_top_level.1} parent=75 // pred_check_branch
        %3225 = sbr.rel (%p3223) target = $region80
      $region79: #{jam_decoder_top_level.1} parent=75 // pred_region
        %p3226 = scmp.lt.s32.totalorder %s25, 1
        %s3227 = scalar_select %p3226, %s25, 1
        %s3228 = smul.addr %s3227, 2
        %s3229 = smul.addr %s3228, 8
        %s3230 = scalar_lea.vmem %s11, %s3229
      $region80: #{jam_decoder_top_level.1} parent=75 // pred_fallthru
        _
      // Predicated region
      $region81: #{jam_decoder_top_level.1} parent=75 // pred_check
        %p3231 = pneg %p310
      $region82: #{jam_decoder_top_level.1} parent=75 // pred_check_branch
        %3233 = sbr.rel (%p3231) target = $region84
      $region83: #{jam_decoder_top_level.1} parent=75 // pred_region
        %p3234 = scmp.lt.s32.totalorder %s25, 1
        %s3235 = scalar_select %p3234, %s25, 1
        %s3236 = smul.addr %s3235, 2
        %s3237 = smul.addr %s3236, 8
        %s3238 = scalar_lea.vmem %s12, %s3237
      $region84: #{jam_decoder_top_level.1} parent=75 // pred_fallthru
        _
    $region76: #{jam_decoder_top_level.1} parent=5 // pred_fallthru
      _
  $region6: #{jam_decoder_top_level.1} parent=0 // loop_footer
    %s23 = sadd.s32 1, %s19
  $region7: #{jam_decoder_top_level.1} parent=0 // loop_footer_branch
    %18 = sbr.rel target = $region3
  $region8: #{jam_decoder_top_level.1} parent=0 // loop_exit
    _

</llo_original>
